<compile_context>
chip_gen: v7x
topology: tpu7x:2x2x1
jax: 0.10.0
libtpu: 0.0.40
codegen_flags: <defaults>
</compile_context>

<pallas_src>
from functools import partial

import jax
import jax.numpy as jnp
from jax.experimental import pallas as pl
from jax.experimental.pallas import tpu as pltpu

# ----------------------------- configuration --------------------------------
B         = 2                        # batch
C         = 3                        # input channels
IMG       = 16                       # image height = width
P         = 4                        # patch size
N_PATCH   = (IMG // P) ** 2          # 16 patches
SEQ       = N_PATCH + 1              # +1 cls token -> 17
CPP       = C * P * P                # flattened patch length (48)
VIT_DIM   = 32                       # vit_dim
NUM_HEADS = 4
HEAD_DIM  = VIT_DIM // NUM_HEADS     # 8
MLP_DIM   = VIT_DIM * 4              # 128
DEPTH     = 2                        # transformer blocks
EMB_DIM   = 16                       # emb_dim (output of self.fc)
CLIP_R    = 2.0                      # clip_r
CURV      = 1.0                      # PoincareBall curvature c
LN_EPS    = 1e-6                     # timm ViT LayerNorm eps
LANE      = 128                      # slab lane width

# ---- bf16 weight-slab row layout (every region 8-row aligned) ----
PATCH_W_OFF  = 0                                  # [CPP, VIT_DIM]
LAYER_W_ROWS = 3 * VIT_DIM + MLP_DIM              # qkv(32)+proj(32)+fc1(32)+fc2(128) = 224
BF16_ROWS    = CPP + DEPTH * LAYER_W_ROWS         # 496

# ---- f32 slab row layout ----
ADD_OFF      = 0                                  # [SEQ, VIT_DIM] cls_tok + pos_emb (+conv bias)
FCW_OFF      = 24                                 # [VIT_DIM, EMB_DIM]
VEC_OFF      = FCW_OFF + VIT_DIM                  # 56; one vector per row, 8 rows per layer:
#   +0 ln1_g  +1 ln1_b  +2 b_qkv(96)  +3 b_proj  +4 ln2_g  +5 ln2_b  +6 b_fc1(128)  +7 b_fc2
HEAD_VEC_OFF = VEC_OFF + DEPTH * 8                # 72: norm_g, 73: norm_b, 74: fc_b
F32_ROWS     = 80


# ------------------------------ kernel helpers -------------------------------
def _layernorm(x, gamma, beta):
    mu = jnp.mean(x, axis=-1, keepdims=True)
    var = jnp.mean(jnp.square(x - mu), axis=-1, keepdims=True)
    return (x - mu) * jax.lax.rsqrt(var + LN_EPS) * gamma + beta


def _gelu_tanh(x):
    # TODO(synk): timm ViT uses exact (erf) GELU; tanh approximation used here
    # since erf has no guaranteed Mosaic lowering.
    c = 0.7978845608028654  # sqrt(2/pi)
    return 0.5 * x * (1.0 + jnp.tanh(c * (x + 0.044715 * x * x * x)))


def _to_heads(m, col, bt):
    """[bt*SEQ, >=col+VIT_DIM] -> [bt*NUM_HEADS, SEQ, HEAD_DIM] (batch*head leading axis)."""
    return jnp.stack(
        [m[b * SEQ:(b + 1) * SEQ, col + h * HEAD_DIM:col + (h + 1) * HEAD_DIM]
         for b in range(bt) for h in range(NUM_HEADS)], axis=0)


def _from_heads(a, bt):
    """[bt*NUM_HEADS, SEQ, HEAD_DIM] -> [bt*SEQ, VIT_DIM]."""
    rows = [jnp.concatenate([a[b * NUM_HEADS + h] for h in range(NUM_HEADS)], axis=-1)
            for b in range(bt)]
    return rows[0] if bt == 1 else jnp.concatenate(rows, axis=0)


# ------------------------------- fused kernel --------------------------------
def fused_vit_kernel(patches_ref, wbf_ref, wf_ref, o_ref, *, bt):
    """Whole HyperbolicViT forward for `bt` batch elements, entirely in VMEM."""
    bf16 = jnp.bfloat16

    # ---- patch embed: one [bt*SEQ, CPP] x [CPP, D] matmul. Row 0 of every
    # sample is zero, so adding the precombined term leaves cls_token+pos_embed
    # there and conv_bias+pos_embed on patch rows.
    patch_w = wbf_ref[PATCH_W_OFF:PATCH_W_OFF + CPP, 0:VIT_DIM]           # bf16 [48, 32]
    add = wf_ref[ADD_OFF:ADD_OFF + SEQ, 0:VIT_DIM]                        # f32  [17, 32]
    add_rows = add if bt == 1 else jnp.concatenate([add] * bt, axis=0)
    x = jnp.dot(patches_ref[0], patch_w,
                preferred_element_type=jnp.float32) + add_rows            # [bt*SEQ, D] f32

    for l in range(DEPTH):
        wb = CPP + l * LAYER_W_ROWS
        vb = VEC_OFF + l * 8
        w_qkv  = wbf_ref[wb:wb + VIT_DIM, 0:3 * VIT_DIM]
        w_proj = wbf_ref[wb + VIT_DIM:wb + 2 * VIT_DIM, 0:VIT_DIM]
        w_fc1  = wbf_ref[wb + 2 * VIT_DIM:wb + 3 * VIT_DIM, 0:MLP_DIM]
        w_fc2  = wbf_ref[wb + 3 * VIT_DIM:wb + 3 * VIT_DIM + MLP_DIM, 0:VIT_DIM]
        ln1_g  = wf_ref[vb + 0:vb + 1, 0:VIT_DIM]
        ln1_b  = wf_ref[vb + 1:vb + 2, 0:VIT_DIM]
        b_qkv  = wf_ref[vb + 2:vb + 3, 0:3 * VIT_DIM]
        b_proj = wf_ref[vb + 3:vb + 4, 0:VIT_DIM]
        ln2_g  = wf_ref[vb + 4:vb + 5, 0:VIT_DIM]
        ln2_b  = wf_ref[vb + 5:vb + 6, 0:VIT_DIM]
        b_fc1  = wf_ref[vb + 6:vb + 7, 0:MLP_DIM]
        b_fc2  = wf_ref[vb + 7:vb + 8, 0:VIT_DIM]

        # -------------- attention branch (pre-LN) --------------
        xn = _layernorm(x, ln1_g, ln1_b).astype(bf16)
        qkv = (jnp.dot(xn, w_qkv, preferred_element_type=jnp.float32)
               + b_qkv).astype(bf16)                        # [rows, 3D]; q pre-scaled
        qh = _to_heads(qkv, 0 * VIT_DIM, bt)                # [bt*H, SEQ, Dh] bf16
        kh = _to_heads(qkv, 1 * VIT_DIM, bt)
        vh = _to_heads(qkv, 2 * VIT_DIM, bt)

        logits = jnp.einsum('nqd,nkd->nqk', qh, kh,
                            preferred_element_type=jnp.float32)           # [bt*H, S, S]
        logits = logits - jnp.max(logits, axis=-1, keepdims=True)
        p = jnp.exp(logits)
        p = p * pl.reciprocal(jnp.sum(p, axis=-1, keepdims=True), approx=True)
        ah = jnp.einsum('nqk,nkd->nqd', p.astype(bf16), vh,
                        preferred_element_type=jnp.float32)               # [bt*H, S, Dh]

        attn = _from_heads(ah, bt).astype(bf16)                           # [rows, D]
        attn = jnp.dot(attn, w_proj, preferred_element_type=jnp.float32) + b_proj
        x = x + attn

        # -------------- MLP branch (pre-LN) --------------
        xn = _layernorm(x, ln2_g, ln2_b).astype(bf16)
        h = jnp.dot(xn, w_fc1, preferred_element_type=jnp.float32) + b_fc1
        h = _gelu_tanh(h).astype(bf16)
        h = jnp.dot(h, w_fc2, preferred_element_type=jnp.float32) + b_fc2
        x = x + h

    # ---- head: final ViT LayerNorm on cls rows -> fc -> clip_features -> expmap_0
    norm_g = wf_ref[HEAD_VEC_OFF + 0:HEAD_VEC_OFF + 1, 0:VIT_DIM]
    norm_b = wf_ref[HEAD_VEC_OFF + 1:HEAD_VEC_OFF + 2, 0:VIT_DIM]
    fc_b   = wf_ref[HEAD_VEC_OFF + 2:HEAD_VEC_OFF + 3, 0:EMB_DIM]
    fc_w   = wf_ref[FCW_OFF:FCW_OFF + VIT_DIM, 0:EMB_DIM]

    cls = (x[0:1, :] if bt == 1 else
           jnp.concatenate([x[b * SEQ:b * SEQ + 1, :] for b in range(bt)], axis=0))
    cls = _layernorm(cls, norm_g, norm_b)                                  # [bt, D] f32
    e = jnp.dot(cls, fc_w, preferred_element_type=jnp.float32) + fc_b      # [bt, EMB]

    # clip_features: x * min(1, clip_r / (||x|| + 1e-5))  -- exact reciprocal in head
    nrm = jnp.sqrt(jnp.sum(e * e, axis=-1, keepdims=True)) + 1e-5
    e = e * jnp.minimum(jnp.ones_like(nrm), CLIP_R / nrm)

    # PoincareBall expmap_0: tanh(sqrt(c)||v||) * v / (sqrt(c)||v||), norm clamped.
    sc = CURV ** 0.5
    vnorm = jnp.maximum(jnp.sqrt(jnp.sum(e * e, axis=-1, keepdims=True)), 1e-15)
    o_ref[0] = jnp.tanh(sc * vnorm) * e / (sc * vnorm)                    # [bt, EMB]


# ------------------------------ model wrapper ---------------------------------
def _default_num_blocks(batch):
    """One grid step on single-TensorCore chips (v5e/v6e); two on v7x (2 TCs)."""
    try:
        kind = jax.devices()[0].device_kind.lower()
    except Exception:
        return 1
    if ("v7" in kind or "7x" in kind) and batch % 2 == 0:
        return 2
    return 1


def hyperbolic_vit_forward(x, packed, num_blocks=None):
    bb = x.shape[0]
    if num_blocks is None:
        num_blocks = _default_num_blocks(bb)
    if bb % num_blocks != 0:
        num_blocks = 1
    bt = bb // num_blocks
    gh = gw = IMG // P

    # im2col in (c, ph, pw) order (matches Conv2d weight layout [D, C, P, P]);
    # a zero row is prepended per sample for the cls-token slot.
    patches = x.reshape(bb, C, gh, P, gw, P).transpose(0, 2, 4, 1, 3, 5)
    patches = patches.reshape(bb, N_PATCH, CPP)
    patches = jnp.concatenate(
        [jnp.zeros((bb, 1, CPP), patches.dtype), patches], axis=1)
    patches = patches.reshape(num_blocks, bt * SEQ, CPP).astype(jnp.bfloat16)

    wbf, wf32 = packed['wbf'], packed['wf32']

    out = pl.pallas_call(
        partial(fused_vit_kernel, bt=bt),
        out_shape=jax.ShapeDtypeStruct((num_blocks, bt, EMB_DIM), jnp.float32),
        grid=(num_blocks,),
        in_specs=[
            pl.BlockSpec((1, bt * SEQ, CPP), lambda b: (b, 0, 0)),
            pl.BlockSpec(wbf.shape, lambda b: (0, 0)),
            pl.BlockSpec(wf32.shape, lambda b: (0, 0)),
        ],
        out_specs=pl.BlockSpec((1, bt, EMB_DIM), lambda b: (b, 0, 0)),
        compiler_params=pltpu.CompilerParams(
            dimension_semantics=("parallel",)),
    )(patches, wbf, wf32)
    return out.reshape(bb, EMB_DIM)


# --------------------------- deterministic params -----------------------------
def init_params(key):
    """PyTorch-layout parameters (Conv2d weight [D,C,P,P], Linear weights [in,out])."""
    keys = iter(jax.random.split(key, 64))

    def nrm(shape, std=0.02):
        return (std * jax.random.normal(next(keys), shape)).astype(jnp.float32)

    params = {
        'patch_w':   nrm((VIT_DIM, C, P, P)),
        'patch_b':   nrm((1, VIT_DIM)),
        'cls_token': nrm((1, 1, VIT_DIM)),
        'pos_embed': nrm((1, SEQ, VIT_DIM)),
        'norm_g':    jnp.ones((1, VIT_DIM), jnp.float32),
        'norm_b':    jnp.zeros((1, VIT_DIM), jnp.float32),
        'fc_w':      nrm((VIT_DIM, EMB_DIM)),
        'fc_b':      nrm((1, EMB_DIM)),
        'blocks':    [],
    }
    for _ in range(DEPTH):
        params['blocks'].append({
            'ln1_g':  jnp.ones((1, VIT_DIM), jnp.float32),
            'ln1_b':  jnp.zeros((1, VIT_DIM), jnp.float32),
            'w_qkv':  nrm((VIT_DIM, 3 * VIT_DIM)),
            'b_qkv':  nrm((1, 3 * VIT_DIM)),
            'w_proj': nrm((VIT_DIM, VIT_DIM)),
            'b_proj': nrm((1, VIT_DIM)),
            'ln2_g':  jnp.ones((1, VIT_DIM), jnp.float32),
            'ln2_b':  jnp.zeros((1, VIT_DIM), jnp.float32),
            'w_fc1':  nrm((VIT_DIM, MLP_DIM)),
            'b_fc1':  nrm((1, MLP_DIM)),
            'w_fc2':  nrm((MLP_DIM, VIT_DIM)),
            'b_fc2':  nrm((1, VIT_DIM)),
        })
    return params


def pack_params(params):
    """One-time kernel-ready packing into two slabs:
       * bf16 slab [496,128]: patch-embed weight + per-layer {qkv, proj, fc1, fc2}
         (1/sqrt(head_dim) folded into the q columns).
       * f32 slab [80,128]: precombined cls_token+pos_embed+conv-bias term, fc_w,
         and every bias / LayerNorm vector (one per row)."""
    bf16 = jnp.bfloat16
    scale = 1.0 / (HEAD_DIM ** 0.5)

    # ---- bf16 matmul-weight slab ----
    wbf = jnp.zeros((BF16_ROWS, LANE), bf16)
    patch_w = params['patch_w'].reshape(VIT_DIM, CPP).T                   # [CPP, D]
    wbf = wbf.at[PATCH_W_OFF:PATCH_W_OFF + CPP, 0:VIT_DIM].set(patch_w.astype(bf16))
    for l, blk in enumerate(params['blocks']):
        base = CPP + l * LAYER_W_ROWS
        w_qkv = blk['w_qkv'].at[:, 0:VIT_DIM].multiply(scale)             # fold q scale
        wbf = wbf.at[base:base + VIT_DIM, 0:3 * VIT_DIM].set(w_qkv.astype(bf16))
        wbf = wbf.at[base + VIT_DIM:base + 2 * VIT_DIM,
                     0:VIT_DIM].set(blk['w_proj'].astype(bf16))
        wbf = wbf.at[base + 2 * VIT_DIM:base + 3 * VIT_DIM,
                     0:MLP_DIM].set(blk['w_fc1'].astype(bf16))
        wbf = wbf.at[base + 3 * VIT_DIM:base + 3 * VIT_DIM + MLP_DIM,
                     0:VIT_DIM].set(blk['w_fc2'].astype(bf16))

    # ---- f32 bias / LN / head slab ----
    wf = jnp.zeros((F32_ROWS, LANE), jnp.float32)
    add = params['pos_embed'][0]                                          # [SEQ, D]
    add = add.at[0].add(params['cls_token'][0, 0])
    add = add.at[1:].add(params['patch_b'][0])
    wf = wf.at[ADD_OFF:ADD_OFF + SEQ, 0:VIT_DIM].set(add)
    for l, blk in enumerate(params['blocks']):
        vb = VEC_OFF + l * 8
        b_qkv = blk['b_qkv'][0].at[0:VIT_DIM].multiply(scale)             # fold q scale
        wf = wf.at[vb + 0, 0:VIT_DIM].set(blk['ln1_g'][0])
        wf = wf.at[vb + 1, 0:VIT_DIM].set(blk['ln1_b'][0])
        wf = wf.at[vb + 2, 0:3 * VIT_DIM].set(b_qkv)
        wf = wf.at[vb + 3, 0:VIT_DIM].set(blk['b_proj'][0])
        wf = wf.at[vb + 4, 0:VIT_DIM].set(blk['ln2_g'][0])
        wf = wf.at[vb + 5, 0:VIT_DIM].set(blk['ln2_b'][0])
        wf = wf.at[vb + 6, 0:MLP_DIM].set(blk['b_fc1'][0])
        wf = wf.at[vb + 7, 0:VIT_DIM].set(blk['b_fc2'][0])
    wf = wf.at[FCW_OFF:FCW_OFF + VIT_DIM, 0:EMB_DIM].set(params['fc_w'])
    wf = wf.at[HEAD_VEC_OFF + 0, 0:VIT_DIM].set(params['norm_g'][0])
    wf = wf.at[HEAD_VEC_OFF + 1, 0:VIT_DIM].set(params['norm_b'][0])
    wf = wf.at[HEAD_VEC_OFF + 2, 0:EMB_DIM].set(params['fc_b'][0])

    return {'wbf': wbf, 'wf32': wf}


if __name__ == "__main__":
    key = jax.random.PRNGKey(0)
    pkey, xkey = jax.random.split(key)
    params = init_params(pkey)
    packed = pack_params(params)        # one-time packing, hoisted out of the forward
    x = jax.random.normal(xkey, (B, C, IMG, IMG), dtype=jnp.float32)

    fwd = jax.jit(hyperbolic_vit_forward)
    out = fwd(x, packed)
    jax.block_until_ready(out)

    assert out.shape == (B, EMB_DIM), out.shape
    assert bool(jnp.all(jnp.isfinite(out)))
    # points must lie inside the unit Poincare ball (curvature 1)
    assert bool(jnp.all(jnp.sum(out * out, axis=-1) < 1.0))
    print("KERNEL_OK")
</pallas_src>

<mosaic_0001>
module attributes {stable_mosaic.version = 11 : i64} {
  func.func @fused_vit_kernel(%arg0: i32, %arg1: memref<1x34x48xbf16, #tpu.memory_space<vmem>>, %arg2: memref<496x128xbf16, #tpu.memory_space<vmem>>, %arg3: memref<80x128xf32, #tpu.memory_space<vmem>>, %arg4: memref<1x2x16xf32, #tpu.memory_space<vmem>>) attributes {dimension_semantics = [#tpu.dimension_semantics<parallel>], iteration_bounds = array<i64: 1>, scalar_prefetch = 0 : i64, scratch_operands = 0 : i64, tpu.core_type = #tpu.core_type<tc>, window_params = [{transform_indices = @transform_0, window_bounds = array<i64: 1, 34, 48>}, {pipeline_mode = #tpu.pipeline_mode<synchronous>, transform_indices = @transform_1, window_bounds = array<i64: 496, 128>}, {pipeline_mode = #tpu.pipeline_mode<synchronous>, transform_indices = @transform_2, window_bounds = array<i64: 80, 128>}, {transform_indices = @transform_3, window_bounds = array<i64: 1, 2, 16>}]} {
    %c0 = arith.constant 0 : index
    %c0_0 = arith.constant 0 : index
    %0 = vector.load %arg2[%c0, %c0_0] : memref<496x128xbf16, #tpu.memory_space<vmem>>, vector<48x32xbf16>
    %c0_1 = arith.constant 0 : index
    %c0_2 = arith.constant 0 : index
    %1 = vector.load %arg3[%c0_1, %c0_2] : memref<80x128xf32, #tpu.memory_space<vmem>>, vector<17x32xf32>
    %2 = tpu.concatenate %1, %1 in 0 : vector<17x32xf32>, vector<17x32xf32> -> vector<34x32xf32>
    %c0_3 = arith.constant 0 : index
    %c0_4 = arith.constant 0 : index
    %c0_5 = arith.constant 0 : index
    %3 = vector.load %arg1[%c0_3, %c0_4, %c0_5] : memref<1x34x48xbf16, #tpu.memory_space<vmem>>, vector<1x34x48xbf16>
    %4 = vector.shape_cast %3 : vector<1x34x48xbf16> to vector<34x48xbf16>
    %cst = arith.constant dense<0.000000e+00> : vector<34x32xf32>
    %5 = tpu.matmul %4, %0, %cst {dimension_numbers = #tpu.dot_dimension_numbers<[1], [0], [0], [1], [0, 0, 1, 1], [], []>} : vector<34x48xbf16>, vector<48x32xbf16>, vector<34x32xf32> -> vector<34x32xf32>
    %6 = arith.addf %5, %2 : vector<34x32xf32>
    %c48 = arith.constant 48 : index
    %c0_6 = arith.constant 0 : index
    %7 = vector.load %arg2[%c48, %c0_6] : memref<496x128xbf16, #tpu.memory_space<vmem>>, vector<32x96xbf16>
    %c80 = arith.constant 80 : index
    %c0_7 = arith.constant 0 : index
    %8 = vector.load %arg2[%c80, %c0_7] : memref<496x128xbf16, #tpu.memory_space<vmem>>, vector<32x32xbf16>
    %c112 = arith.constant 112 : index
    %c0_8 = arith.constant 0 : index
    %9 = vector.load %arg2[%c112, %c0_8] : memref<496x128xbf16, #tpu.memory_space<vmem>>, vector<32x128xbf16>
    %c144 = arith.constant 144 : index
    %c0_9 = arith.constant 0 : index
    %10 = vector.load %arg2[%c144, %c0_9] : memref<496x128xbf16, #tpu.memory_space<vmem>>, vector<128x32xbf16>
    %c56 = arith.constant 56 : index
    %c0_10 = arith.constant 0 : index
    %11 = vector.load %arg3[%c56, %c0_10] : memref<80x128xf32, #tpu.memory_space<vmem>>, vector<1x32xf32>
    %c57 = arith.constant 57 : index
    %c0_11 = arith.constant 0 : index
    %12 = vector.load %arg3[%c57, %c0_11] : memref<80x128xf32, #tpu.memory_space<vmem>>, vector<1x32xf32>
    %c58 = arith.constant 58 : index
    %c0_12 = arith.constant 0 : index
    %13 = vector.load %arg3[%c58, %c0_12] : memref<80x128xf32, #tpu.memory_space<vmem>>, vector<1x96xf32>
    %c59 = arith.constant 59 : index
    %c0_13 = arith.constant 0 : index
    %14 = vector.load %arg3[%c59, %c0_13] : memref<80x128xf32, #tpu.memory_space<vmem>>, vector<1x32xf32>
    %c60 = arith.constant 60 : index
    %c0_14 = arith.constant 0 : index
    %15 = vector.load %arg3[%c60, %c0_14] : memref<80x128xf32, #tpu.memory_space<vmem>>, vector<1x32xf32>
    %c61 = arith.constant 61 : index
    %c0_15 = arith.constant 0 : index
    %16 = vector.load %arg3[%c61, %c0_15] : memref<80x128xf32, #tpu.memory_space<vmem>>, vector<1x32xf32>
    %c62 = arith.constant 62 : index
    %c0_16 = arith.constant 0 : index
    %17 = vector.load %arg3[%c62, %c0_16] : memref<80x128xf32, #tpu.memory_space<vmem>>, vector<1x128xf32>
    %c63 = arith.constant 63 : index
    %c0_17 = arith.constant 0 : index
    %18 = vector.load %arg3[%c63, %c0_17] : memref<80x128xf32, #tpu.memory_space<vmem>>, vector<1x32xf32>
    %cst_18 = arith.constant dense<0.000000e+00> : vector<34xf32>
    %19 = vector.multi_reduction <add>, %6, %cst_18 [1] : vector<34x32xf32> to vector<34xf32>
    %20 = vector.shape_cast %19 : vector<34xf32> to vector<34x1xf32>
    %cst_19 = arith.constant 3.200000e+01 : f32
    %21 = vector.broadcast %cst_19 : f32 to vector<34x1xf32>
    %22 = arith.divf %20, %21 : vector<34x1xf32>
    %23 = vector.broadcast %22 : vector<34x1xf32> to vector<34x32xf32>
    %24 = arith.subf %6, %23 : vector<34x32xf32>
    %25 = arith.mulf %24, %24 : vector<34x32xf32>
    %cst_20 = arith.constant dense<0.000000e+00> : vector<34xf32>
    %26 = vector.multi_reduction <add>, %25, %cst_20 [1] : vector<34x32xf32> to vector<34xf32>
    %27 = vector.shape_cast %26 : vector<34xf32> to vector<34x1xf32>
    %cst_21 = arith.constant 3.200000e+01 : f32
    %28 = vector.broadcast %cst_21 : f32 to vector<34x1xf32>
    %29 = arith.divf %27, %28 : vector<34x1xf32>
    %30 = vector.broadcast %22 : vector<34x1xf32> to vector<34x32xf32>
    %31 = arith.subf %6, %30 : vector<34x32xf32>
    %cst_22 = arith.constant 9.99999997E-7 : f32
    %32 = vector.broadcast %cst_22 : f32 to vector<34x1xf32>
    %33 = arith.addf %29, %32 : vector<34x1xf32>
    %34 = math.rsqrt %33 : vector<34x1xf32>
    %35 = vector.broadcast %34 : vector<34x1xf32> to vector<34x32xf32>
    %36 = arith.mulf %31, %35 : vector<34x32xf32>
    %37 = vector.broadcast %11 : vector<1x32xf32> to vector<34x32xf32>
    %38 = arith.mulf %36, %37 : vector<34x32xf32>
    %39 = vector.broadcast %12 : vector<1x32xf32> to vector<34x32xf32>
    %40 = arith.addf %38, %39 : vector<34x32xf32>
    %41 = arith.truncf %40 : vector<34x32xf32> to vector<34x32xbf16>
    %cst_23 = arith.constant dense<0.000000e+00> : vector<34x96xf32>
    %42 = tpu.matmul %41, %7, %cst_23 {dimension_numbers = #tpu.dot_dimension_numbers<[1], [0], [0], [1], [0, 0, 1, 1], [], []>} : vector<34x32xbf16>, vector<32x96xbf16>, vector<34x96xf32> -> vector<34x96xf32>
    %43 = vector.broadcast %13 : vector<1x96xf32> to vector<34x96xf32>
    %44 = arith.addf %42, %43 : vector<34x96xf32>
    %45 = arith.truncf %44 : vector<34x96xf32> to vector<34x96xbf16>
    %46 = vector.extract_strided_slice %45 {offsets = [0, 0], sizes = [17, 8], strides = [1, 1]} : vector<34x96xbf16> to vector<17x8xbf16>
    %47 = vector.extract_strided_slice %45 {offsets = [0, 8], sizes = [17, 8], strides = [1, 1]} : vector<34x96xbf16> to vector<17x8xbf16>
    %48 = vector.extract_strided_slice %45 {offsets = [0, 16], sizes = [17, 8], strides = [1, 1]} : vector<34x96xbf16> to vector<17x8xbf16>
    %49 = vector.extract_strided_slice %45 {offsets = [0, 24], sizes = [17, 8], strides = [1, 1]} : vector<34x96xbf16> to vector<17x8xbf16>
    %50 = vector.extract_strided_slice %45 {offsets = [17, 0], sizes = [17, 8], strides = [1, 1]} : vector<34x96xbf16> to vector<17x8xbf16>
    %51 = vector.extract_strided_slice %45 {offsets = [17, 8], sizes = [17, 8], strides = [1, 1]} : vector<34x96xbf16> to vector<17x8xbf16>
    %52 = vector.extract_strided_slice %45 {offsets = [17, 16], sizes = [17, 8], strides = [1, 1]} : vector<34x96xbf16> to vector<17x8xbf16>
    %53 = vector.extract_strided_slice %45 {offsets = [17, 24], sizes = [17, 8], strides = [1, 1]} : vector<34x96xbf16> to vector<17x8xbf16>
    %54 = vector.shape_cast %46 : vector<17x8xbf16> to vector<1x17x8xbf16>
    %55 = vector.shape_cast %47 : vector<17x8xbf16> to vector<1x17x8xbf16>
    %56 = vector.shape_cast %48 : vector<17x8xbf16> to vector<1x17x8xbf16>
    %57 = vector.shape_cast %49 : vector<17x8xbf16> to vector<1x17x8xbf16>
    %58 = vector.shape_cast %50 : vector<17x8xbf16> to vector<1x17x8xbf16>
    %59 = vector.shape_cast %51 : vector<17x8xbf16> to vector<1x17x8xbf16>
    %60 = vector.shape_cast %52 : vector<17x8xbf16> to vector<1x17x8xbf16>
    %61 = vector.shape_cast %53 : vector<17x8xbf16> to vector<1x17x8xbf16>
    %62 = tpu.concatenate %54, %55, %56, %57, %58, %59, %60, %61 in 0 : vector<1x17x8xbf16>, vector<1x17x8xbf16>, vector<1x17x8xbf16>, vector<1x17x8xbf16>, vector<1x17x8xbf16>, vector<1x17x8xbf16>, vector<1x17x8xbf16>, vector<1x17x8xbf16> -> vector<8x17x8xbf16>
    %63 = vector.extract_strided_slice %45 {offsets = [0, 32], sizes = [17, 8], strides = [1, 1]} : vector<34x96xbf16> to vector<17x8xbf16>
    %64 = vector.extract_strided_slice %45 {offsets = [0, 40], sizes = [17, 8], strides = [1, 1]} : vector<34x96xbf16> to vector<17x8xbf16>
    %65 = vector.extract_strided_slice %45 {offsets = [0, 48], sizes = [17, 8], strides = [1, 1]} : vector<34x96xbf16> to vector<17x8xbf16>
    %66 = vector.extract_strided_slice %45 {offsets = [0, 56], sizes = [17, 8], strides = [1, 1]} : vector<34x96xbf16> to vector<17x8xbf16>
    %67 = vector.extract_strided_slice %45 {offsets = [17, 32], sizes = [17, 8], strides = [1, 1]} : vector<34x96xbf16> to vector<17x8xbf16>
    %68 = vector.extract_strided_slice %45 {offsets = [17, 40], sizes = [17, 8], strides = [1, 1]} : vector<34x96xbf16> to vector<17x8xbf16>
    %69 = vector.extract_strided_slice %45 {offsets = [17, 48], sizes = [17, 8], strides = [1, 1]} : vector<34x96xbf16> to vector<17x8xbf16>
    %70 = vector.extract_strided_slice %45 {offsets = [17, 56], sizes = [17, 8], strides = [1, 1]} : vector<34x96xbf16> to vector<17x8xbf16>
    %71 = vector.shape_cast %63 : vector<17x8xbf16> to vector<1x17x8xbf16>
    %72 = vector.shape_cast %64 : vector<17x8xbf16> to vector<1x17x8xbf16>
    %73 = vector.shape_cast %65 : vector<17x8xbf16> to vector<1x17x8xbf16>
    %74 = vector.shape_cast %66 : vector<17x8xbf16> to vector<1x17x8xbf16>
    %75 = vector.shape_cast %67 : vector<17x8xbf16> to vector<1x17x8xbf16>
    %76 = vector.shape_cast %68 : vector<17x8xbf16> to vector<1x17x8xbf16>
    %77 = vector.shape_cast %69 : vector<17x8xbf16> to vector<1x17x8xbf16>
    %78 = vector.shape_cast %70 : vector<17x8xbf16> to vector<1x17x8xbf16>
    %79 = tpu.concatenate %71, %72, %73, %74, %75, %76, %77, %78 in 0 : vector<1x17x8xbf16>, vector<1x17x8xbf16>, vector<1x17x8xbf16>, vector<1x17x8xbf16>, vector<1x17x8xbf16>, vector<1x17x8xbf16>, vector<1x17x8xbf16>, vector<1x17x8xbf16> -> vector<8x17x8xbf16>
    %80 = vector.extract_strided_slice %45 {offsets = [0, 64], sizes = [17, 8], strides = [1, 1]} : vector<34x96xbf16> to vector<17x8xbf16>
    %81 = vector.extract_strided_slice %45 {offsets = [0, 72], sizes = [17, 8], strides = [1, 1]} : vector<34x96xbf16> to vector<17x8xbf16>
    %82 = vector.extract_strided_slice %45 {offsets = [0, 80], sizes = [17, 8], strides = [1, 1]} : vector<34x96xbf16> to vector<17x8xbf16>
    %83 = vector.extract_strided_slice %45 {offsets = [0, 88], sizes = [17, 8], strides = [1, 1]} : vector<34x96xbf16> to vector<17x8xbf16>
    %84 = vector.extract_strided_slice %45 {offsets = [17, 64], sizes = [17, 8], strides = [1, 1]} : vector<34x96xbf16> to vector<17x8xbf16>
    %85 = vector.extract_strided_slice %45 {offsets = [17, 72], sizes = [17, 8], strides = [1, 1]} : vector<34x96xbf16> to vector<17x8xbf16>
    %86 = vector.extract_strided_slice %45 {offsets = [17, 80], sizes = [17, 8], strides = [1, 1]} : vector<34x96xbf16> to vector<17x8xbf16>
    %87 = vector.extract_strided_slice %45 {offsets = [17, 88], sizes = [17, 8], strides = [1, 1]} : vector<34x96xbf16> to vector<17x8xbf16>
    %88 = vector.shape_cast %80 : vector<17x8xbf16> to vector<1x17x8xbf16>
    %89 = vector.shape_cast %81 : vector<17x8xbf16> to vector<1x17x8xbf16>
    %90 = vector.shape_cast %82 : vector<17x8xbf16> to vector<1x17x8xbf16>
    %91 = vector.shape_cast %83 : vector<17x8xbf16> to vector<1x17x8xbf16>
    %92 = vector.shape_cast %84 : vector<17x8xbf16> to vector<1x17x8xbf16>
    %93 = vector.shape_cast %85 : vector<17x8xbf16> to vector<1x17x8xbf16>
    %94 = vector.shape_cast %86 : vector<17x8xbf16> to vector<1x17x8xbf16>
    %95 = vector.shape_cast %87 : vector<17x8xbf16> to vector<1x17x8xbf16>
    %96 = tpu.concatenate %88, %89, %90, %91, %92, %93, %94, %95 in 0 : vector<1x17x8xbf16>, vector<1x17x8xbf16>, vector<1x17x8xbf16>, vector<1x17x8xbf16>, vector<1x17x8xbf16>, vector<1x17x8xbf16>, vector<1x17x8xbf16>, vector<1x17x8xbf16> -> vector<8x17x8xbf16>
    "tpu.trace_start"() <{level = 10 : i32, message = "nqd,nkd->nqk"}> : () -> ()
    %cst_24 = arith.constant dense<0.000000e+00> : vector<8x17x17xf32>
    %97 = tpu.matmul %62, %79, %cst_24 {dimension_numbers = #tpu.dot_dimension_numbers<[2], [2], [1], [1], [0, 0, 0, 1, 1, 1], [0], [0]>} : vector<8x17x8xbf16>, vector<8x17x8xbf16>, vector<8x17x17xf32> -> vector<8x17x17xf32>
    "tpu.trace_stop"() : () -> ()
    %cst_25 = arith.constant dense<0xFF800000> : vector<8x17xf32>
    %98 = vector.multi_reduction <maximumf>, %97, %cst_25 [2] : vector<8x17x17xf32> to vector<8x17xf32>
    %99 = vector.shape_cast %98 : vector<8x17xf32> to vector<8x17x1xf32>
    %100 = vector.broadcast %99 : vector<8x17x1xf32> to vector<8x17x17xf32>
    %101 = arith.subf %97, %100 : vector<8x17x17xf32>
    %102 = math.exp %101 : vector<8x17x17xf32>
    %cst_26 = arith.constant dense<0.000000e+00> : vector<8x17xf32>
    %103 = vector.multi_reduction <add>, %102, %cst_26 [2] : vector<8x17x17xf32> to vector<8x17xf32>
    %104 = vector.shape_cast %103 : vector<8x17xf32> to vector<8x17x1xf32>
    %105 = tpu.reciprocal %104 {approx = true} : vector<8x17x1xf32> -> vector<8x17x1xf32>
    %106 = vector.broadcast %105 : vector<8x17x1xf32> to vector<8x17x17xf32>
    %107 = arith.mulf %102, %106 : vector<8x17x17xf32>
    %108 = arith.truncf %107 : vector<8x17x17xf32> to vector<8x17x17xbf16>
    "tpu.trace_start"() <{level = 10 : i32, message = "nqk,nkd->nqd"}> : () -> ()
    %cst_27 = arith.constant dense<0.000000e+00> : vector<8x17x8xf32>
    %109 = tpu.matmul %108, %96, %cst_27 {dimension_numbers = #tpu.dot_dimension_numbers<[2], [1], [1], [2], [0, 0, 0, 1, 1, 2], [0], [0]>} : vector<8x17x17xbf16>, vector<8x17x8xbf16>, vector<8x17x8xf32> -> vector<8x17x8xf32>
    "tpu.trace_stop"() : () -> ()
    %110 = vector.extract_strided_slice %109 {offsets = [0, 0, 0], sizes = [1, 17, 8], strides = [1, 1, 1]} : vector<8x17x8xf32> to vector<1x17x8xf32>
    %111 = vector.shape_cast %110 : vector<1x17x8xf32> to vector<17x8xf32>
    %112 = vector.extract_strided_slice %109 {offsets = [1, 0, 0], sizes = [1, 17, 8], strides = [1, 1, 1]} : vector<8x17x8xf32> to vector<1x17x8xf32>
    %113 = vector.shape_cast %112 : vector<1x17x8xf32> to vector<17x8xf32>
    %114 = vector.extract_strided_slice %109 {offsets = [2, 0, 0], sizes = [1, 17, 8], strides = [1, 1, 1]} : vector<8x17x8xf32> to vector<1x17x8xf32>
    %115 = vector.shape_cast %114 : vector<1x17x8xf32> to vector<17x8xf32>
    %116 = vector.extract_strided_slice %109 {offsets = [3, 0, 0], sizes = [1, 17, 8], strides = [1, 1, 1]} : vector<8x17x8xf32> to vector<1x17x8xf32>
    %117 = vector.shape_cast %116 : vector<1x17x8xf32> to vector<17x8xf32>
    %118 = tpu.concatenate %111, %113, %115, %117 in 1 : vector<17x8xf32>, vector<17x8xf32>, vector<17x8xf32>, vector<17x8xf32> -> vector<17x32xf32>
    %119 = vector.extract_strided_slice %109 {offsets = [4, 0, 0], sizes = [1, 17, 8], strides = [1, 1, 1]} : vector<8x17x8xf32> to vector<1x17x8xf32>
    %120 = vector.shape_cast %119 : vector<1x17x8xf32> to vector<17x8xf32>
    %121 = vector.extract_strided_slice %109 {offsets = [5, 0, 0], sizes = [1, 17, 8], strides = [1, 1, 1]} : vector<8x17x8xf32> to vector<1x17x8xf32>
    %122 = vector.shape_cast %121 : vector<1x17x8xf32> to vector<17x8xf32>
    %123 = vector.extract_strided_slice %109 {offsets = [6, 0, 0], sizes = [1, 17, 8], strides = [1, 1, 1]} : vector<8x17x8xf32> to vector<1x17x8xf32>
    %124 = vector.shape_cast %123 : vector<1x17x8xf32> to vector<17x8xf32>
    %125 = vector.extract_strided_slice %109 {offsets = [7, 0, 0], sizes = [1, 17, 8], strides = [1, 1, 1]} : vector<8x17x8xf32> to vector<1x17x8xf32>
    %126 = vector.shape_cast %125 : vector<1x17x8xf32> to vector<17x8xf32>
    %127 = tpu.concatenate %120, %122, %124, %126 in 1 : vector<17x8xf32>, vector<17x8xf32>, vector<17x8xf32>, vector<17x8xf32> -> vector<17x32xf32>
    %128 = tpu.concatenate %118, %127 in 0 : vector<17x32xf32>, vector<17x32xf32> -> vector<34x32xf32>
    %129 = arith.truncf %128 : vector<34x32xf32> to vector<34x32xbf16>
    %cst_28 = arith.constant dense<0.000000e+00> : vector<34x32xf32>
    %130 = tpu.matmul %129, %8, %cst_28 {dimension_numbers = #tpu.dot_dimension_numbers<[1], [0], [0], [1], [0, 0, 1, 1], [], []>} : vector<34x32xbf16>, vector<32x32xbf16>, vector<34x32xf32> -> vector<34x32xf32>
    %131 = vector.broadcast %14 : vector<1x32xf32> to vector<34x32xf32>
    %132 = arith.addf %130, %131 : vector<34x32xf32>
    %133 = arith.addf %6, %132 : vector<34x32xf32>
    %cst_29 = arith.constant dense<0.000000e+00> : vector<34xf32>
    %134 = vector.multi_reduction <add>, %133, %cst_29 [1] : vector<34x32xf32> to vector<34xf32>
    %135 = vector.shape_cast %134 : vector<34xf32> to vector<34x1xf32>
    %cst_30 = arith.constant 3.200000e+01 : f32
    %136 = vector.broadcast %cst_30 : f32 to vector<34x1xf32>
    %137 = arith.divf %135, %136 : vector<34x1xf32>
    %138 = vector.broadcast %137 : vector<34x1xf32> to vector<34x32xf32>
    %139 = arith.subf %133, %138 : vector<34x32xf32>
    %140 = arith.mulf %139, %139 : vector<34x32xf32>
    %cst_31 = arith.constant dense<0.000000e+00> : vector<34xf32>
    %141 = vector.multi_reduction <add>, %140, %cst_31 [1] : vector<34x32xf32> to vector<34xf32>
    %142 = vector.shape_cast %141 : vector<34xf32> to vector<34x1xf32>
    %cst_32 = arith.constant 3.200000e+01 : f32
    %143 = vector.broadcast %cst_32 : f32 to vector<34x1xf32>
    %144 = arith.divf %142, %143 : vector<34x1xf32>
    %145 = vector.broadcast %137 : vector<34x1xf32> to vector<34x32xf32>
    %146 = arith.subf %133, %145 : vector<34x32xf32>
    %cst_33 = arith.constant 9.99999997E-7 : f32
    %147 = vector.broadcast %cst_33 : f32 to vector<34x1xf32>
    %148 = arith.addf %144, %147 : vector<34x1xf32>
    %149 = math.rsqrt %148 : vector<34x1xf32>
    %150 = vector.broadcast %149 : vector<34x1xf32> to vector<34x32xf32>
    %151 = arith.mulf %146, %150 : vector<34x32xf32>
    %152 = vector.broadcast %15 : vector<1x32xf32> to vector<34x32xf32>
    %153 = arith.mulf %151, %152 : vector<34x32xf32>
    %154 = vector.broadcast %16 : vector<1x32xf32> to vector<34x32xf32>
    %155 = arith.addf %153, %154 : vector<34x32xf32>
    %156 = arith.truncf %155 : vector<34x32xf32> to vector<34x32xbf16>
    %cst_34 = arith.constant dense<0.000000e+00> : vector<34x128xf32>
    %157 = tpu.matmul %156, %9, %cst_34 {dimension_numbers = #tpu.dot_dimension_numbers<[1], [0], [0], [1], [0, 0, 1, 1], [], []>} : vector<34x32xbf16>, vector<32x128xbf16>, vector<34x128xf32> -> vector<34x128xf32>
    %158 = vector.broadcast %17 : vector<1x128xf32> to vector<34x128xf32>
    %159 = arith.addf %157, %158 : vector<34x128xf32>
    %cst_35 = arith.constant 5.000000e-01 : f32
    %160 = vector.broadcast %cst_35 : f32 to vector<34x128xf32>
    %161 = arith.mulf %160, %159 : vector<34x128xf32>
    %cst_36 = arith.constant 4.471500e-02 : f32
    %162 = vector.broadcast %cst_36 : f32 to vector<34x128xf32>
    %163 = arith.mulf %162, %159 : vector<34x128xf32>
    %164 = arith.mulf %163, %159 : vector<34x128xf32>
    %165 = arith.mulf %164, %159 : vector<34x128xf32>
    %166 = arith.addf %159, %165 : vector<34x128xf32>
    %cst_37 = arith.constant 0.797884583 : f32
    %167 = vector.broadcast %cst_37 : f32 to vector<34x128xf32>
    %168 = arith.mulf %167, %166 : vector<34x128xf32>
    %169 = math.tanh %168 : vector<34x128xf32>
    %cst_38 = arith.constant 1.000000e+00 : f32
    %170 = vector.broadcast %cst_38 : f32 to vector<34x128xf32>
    %171 = arith.addf %170, %169 : vector<34x128xf32>
    %172 = arith.mulf %161, %171 : vector<34x128xf32>
    %173 = arith.truncf %172 : vector<34x128xf32> to vector<34x128xbf16>
    %cst_39 = arith.constant dense<0.000000e+00> : vector<34x32xf32>
    %174 = tpu.matmul %173, %10, %cst_39 {dimension_numbers = #tpu.dot_dimension_numbers<[1], [0], [0], [1], [0, 0, 1, 1], [], []>} : vector<34x128xbf16>, vector<128x32xbf16>, vector<34x32xf32> -> vector<34x32xf32>
    %175 = vector.broadcast %18 : vector<1x32xf32> to vector<34x32xf32>
    %176 = arith.addf %174, %175 : vector<34x32xf32>
    %177 = arith.addf %133, %176 : vector<34x32xf32>
    %c272 = arith.constant 272 : index
    %c0_40 = arith.constant 0 : index
    %178 = vector.load %arg2[%c272, %c0_40] : memref<496x128xbf16, #tpu.memory_space<vmem>>, vector<32x96xbf16>
    %c304 = arith.constant 304 : index
    %c0_41 = arith.constant 0 : index
    %179 = vector.load %arg2[%c304, %c0_41] : memref<496x128xbf16, #tpu.memory_space<vmem>>, vector<32x32xbf16>
    %c336 = arith.constant 336 : index
    %c0_42 = arith.constant 0 : index
    %180 = vector.load %arg2[%c336, %c0_42] : memref<496x128xbf16, #tpu.memory_space<vmem>>, vector<32x128xbf16>
    %c368 = arith.constant 368 : index
    %c0_43 = arith.constant 0 : index
    %181 = vector.load %arg2[%c368, %c0_43] : memref<496x128xbf16, #tpu.memory_space<vmem>>, vector<128x32xbf16>
    %c64 = arith.constant 64 : index
    %c0_44 = arith.constant 0 : index
    %182 = vector.load %arg3[%c64, %c0_44] : memref<80x128xf32, #tpu.memory_space<vmem>>, vector<1x32xf32>
    %c65 = arith.constant 65 : index
    %c0_45 = arith.constant 0 : index
    %183 = vector.load %arg3[%c65, %c0_45] : memref<80x128xf32, #tpu.memory_space<vmem>>, vector<1x32xf32>
    %c66 = arith.constant 66 : index
    %c0_46 = arith.constant 0 : index
    %184 = vector.load %arg3[%c66, %c0_46] : memref<80x128xf32, #tpu.memory_space<vmem>>, vector<1x96xf32>
    %c67 = arith.constant 67 : index
    %c0_47 = arith.constant 0 : index
    %185 = vector.load %arg3[%c67, %c0_47] : memref<80x128xf32, #tpu.memory_space<vmem>>, vector<1x32xf32>
    %c68 = arith.constant 68 : index
    %c0_48 = arith.constant 0 : index
    %186 = vector.load %arg3[%c68, %c0_48] : memref<80x128xf32, #tpu.memory_space<vmem>>, vector<1x32xf32>
    %c69 = arith.constant 69 : index
    %c0_49 = arith.constant 0 : index
    %187 = vector.load %arg3[%c69, %c0_49] : memref<80x128xf32, #tpu.memory_space<vmem>>, vector<1x32xf32>
    %c70 = arith.constant 70 : index
    %c0_50 = arith.constant 0 : index
    %188 = vector.load %arg3[%c70, %c0_50] : memref<80x128xf32, #tpu.memory_space<vmem>>, vector<1x128xf32>
    %c71 = arith.constant 71 : index
    %c0_51 = arith.constant 0 : index
    %189 = vector.load %arg3[%c71, %c0_51] : memref<80x128xf32, #tpu.memory_space<vmem>>, vector<1x32xf32>
    %cst_52 = arith.constant dense<0.000000e+00> : vector<34xf32>
    %190 = vector.multi_reduction <add>, %177, %cst_52 [1] : vector<34x32xf32> to vector<34xf32>
    %191 = vector.shape_cast %190 : vector<34xf32> to vector<34x1xf32>
    %cst_53 = arith.constant 3.200000e+01 : f32
    %192 = vector.broadcast %cst_53 : f32 to vector<34x1xf32>
    %193 = arith.divf %191, %192 : vector<34x1xf32>
    %194 = vector.broadcast %193 : vector<34x1xf32> to vector<34x32xf32>
    %195 = arith.subf %177, %194 : vector<34x32xf32>
    %196 = arith.mulf %195, %195 : vector<34x32xf32>
    %cst_54 = arith.constant dense<0.000000e+00> : vector<34xf32>
    %197 = vector.multi_reduction <add>, %196, %cst_54 [1] : vector<34x32xf32> to vector<34xf32>
    %198 = vector.shape_cast %197 : vector<34xf32> to vector<34x1xf32>
    %cst_55 = arith.constant 3.200000e+01 : f32
    %199 = vector.broadcast %cst_55 : f32 to vector<34x1xf32>
    %200 = arith.divf %198, %199 : vector<34x1xf32>
    %201 = vector.broadcast %193 : vector<34x1xf32> to vector<34x32xf32>
    %202 = arith.subf %177, %201 : vector<34x32xf32>
    %cst_56 = arith.constant 9.99999997E-7 : f32
    %203 = vector.broadcast %cst_56 : f32 to vector<34x1xf32>
    %204 = arith.addf %200, %203 : vector<34x1xf32>
    %205 = math.rsqrt %204 : vector<34x1xf32>
    %206 = vector.broadcast %205 : vector<34x1xf32> to vector<34x32xf32>
    %207 = arith.mulf %202, %206 : vector<34x32xf32>
    %208 = vector.broadcast %182 : vector<1x32xf32> to vector<34x32xf32>
    %209 = arith.mulf %207, %208 : vector<34x32xf32>
    %210 = vector.broadcast %183 : vector<1x32xf32> to vector<34x32xf32>
    %211 = arith.addf %209, %210 : vector<34x32xf32>
    %212 = arith.truncf %211 : vector<34x32xf32> to vector<34x32xbf16>
    %cst_57 = arith.constant dense<0.000000e+00> : vector<34x96xf32>
    %213 = tpu.matmul %212, %178, %cst_57 {dimension_numbers = #tpu.dot_dimension_numbers<[1], [0], [0], [1], [0, 0, 1, 1], [], []>} : vector<34x32xbf16>, vector<32x96xbf16>, vector<34x96xf32> -> vector<34x96xf32>
    %214 = vector.broadcast %184 : vector<1x96xf32> to vector<34x96xf32>
    %215 = arith.addf %213, %214 : vector<34x96xf32>
    %216 = arith.truncf %215 : vector<34x96xf32> to vector<34x96xbf16>
    %217 = vector.extract_strided_slice %216 {offsets = [0, 0], sizes = [17, 8], strides = [1, 1]} : vector<34x96xbf16> to vector<17x8xbf16>
    %218 = vector.extract_strided_slice %216 {offsets = [0, 8], sizes = [17, 8], strides = [1, 1]} : vector<34x96xbf16> to vector<17x8xbf16>
    %219 = vector.extract_strided_slice %216 {offsets = [0, 16], sizes = [17, 8], strides = [1, 1]} : vector<34x96xbf16> to vector<17x8xbf16>
    %220 = vector.extract_strided_slice %216 {offsets = [0, 24], sizes = [17, 8], strides = [1, 1]} : vector<34x96xbf16> to vector<17x8xbf16>
    %221 = vector.extract_strided_slice %216 {offsets = [17, 0], sizes = [17, 8], strides = [1, 1]} : vector<34x96xbf16> to vector<17x8xbf16>
    %222 = vector.extract_strided_slice %216 {offsets = [17, 8], sizes = [17, 8], strides = [1, 1]} : vector<34x96xbf16> to vector<17x8xbf16>
    %223 = vector.extract_strided_slice %216 {offsets = [17, 16], sizes = [17, 8], strides = [1, 1]} : vector<34x96xbf16> to vector<17x8xbf16>
    %224 = vector.extract_strided_slice %216 {offsets = [17, 24], sizes = [17, 8], strides = [1, 1]} : vector<34x96xbf16> to vector<17x8xbf16>
    %225 = vector.shape_cast %217 : vector<17x8xbf16> to vector<1x17x8xbf16>
    %226 = vector.shape_cast %218 : vector<17x8xbf16> to vector<1x17x8xbf16>
    %227 = vector.shape_cast %219 : vector<17x8xbf16> to vector<1x17x8xbf16>
    %228 = vector.shape_cast %220 : vector<17x8xbf16> to vector<1x17x8xbf16>
    %229 = vector.shape_cast %221 : vector<17x8xbf16> to vector<1x17x8xbf16>
    %230 = vector.shape_cast %222 : vector<17x8xbf16> to vector<1x17x8xbf16>
    %231 = vector.shape_cast %223 : vector<17x8xbf16> to vector<1x17x8xbf16>
    %232 = vector.shape_cast %224 : vector<17x8xbf16> to vector<1x17x8xbf16>
    %233 = tpu.concatenate %225, %226, %227, %228, %229, %230, %231, %232 in 0 : vector<1x17x8xbf16>, vector<1x17x8xbf16>, vector<1x17x8xbf16>, vector<1x17x8xbf16>, vector<1x17x8xbf16>, vector<1x17x8xbf16>, vector<1x17x8xbf16>, vector<1x17x8xbf16> -> vector<8x17x8xbf16>
    %234 = vector.extract_strided_slice %216 {offsets = [0, 32], sizes = [17, 8], strides = [1, 1]} : vector<34x96xbf16> to vector<17x8xbf16>
    %235 = vector.extract_strided_slice %216 {offsets = [0, 40], sizes = [17, 8], strides = [1, 1]} : vector<34x96xbf16> to vector<17x8xbf16>
    %236 = vector.extract_strided_slice %216 {offsets = [0, 48], sizes = [17, 8], strides = [1, 1]} : vector<34x96xbf16> to vector<17x8xbf16>
    %237 = vector.extract_strided_slice %216 {offsets = [0, 56], sizes = [17, 8], strides = [1, 1]} : vector<34x96xbf16> to vector<17x8xbf16>
    %238 = vector.extract_strided_slice %216 {offsets = [17, 32], sizes = [17, 8], strides = [1, 1]} : vector<34x96xbf16> to vector<17x8xbf16>
    %239 = vector.extract_strided_slice %216 {offsets = [17, 40], sizes = [17, 8], strides = [1, 1]} : vector<34x96xbf16> to vector<17x8xbf16>
    %240 = vector.extract_strided_slice %216 {offsets = [17, 48], sizes = [17, 8], strides = [1, 1]} : vector<34x96xbf16> to vector<17x8xbf16>
    %241 = vector.extract_strided_slice %216 {offsets = [17, 56], sizes = [17, 8], strides = [1, 1]} : vector<34x96xbf16> to vector<17x8xbf16>
    %242 = vector.shape_cast %234 : vector<17x8xbf16> to vector<1x17x8xbf16>
    %243 = vector.shape_cast %235 : vector<17x8xbf16> to vector<1x17x8xbf16>
    %244 = vector.shape_cast %236 : vector<17x8xbf16> to vector<1x17x8xbf16>
    %245 = vector.shape_cast %237 : vector<17x8xbf16> to vector<1x17x8xbf16>
    %246 = vector.shape_cast %238 : vector<17x8xbf16> to vector<1x17x8xbf16>
    %247 = vector.shape_cast %239 : vector<17x8xbf16> to vector<1x17x8xbf16>
    %248 = vector.shape_cast %240 : vector<17x8xbf16> to vector<1x17x8xbf16>
    %249 = vector.shape_cast %241 : vector<17x8xbf16> to vector<1x17x8xbf16>
    %250 = tpu.concatenate %242, %243, %244, %245, %246, %247, %248, %249 in 0 : vector<1x17x8xbf16>, vector<1x17x8xbf16>, vector<1x17x8xbf16>, vector<1x17x8xbf16>, vector<1x17x8xbf16>, vector<1x17x8xbf16>, vector<1x17x8xbf16>, vector<1x17x8xbf16> -> vector<8x17x8xbf16>
    %251 = vector.extract_strided_slice %216 {offsets = [0, 64], sizes = [17, 8], strides = [1, 1]} : vector<34x96xbf16> to vector<17x8xbf16>
    %252 = vector.extract_strided_slice %216 {offsets = [0, 72], sizes = [17, 8], strides = [1, 1]} : vector<34x96xbf16> to vector<17x8xbf16>
    %253 = vector.extract_strided_slice %216 {offsets = [0, 80], sizes = [17, 8], strides = [1, 1]} : vector<34x96xbf16> to vector<17x8xbf16>
    %254 = vector.extract_strided_slice %216 {offsets = [0, 88], sizes = [17, 8], strides = [1, 1]} : vector<34x96xbf16> to vector<17x8xbf16>
    %255 = vector.extract_strided_slice %216 {offsets = [17, 64], sizes = [17, 8], strides = [1, 1]} : vector<34x96xbf16> to vector<17x8xbf16>
    %256 = vector.extract_strided_slice %216 {offsets = [17, 72], sizes = [17, 8], strides = [1, 1]} : vector<34x96xbf16> to vector<17x8xbf16>
    %257 = vector.extract_strided_slice %216 {offsets = [17, 80], sizes = [17, 8], strides = [1, 1]} : vector<34x96xbf16> to vector<17x8xbf16>
    %258 = vector.extract_strided_slice %216 {offsets = [17, 88], sizes = [17, 8], strides = [1, 1]} : vector<34x96xbf16> to vector<17x8xbf16>
    %259 = vector.shape_cast %251 : vector<17x8xbf16> to vector<1x17x8xbf16>
    %260 = vector.shape_cast %252 : vector<17x8xbf16> to vector<1x17x8xbf16>
    %261 = vector.shape_cast %253 : vector<17x8xbf16> to vector<1x17x8xbf16>
    %262 = vector.shape_cast %254 : vector<17x8xbf16> to vector<1x17x8xbf16>
    %263 = vector.shape_cast %255 : vector<17x8xbf16> to vector<1x17x8xbf16>
    %264 = vector.shape_cast %256 : vector<17x8xbf16> to vector<1x17x8xbf16>
    %265 = vector.shape_cast %257 : vector<17x8xbf16> to vector<1x17x8xbf16>
    %266 = vector.shape_cast %258 : vector<17x8xbf16> to vector<1x17x8xbf16>
    %267 = tpu.concatenate %259, %260, %261, %262, %263, %264, %265, %266 in 0 : vector<1x17x8xbf16>, vector<1x17x8xbf16>, vector<1x17x8xbf16>, vector<1x17x8xbf16>, vector<1x17x8xbf16>, vector<1x17x8xbf16>, vector<1x17x8xbf16>, vector<1x17x8xbf16> -> vector<8x17x8xbf16>
    "tpu.trace_start"() <{level = 10 : i32, message = "nqd,nkd->nqk"}> : () -> ()
    %cst_58 = arith.constant dense<0.000000e+00> : vector<8x17x17xf32>
    %268 = tpu.matmul %233, %250, %cst_58 {dimension_numbers = #tpu.dot_dimension_numbers<[2], [2], [1], [1], [0, 0, 0, 1, 1, 1], [0], [0]>} : vector<8x17x8xbf16>, vector<8x17x8xbf16>, vector<8x17x17xf32> -> vector<8x17x17xf32>
    "tpu.trace_stop"() : () -> ()
    %cst_59 = arith.constant dense<0xFF800000> : vector<8x17xf32>
    %269 = vector.multi_reduction <maximumf>, %268, %cst_59 [2] : vector<8x17x17xf32> to vector<8x17xf32>
    %270 = vector.shape_cast %269 : vector<8x17xf32> to vector<8x17x1xf32>
    %271 = vector.broadcast %270 : vector<8x17x1xf32> to vector<8x17x17xf32>
    %272 = arith.subf %268, %271 : vector<8x17x17xf32>
    %273 = math.exp %272 : vector<8x17x17xf32>
    %cst_60 = arith.constant dense<0.000000e+00> : vector<8x17xf32>
    %274 = vector.multi_reduction <add>, %273, %cst_60 [2] : vector<8x17x17xf32> to vector<8x17xf32>
    %275 = vector.shape_cast %274 : vector<8x17xf32> to vector<8x17x1xf32>
    %276 = tpu.reciprocal %275 {approx = true} : vector<8x17x1xf32> -> vector<8x17x1xf32>
    %277 = vector.broadcast %276 : vector<8x17x1xf32> to vector<8x17x17xf32>
    %278 = arith.mulf %273, %277 : vector<8x17x17xf32>
    %279 = arith.truncf %278 : vector<8x17x17xf32> to vector<8x17x17xbf16>
    "tpu.trace_start"() <{level = 10 : i32, message = "nqk,nkd->nqd"}> : () -> ()
    %cst_61 = arith.constant dense<0.000000e+00> : vector<8x17x8xf32>
    %280 = tpu.matmul %279, %267, %cst_61 {dimension_numbers = #tpu.dot_dimension_numbers<[2], [1], [1], [2], [0, 0, 0, 1, 1, 2], [0], [0]>} : vector<8x17x17xbf16>, vector<8x17x8xbf16>, vector<8x17x8xf32> -> vector<8x17x8xf32>
    "tpu.trace_stop"() : () -> ()
    %281 = vector.extract_strided_slice %280 {offsets = [0, 0, 0], sizes = [1, 17, 8], strides = [1, 1, 1]} : vector<8x17x8xf32> to vector<1x17x8xf32>
    %282 = vector.shape_cast %281 : vector<1x17x8xf32> to vector<17x8xf32>
    %283 = vector.extract_strided_slice %280 {offsets = [1, 0, 0], sizes = [1, 17, 8], strides = [1, 1, 1]} : vector<8x17x8xf32> to vector<1x17x8xf32>
    %284 = vector.shape_cast %283 : vector<1x17x8xf32> to vector<17x8xf32>
    %285 = vector.extract_strided_slice %280 {offsets = [2, 0, 0], sizes = [1, 17, 8], strides = [1, 1, 1]} : vector<8x17x8xf32> to vector<1x17x8xf32>
    %286 = vector.shape_cast %285 : vector<1x17x8xf32> to vector<17x8xf32>
    %287 = vector.extract_strided_slice %280 {offsets = [3, 0, 0], sizes = [1, 17, 8], strides = [1, 1, 1]} : vector<8x17x8xf32> to vector<1x17x8xf32>
    %288 = vector.shape_cast %287 : vector<1x17x8xf32> to vector<17x8xf32>
    %289 = tpu.concatenate %282, %284, %286, %288 in 1 : vector<17x8xf32>, vector<17x8xf32>, vector<17x8xf32>, vector<17x8xf32> -> vector<17x32xf32>
    %290 = vector.extract_strided_slice %280 {offsets = [4, 0, 0], sizes = [1, 17, 8], strides = [1, 1, 1]} : vector<8x17x8xf32> to vector<1x17x8xf32>
    %291 = vector.shape_cast %290 : vector<1x17x8xf32> to vector<17x8xf32>
    %292 = vector.extract_strided_slice %280 {offsets = [5, 0, 0], sizes = [1, 17, 8], strides = [1, 1, 1]} : vector<8x17x8xf32> to vector<1x17x8xf32>
    %293 = vector.shape_cast %292 : vector<1x17x8xf32> to vector<17x8xf32>
    %294 = vector.extract_strided_slice %280 {offsets = [6, 0, 0], sizes = [1, 17, 8], strides = [1, 1, 1]} : vector<8x17x8xf32> to vector<1x17x8xf32>
    %295 = vector.shape_cast %294 : vector<1x17x8xf32> to vector<17x8xf32>
    %296 = vector.extract_strided_slice %280 {offsets = [7, 0, 0], sizes = [1, 17, 8], strides = [1, 1, 1]} : vector<8x17x8xf32> to vector<1x17x8xf32>
    %297 = vector.shape_cast %296 : vector<1x17x8xf32> to vector<17x8xf32>
    %298 = tpu.concatenate %291, %293, %295, %297 in 1 : vector<17x8xf32>, vector<17x8xf32>, vector<17x8xf32>, vector<17x8xf32> -> vector<17x32xf32>
    %299 = tpu.concatenate %289, %298 in 0 : vector<17x32xf32>, vector<17x32xf32> -> vector<34x32xf32>
    %300 = arith.truncf %299 : vector<34x32xf32> to vector<34x32xbf16>
    %cst_62 = arith.constant dense<0.000000e+00> : vector<34x32xf32>
    %301 = tpu.matmul %300, %179, %cst_62 {dimension_numbers = #tpu.dot_dimension_numbers<[1], [0], [0], [1], [0, 0, 1, 1], [], []>} : vector<34x32xbf16>, vector<32x32xbf16>, vector<34x32xf32> -> vector<34x32xf32>
    %302 = vector.broadcast %185 : vector<1x32xf32> to vector<34x32xf32>
    %303 = arith.addf %301, %302 : vector<34x32xf32>
    %304 = arith.addf %177, %303 : vector<34x32xf32>
    %cst_63 = arith.constant dense<0.000000e+00> : vector<34xf32>
    %305 = vector.multi_reduction <add>, %304, %cst_63 [1] : vector<34x32xf32> to vector<34xf32>
    %306 = vector.shape_cast %305 : vector<34xf32> to vector<34x1xf32>
    %cst_64 = arith.constant 3.200000e+01 : f32
    %307 = vector.broadcast %cst_64 : f32 to vector<34x1xf32>
    %308 = arith.divf %306, %307 : vector<34x1xf32>
    %309 = vector.broadcast %308 : vector<34x1xf32> to vector<34x32xf32>
    %310 = arith.subf %304, %309 : vector<34x32xf32>
    %311 = arith.mulf %310, %310 : vector<34x32xf32>
    %cst_65 = arith.constant dense<0.000000e+00> : vector<34xf32>
    %312 = vector.multi_reduction <add>, %311, %cst_65 [1] : vector<34x32xf32> to vector<34xf32>
    %313 = vector.shape_cast %312 : vector<34xf32> to vector<34x1xf32>
    %cst_66 = arith.constant 3.200000e+01 : f32
    %314 = vector.broadcast %cst_66 : f32 to vector<34x1xf32>
    %315 = arith.divf %313, %314 : vector<34x1xf32>
    %316 = vector.broadcast %308 : vector<34x1xf32> to vector<34x32xf32>
    %317 = arith.subf %304, %316 : vector<34x32xf32>
    %cst_67 = arith.constant 9.99999997E-7 : f32
    %318 = vector.broadcast %cst_67 : f32 to vector<34x1xf32>
    %319 = arith.addf %315, %318 : vector<34x1xf32>
    %320 = math.rsqrt %319 : vector<34x1xf32>
    %321 = vector.broadcast %320 : vector<34x1xf32> to vector<34x32xf32>
    %322 = arith.mulf %317, %321 : vector<34x32xf32>
    %323 = vector.broadcast %186 : vector<1x32xf32> to vector<34x32xf32>
    %324 = arith.mulf %322, %323 : vector<34x32xf32>
    %325 = vector.broadcast %187 : vector<1x32xf32> to vector<34x32xf32>
    %326 = arith.addf %324, %325 : vector<34x32xf32>
    %327 = arith.truncf %326 : vector<34x32xf32> to vector<34x32xbf16>
    %cst_68 = arith.constant dense<0.000000e+00> : vector<34x128xf32>
    %328 = tpu.matmul %327, %180, %cst_68 {dimension_numbers = #tpu.dot_dimension_numbers<[1], [0], [0], [1], [0, 0, 1, 1], [], []>} : vector<34x32xbf16>, vector<32x128xbf16>, vector<34x128xf32> -> vector<34x128xf32>
    %329 = vector.broadcast %188 : vector<1x128xf32> to vector<34x128xf32>
    %330 = arith.addf %328, %329 : vector<34x128xf32>
    %cst_69 = arith.constant 5.000000e-01 : f32
    %331 = vector.broadcast %cst_69 : f32 to vector<34x128xf32>
    %332 = arith.mulf %331, %330 : vector<34x128xf32>
    %cst_70 = arith.constant 4.471500e-02 : f32
    %333 = vector.broadcast %cst_70 : f32 to vector<34x128xf32>
    %334 = arith.mulf %333, %330 : vector<34x128xf32>
    %335 = arith.mulf %334, %330 : vector<34x128xf32>
    %336 = arith.mulf %335, %330 : vector<34x128xf32>
    %337 = arith.addf %330, %336 : vector<34x128xf32>
    %cst_71 = arith.constant 0.797884583 : f32
    %338 = vector.broadcast %cst_71 : f32 to vector<34x128xf32>
    %339 = arith.mulf %338, %337 : vector<34x128xf32>
    %340 = math.tanh %339 : vector<34x128xf32>
    %cst_72 = arith.constant 1.000000e+00 : f32
    %341 = vector.broadcast %cst_72 : f32 to vector<34x128xf32>
    %342 = arith.addf %341, %340 : vector<34x128xf32>
    %343 = arith.mulf %332, %342 : vector<34x128xf32>
    %344 = arith.truncf %343 : vector<34x128xf32> to vector<34x128xbf16>
    %cst_73 = arith.constant dense<0.000000e+00> : vector<34x32xf32>
    %345 = tpu.matmul %344, %181, %cst_73 {dimension_numbers = #tpu.dot_dimension_numbers<[1], [0], [0], [1], [0, 0, 1, 1], [], []>} : vector<34x128xbf16>, vector<128x32xbf16>, vector<34x32xf32> -> vector<34x32xf32>
    %346 = vector.broadcast %189 : vector<1x32xf32> to vector<34x32xf32>
    %347 = arith.addf %345, %346 : vector<34x32xf32>
    %348 = arith.addf %304, %347 : vector<34x32xf32>
    %c72 = arith.constant 72 : index
    %c0_74 = arith.constant 0 : index
    %349 = vector.load %arg3[%c72, %c0_74] : memref<80x128xf32, #tpu.memory_space<vmem>>, vector<1x32xf32>
    %c73 = arith.constant 73 : index
    %c0_75 = arith.constant 0 : index
    %350 = vector.load %arg3[%c73, %c0_75] : memref<80x128xf32, #tpu.memory_space<vmem>>, vector<1x32xf32>
    %c74 = arith.constant 74 : index
    %c0_76 = arith.constant 0 : index
    %351 = vector.load %arg3[%c74, %c0_76] : memref<80x128xf32, #tpu.memory_space<vmem>>, vector<1x16xf32>
    %c24 = arith.constant 24 : index
    %c0_77 = arith.constant 0 : index
    %352 = vector.load %arg3[%c24, %c0_77] : memref<80x128xf32, #tpu.memory_space<vmem>>, vector<32x16xf32>
    %353 = vector.extract_strided_slice %348 {offsets = [0, 0], sizes = [1, 32], strides = [1, 1]} : vector<34x32xf32> to vector<1x32xf32>
    %354 = vector.extract_strided_slice %348 {offsets = [17, 0], sizes = [1, 32], strides = [1, 1]} : vector<34x32xf32> to vector<1x32xf32>
    %355 = tpu.concatenate %353, %354 in 0 : vector<1x32xf32>, vector<1x32xf32> -> vector<2x32xf32>
    %cst_78 = arith.constant dense<0.000000e+00> : vector<2xf32>
    %356 = vector.multi_reduction <add>, %355, %cst_78 [1] : vector<2x32xf32> to vector<2xf32>
    %357 = vector.shape_cast %356 : vector<2xf32> to vector<2x1xf32>
    %cst_79 = arith.constant 3.200000e+01 : f32
    %358 = vector.broadcast %cst_79 : f32 to vector<2x1xf32>
    %359 = arith.divf %357, %358 : vector<2x1xf32>
    %360 = vector.broadcast %359 : vector<2x1xf32> to vector<2x32xf32>
    %361 = arith.subf %355, %360 : vector<2x32xf32>
    %362 = arith.mulf %361, %361 : vector<2x32xf32>
    %cst_80 = arith.constant dense<0.000000e+00> : vector<2xf32>
    %363 = vector.multi_reduction <add>, %362, %cst_80 [1] : vector<2x32xf32> to vector<2xf32>
    %364 = vector.shape_cast %363 : vector<2xf32> to vector<2x1xf32>
    %cst_81 = arith.constant 3.200000e+01 : f32
    %365 = vector.broadcast %cst_81 : f32 to vector<2x1xf32>
    %366 = arith.divf %364, %365 : vector<2x1xf32>
    %367 = vector.broadcast %359 : vector<2x1xf32> to vector<2x32xf32>
    %368 = arith.subf %355, %367 : vector<2x32xf32>
    %cst_82 = arith.constant 9.99999997E-7 : f32
    %369 = vector.broadcast %cst_82 : f32 to vector<2x1xf32>
    %370 = arith.addf %366, %369 : vector<2x1xf32>
    %371 = math.rsqrt %370 : vector<2x1xf32>
    %372 = vector.broadcast %371 : vector<2x1xf32> to vector<2x32xf32>
    %373 = arith.mulf %368, %372 : vector<2x32xf32>
    %374 = vector.broadcast %349 : vector<1x32xf32> to vector<2x32xf32>
    %375 = arith.mulf %373, %374 : vector<2x32xf32>
    %376 = vector.broadcast %350 : vector<1x32xf32> to vector<2x32xf32>
    %377 = arith.addf %375, %376 : vector<2x32xf32>
    %cst_83 = arith.constant dense<0.000000e+00> : vector<2x16xf32>
    %378 = tpu.matmul %377, %352, %cst_83 {dimension_numbers = #tpu.dot_dimension_numbers<[1], [0], [0], [1], [0, 0, 1, 1], [], []>} : vector<2x32xf32>, vector<32x16xf32>, vector<2x16xf32> -> vector<2x16xf32>
    %379 = vector.broadcast %351 : vector<1x16xf32> to vector<2x16xf32>
    %380 = arith.addf %378, %379 : vector<2x16xf32>
    %381 = arith.mulf %380, %380 : vector<2x16xf32>
    %cst_84 = arith.constant dense<0.000000e+00> : vector<2xf32>
    %382 = vector.multi_reduction <add>, %381, %cst_84 [1] : vector<2x16xf32> to vector<2xf32>
    %383 = vector.shape_cast %382 : vector<2xf32> to vector<2x1xf32>
    %384 = math.sqrt %383 : vector<2x1xf32>
    %cst_85 = arith.constant 9.99999974E-6 : f32
    %385 = vector.broadcast %cst_85 : f32 to vector<2x1xf32>
    %386 = arith.addf %384, %385 : vector<2x1xf32>
    %cst_86 = arith.constant 1.000000e+00 : f32
    %387 = vector.broadcast %cst_86 : f32 to vector<2x1xf32>
    %cst_87 = arith.constant 2.000000e+00 : f32
    %388 = vector.broadcast %cst_87 : f32 to vector<2x1xf32>
    %389 = arith.divf %388, %386 : vector<2x1xf32>
    %390 = arith.minimumf %387, %389 : vector<2x1xf32>
    %391 = vector.broadcast %390 : vector<2x1xf32> to vector<2x16xf32>
    %392 = arith.mulf %380, %391 : vector<2x16xf32>
    %393 = arith.mulf %392, %392 : vector<2x16xf32>
    %cst_88 = arith.constant dense<0.000000e+00> : vector<2xf32>
    %394 = vector.multi_reduction <add>, %393, %cst_88 [1] : vector<2x16xf32> to vector<2xf32>
    %395 = vector.shape_cast %394 : vector<2xf32> to vector<2x1xf32>
    %396 = math.sqrt %395 : vector<2x1xf32>
    %cst_89 = arith.constant 1.000000e-15 : f32
    %397 = vector.broadcast %cst_89 : f32 to vector<2x1xf32>
    %398 = arith.maximumf %396, %397 : vector<2x1xf32>
    %cst_90 = arith.constant 1.000000e+00 : f32
    %399 = vector.broadcast %cst_90 : f32 to vector<2x1xf32>
    %400 = arith.mulf %399, %398 : vector<2x1xf32>
    %401 = math.tanh %400 : vector<2x1xf32>
    %402 = vector.broadcast %401 : vector<2x1xf32> to vector<2x16xf32>
    %403 = arith.mulf %402, %392 : vector<2x16xf32>
    %cst_91 = arith.constant 1.000000e+00 : f32
    %404 = vector.broadcast %cst_91 : f32 to vector<2x1xf32>
    %405 = arith.mulf %404, %398 : vector<2x1xf32>
    %406 = vector.broadcast %405 : vector<2x1xf32> to vector<2x16xf32>
    %407 = arith.divf %403, %406 : vector<2x16xf32>
    %c0_92 = arith.constant 0 : index
    %c0_93 = arith.constant 0 : index
    %c0_94 = arith.constant 0 : index
    %408 = vector.load %arg4[%c0_92, %c0_93, %c0_94] : memref<1x2x16xf32, #tpu.memory_space<vmem>>, vector<1x2x16xf32>
    %409 = vector.shape_cast %408 : vector<1x2x16xf32> to vector<2x16xf32>
    %410 = vector.shape_cast %407 : vector<2x16xf32> to vector<1x2x16xf32>
    tpu.vector_store %arg4[%c0_92, %c0_93, %c0_94], %410 {strides = array<i32>} : memref<1x2x16xf32, #tpu.memory_space<vmem>>, vector<1x2x16xf32>,
    return
  }
  func.func @transform_0(%arg0: i32) -> (i32, i32, i32) {
    %c0_i32 = arith.constant 0 : i32
    %c0_i32_0 = arith.constant 0 : i32
    %c0_i32_1 = arith.constant 0 : i32
    return %arg0, %c0_i32, %c0_i32_0 : i32, i32, i32
  }
  func.func @transform_1(%arg0: i32) -> (i32, i32) {
    %c0_i32 = arith.constant 0 : i32
    %c0_i32_0 = arith.constant 0 : i32
    %c0_i32_1 = arith.constant 0 : i32
    return %c0_i32, %c0_i32_0 : i32, i32
  }
  func.func @transform_2(%arg0: i32) -> (i32, i32) {
    %c0_i32 = arith.constant 0 : i32
    %c0_i32_0 = arith.constant 0 : i32
    %c0_i32_1 = arith.constant 0 : i32
    return %c0_i32, %c0_i32_0 : i32, i32
  }
  func.func @transform_3(%arg0: i32) -> (i32, i32, i32) {
    %c0_i32 = arith.constant 0 : i32
    %c0_i32_0 = arith.constant 0 : i32
    %c0_i32_1 = arith.constant 0 : i32
    return %arg0, %c0_i32, %c0_i32_0 : i32, i32, i32
  }
}

</mosaic_0001>

<llo_original>
// kernel: hyperbolic_vit_forward.1
$region0: #{hyperbolic_vit_forward.1}
  #allocation0 [shape = 'u32[]', space=smem, size = 0x4, offset = 0x4, fixed_abs, tag = 'smem constant byte address 0x4 - core index']
  #allocation1 [shape = 'u32[144,128]{1,0:T(1,128)}', space=vmem, size = 0x12000, scoped, tag = 'internal scratch']
  %s0 = inlined_call_operand.vmem [shape: bf16[1,34,48], index: 0, kind: input, shape index: {}]
  %s1 = inlined_call_operand.vmem [shape: bf16[496,128], index: 1, kind: input, shape index: {}]
  %s2 = inlined_call_operand.vmem [shape: f32[80,128], index: 2, kind: input, shape index: {}]
  %s3 = inlined_call_operand.hbm [shape: f32[1,2,16], index: 3, kind: output, shape index: {}]
  %s4 = sld [smem:[#allocation0]]
  $region22: #{hyperbolic_vit_forward.1} parent=0
    _
  %s6 = ssub.s32 1, %s4
  %s7 = scalar_select 0, %s6, %s4
  $region1: #{hyperbolic_vit_forward.1} parent=0
    #allocation2 [shape = 'u8[1024]{0}', space=vmem, size = 0x400, scoped, tag = 'output window, operand 0, single buffered']
    #allocation3 [shape = 's32[1]{0}', space=sflag, size = 0x4, scoped, tag = 'scoped memory for hyperbolic_vit_forward.1']
    %8 = vsyncpa [#allocation3], 0
    // Predicated region
    $region2: #{hyperbolic_vit_forward.1} parent=1 // pred_check
      _
    $region3: #{hyperbolic_vit_forward.1} parent=1 // pred_check_branch
      %10 = sbr.rel (0) target = $region5
    $region4: #{hyperbolic_vit_forward.1} parent=1 // pred_region
      _
    $region5: #{hyperbolic_vit_forward.1} parent=1 // pred_fallthru
      _
    // Predicated region
    $region6: #{hyperbolic_vit_forward.1} parent=1 // pred_check
      _
    $region7: #{hyperbolic_vit_forward.1} parent=1 // pred_check_branch
      %12 = sbr.rel (0) target = $region9
    $region8: #{hyperbolic_vit_forward.1} parent=1 // pred_region
      _
    $region9: #{hyperbolic_vit_forward.1} parent=1 // pred_fallthru
      _
    // Predicated region
    $region10: #{hyperbolic_vit_forward.1} parent=1 // pred_check
      _
    $region11: #{hyperbolic_vit_forward.1} parent=1 // pred_check_branch
      %14 = sbr.rel (0) target = $region13
    $region12: #{hyperbolic_vit_forward.1} parent=1 // pred_region
      _
    $region13: #{hyperbolic_vit_forward.1} parent=1 // pred_fallthru
      _
    %v16 = vld [vmem:[%s1] sm:$0xf]
    %v17 = vld [vmem:[%s1 + $0x4] sm:$0xf]
    %v18 = vld [vmem:[%s1 + $0x8] sm:$0xf]
    %v19 = vld [vmem:[%s1 + $0xc] sm:$0xf]
    %v20 = vld [vmem:[%s1 + $0x10] sm:$0xf]
    %v21 = vld [vmem:[%s1 + $0x14] sm:$0xf]
    %v22 = vld [vmem:[%s2] sm:$0xff]
    %v23 = vld [vmem:[%s2 + $0x8] sm:$0xff]
    %v24 = vld [vmem:[%s2 + $0x10] sm:$0x1]
    %vm28 = vcmask 1040384
    %v29 = vrot.slane %v22, 7
    %v30 = vrot.slane %v23, 7
    %v31 = vsel %vm28, %v29, %v30
    %v32 = vrot.slane %v24, 7
    %v33 = vsel %vm28, %v30, %v32
    %v37 = vsel %vm28, %v24, %v29
    %v38 = vld [vmem:[%s0] sm:$0xf]
    %v39 = vld [vmem:[%s0 + $0x4] sm:$0xf]
    %v40 = vld [vmem:[%s0 + $0x8] sm:$0xf]
    %v41 = vld [vmem:[%s0 + $0xc] sm:$0xf]
    %v42 = vld [vmem:[%s0 + $0x10] sm:$0x1]
    %v48 = vunpack.c.l.b16 %v38
    %v49 = vunpack.c.l.b16 %v39
    %v50 = vunpack.c.l.b16 %v40
    %v51 = vunpack.c.l.b16 %v41
    %v52 = vunpack.c.l.b16 %v42
    %v53 = vpack.c.b16 %v49, %v48
    %v54 = vpack.c.b16 %v51, %v50
    %v55 = vpack.c.b16 %v52, %v52
    %v62 = vunpack.c.l.b16 %v16
    %v63 = vunpack.c.l.b16 %v17
    %v64 = vunpack.c.l.b16 %v18
    %v65 = vunpack.c.l.b16 %v19
    %v66 = vunpack.c.l.b16 %v20
    %v67 = vunpack.c.l.b16 %v21
    %v68 = vpack.c.b16 %v63, %v62
    %v69 = vpack.c.b16 %v65, %v64
    %v70 = vpack.c.b16 %v67, %v66
    %vm74 = vcmask 392192
    %v76 = vsel %vm74, %v53, 0
    %v79 = vsel %vm74, %v54, 0
    %v82 = vsel %vm74, %v55, 0
    %84 = vmatprep.subr.bf16.mxu0 0
    %85 = vmatpush1.bf16.msra.mxu0 %v68
    %86 = vmatprep.subr.bf16.mxu0 0
    %87 = vmatpush1.bf16.msra.mxu0 %v69
    %88 = vmatprep.subr.bf16.mxu0 0
    %89 = vmatpush1.bf16.msra.mxu0 %v70
    %90 = vmatprep.subr.bf16.mxu0 0
    %91 = vmatpush1.bf16.msra.mxu0 0
    %92 = vmatprep.subr.bf16.mxu0 0
    %93 = vmatpush1.bf16.msra.mxu0 0
    %94 = vmatprep.subr.bf16.mxu0 0
    %95 = vmatpush1.bf16.msra.mxu0 0
    %96 = vmatprep.subr.bf16.mxu0 0
    %97 = vmatpush1.bf16.msra.mxu0 0
    %98 = vmatprep.subr.bf16.mxu0 0
    %99 = vmatpush1.bf16.msra.mxu0 0
    %100 = vmatprep.subr.bf16.mxu0 0
    %101 = vmatpush1.bf16.msra.mxu0 0
    %102 = vmatprep.subr.bf16.mxu0 0
    %103 = vmatpush1.bf16.msra.mxu0 0
    %104 = vmatprep.subr.bf16.mxu0 0
    %105 = vmatpush1.bf16.msra.mxu0 0
    %106 = vmatprep.subr.bf16.mxu0 0
    %107 = vmatpush1.bf16.msra.mxu0 0
    %108 = vmatprep.subr.bf16.mxu0 0
    %109 = vmatpush1.bf16.msra.mxu0 0
    %110 = vmatprep.subr.bf16.mxu0 0
    %111 = vmatpush1.bf16.msra.mxu0 0
    %112 = vmatprep.subr.bf16.mxu0 0
    %113 = vmatpush1.bf16.msra.mxu0 0
    %114 = vmatprep.subr.bf16.mxu0 0
    %115 = vmatpush1.bf16.msra.mxu0 0
    %116 = vmatprep.mubr.bf16.mxu0 0
    %117 = vmatmul.mubr.bf16.gmra.mrb[0].mxu0 %v76
    %v118 = vpop.f32.mrb[0].mxu0
    %v119 = vadd.f32 %v22, %v118
    %v120 = vpop.f32.mrb[0].mxu0
    %v121 = vpop.f32.mrb[0].mxu0
    %v122 = vadd.f32 %v23, %v121
    %v123 = vpop.f32.mrb[0].mxu0
    %124 = vmatprep.mubr.bf16.mxu0 0
    %125 = vmatmul.mubr.bf16.gmra.mrb[0].mxu0 %v79
    %v126 = vpop.f32.mrb[0].mxu0
    %v127 = vadd.f32 %v37, %v126
    %v128 = vpop.f32.mrb[0].mxu0
    %v129 = vpop.f32.mrb[0].mxu0
    %v130 = vadd.f32 %v31, %v129
    %v131 = vpop.f32.mrb[0].mxu0
    %132 = vmatprep.mubr.bf16.mxu0 0
    %133 = vmatmul.mubr.bf16.gmra.mrb[0].mxu0 %v82
    %v134 = vpop.f32.mrb[0].mxu0
    %v135 = vadd.f32 %v33, %v134
    %v136 = vpop.f32.mrb[0].mxu0
    %v137 = vpop.f32.mrb[0].mxu0
    %v138 = vpop.f32.mrb[0].mxu0
    %139 = vdwg.mxu0
    %v140 = vld [vmem:[%s1 + $0x18] sm:$0xf]
    %v141 = vld [vmem:[%s1 + $0x1c] sm:$0xf]
    %v142 = vld [vmem:[%s1 + $0x20] sm:$0xf]
    %v143 = vld [vmem:[%s1 + $0x24] sm:$0xf]
    %v144 = vld [vmem:[%s1 + $0x28] sm:$0xf]
    %v145 = vld [vmem:[%s1 + $0x2c] sm:$0xf]
    %v146 = vld [vmem:[%s1 + $0x30] sm:$0xf]
    %v147 = vld [vmem:[%s1 + $0x34] sm:$0xf]
    %v148 = vld [vmem:[%s1 + $0x38] sm:$0xf]
    %v149 = vld [vmem:[%s1 + $0x3c] sm:$0xf]
    %v150 = vld [vmem:[%s1 + $0x40] sm:$0xf]
    %v151 = vld [vmem:[%s1 + $0x44] sm:$0xf]
    %v152 = vld [vmem:[%s1 + $0x48] sm:$0xf]
    %v153 = vld [vmem:[%s1 + $0x4c] sm:$0xf]
    %v154 = vld [vmem:[%s1 + $0x50] sm:$0xf]
    %v155 = vld [vmem:[%s1 + $0x54] sm:$0xf]
    %v156 = vld [vmem:[%s1 + $0x58] sm:$0xf]
    %v157 = vld [vmem:[%s1 + $0x5c] sm:$0xf]
    %v158 = vld [vmem:[%s1 + $0x60] sm:$0xf]
    %v159 = vld [vmem:[%s1 + $0x64] sm:$0xf]
    %v160 = vld [vmem:[%s1 + $0x68] sm:$0xf]
    %v161 = vld [vmem:[%s1 + $0x6c] sm:$0xf]
    %v162 = vld [vmem:[%s1 + $0x70] sm:$0xf]
    %v163 = vld [vmem:[%s1 + $0x74] sm:$0xf]
    %v164 = vld [vmem:[%s1 + $0x78] sm:$0xf]
    %v165 = vld [vmem:[%s1 + $0x7c] sm:$0xf]
    %v166 = vld [vmem:[%s1 + $0x80] sm:$0xf]
    %v167 = vld [vmem:[%s1 + $0x84] sm:$0xf]
    %v168 = vld [vmem:[%s2 + $0x38] sm:$0x1]
    %v169 = vld [vmem:[%s2 + $0x39] sm:$0x1]
    %v170 = vld [vmem:[%s2 + $0x3a] sm:$0x1]
    %v171 = vld [vmem:[%s2 + $0x3b] sm:$0x1]
    %v172 = vld [vmem:[%s2 + $0x3c] sm:$0x1]
    %v173 = vld [vmem:[%s2 + $0x3d] sm:$0x1]
    %v174 = vld [vmem:[%s2 + $0x3e] sm:$0x1]
    %v175 = vld [vmem:[%s2 + $0x3f] sm:$0x1]
    %vm176 = vcmask 261120
    %v177 = vsel %vm176, %v119, 0.0
    %178 = vadd.xlane.f32.xlu0 %v177
    %v179 = vpop.xlane.xlu0 %178
    %v180 = vsel %vm176, %v122, 0.0
    %181 = vadd.xlane.f32.xlu0 %v180
    %v182 = vpop.xlane.xlu0 %181
    %v183 = vsel %vm176, %v127, 0.0
    %184 = vadd.xlane.f32.xlu0 %v183
    %v185 = vpop.xlane.xlu0 %184
    %v186 = vsel %vm176, %v130, 0.0
    %187 = vadd.xlane.f32.xlu0 %v186
    %v188 = vpop.xlane.xlu0 %187
    %vm189 = vcmask 254976
    %v190 = vsel %vm189, %v135, 0.0
    %191 = vadd.xlane.f32.xlu0 %v190
    %v192 = vpop.xlane.xlu0 %191
    %v193 = vrcp.pop 32.0
    %v194 = vmul.f32 %v179, %v193
    %v195 = vmul.f32 %v182, %v193
    %v196 = vmul.f32 %v185, %v193
    %v197 = vmul.f32 %v188, %v193
    %v198 = vmul.f32 %v192, %v193
    %v199 = vsub.f32 %v119, %v194
    %v200 = vsub.f32 %v122, %v195
    %v201 = vsub.f32 %v127, %v196
    %v202 = vsub.f32 %v130, %v197
    %v203 = vsub.f32 %v135, %v198
    %v204 = vmul.f32 %v199, %v199
    %v205 = vmul.f32 %v200, %v200
    %v206 = vmul.f32 %v201, %v201
    %v207 = vmul.f32 %v202, %v202
    %v208 = vmul.f32 %v203, %v203
    %v209 = vsel %vm176, %v204, 0.0
    %210 = vadd.xlane.f32.xlu0 %v209
    %v211 = vpop.xlane.xlu0 %210
    %v212 = vsel %vm176, %v205, 0.0
    %213 = vadd.xlane.f32.xlu0 %v212
    %v214 = vpop.xlane.xlu0 %213
    %v215 = vsel %vm176, %v206, 0.0
    %216 = vadd.xlane.f32.xlu0 %v215
    %v217 = vpop.xlane.xlu0 %216
    %v218 = vsel %vm176, %v207, 0.0
    %219 = vadd.xlane.f32.xlu0 %v218
    %v220 = vpop.xlane.xlu0 %219
    %v221 = vsel %vm189, %v208, 0.0
    %222 = vadd.xlane.f32.xlu0 %v221
    %v223 = vpop.xlane.xlu0 %222
    %v224 = vmul.f32 %v211, %v193
    %v225 = vmul.f32 %v214, %v193
    %v226 = vmul.f32 %v217, %v193
    %v227 = vmul.f32 %v220, %v193
    %v228 = vmul.f32 %v223, %v193
    %v229 = vadd.f32 %v224, 1e-06
    %v230 = vadd.f32 %v225, 1e-06
    %v231 = vadd.f32 %v226, 1e-06
    %v232 = vadd.f32 %v227, 1e-06
    %v233 = vadd.f32 %v228, 1e-06
    %v234 = vrsqrt.pop %v229
    %v235 = vrsqrt.pop %v230
    %v236 = vrsqrt.pop %v231
    %v237 = vrsqrt.pop %v232
    %v238 = vrsqrt.pop %v233
    %v239 = vmul.f32 %v199, %v234
    %v240 = vmul.f32 %v200, %v235
    %v241 = vmul.f32 %v201, %v236
    %v242 = vmul.f32 %v202, %v237
    %v243 = vmul.f32 %v203, %v238
    %v244 = vlaneseq
    %v245 = vshrl.u32 %v244, 7
    %v246 = vsub.s32 0, %v245
    %v247 = vrot.slane %v168, %v246
    %v248 = vmul.f32 %v239, %v247
    %v249 = vmul.f32 %v240, %v247
    %v250 = vmul.f32 %v241, %v247
    %v251 = vmul.f32 %v242, %v247
    %v252 = vmul.f32 %v243, %v247
    %v253 = vlaneseq
    %v254 = vshrl.u32 %v253, 7
    %v255 = vsub.s32 0, %v254
    %v256 = vrot.slane %v169, %v255
    %v257 = vadd.f32 %v248, %v256
    %v258 = vadd.f32 %v249, %v256
    %v259 = vadd.f32 %v250, %v256
    %v260 = vadd.f32 %v251, %v256
    %v261 = vadd.f32 %v252, %v256
    %v262 = vpack.c.bf16 %v258, %v257
    %v263 = vpack.c.bf16 %v260, %v259
    %v264 = vpack.c.bf16 %v261, %v261
    %v265 = vlaneseq
    %v266 = vshrl.u32 %v265, 7
    %v267 = vsub.s32 0, %v266
    %v268 = vrot.slane %v170, %v267
    %v273 = vunpack.c.l.b16 %v140
    %v274 = vunpack.c.l.b16 %v141
    %v275 = vunpack.c.l.b16 %v142
    %v276 = vunpack.c.l.b16 %v143
    %v277 = vpack.c.b16 %v274, %v273
    %v278 = vpack.c.b16 %v276, %v275
    %v282 = vsel %vm176, %v262, 0
    %v285 = vsel %vm176, %v263, 0
    %v288 = vsel %vm176, %v264, 0
    %290 = vmatprep.subr.bf16.mxu0 0
    %291 = vmatpush1.bf16.msra.mxu0 %v277
    %292 = vmatprep.subr.bf16.mxu0 0
    %293 = vmatpush1.bf16.msra.mxu0 %v278
    %294 = vmatprep.subr.bf16.mxu0 0
    %295 = vmatpush1.bf16.msra.mxu0 0
    %296 = vmatprep.subr.bf16.mxu0 0
    %297 = vmatpush1.bf16.msra.mxu0 0
    %298 = vmatprep.subr.bf16.mxu0 0
    %299 = vmatpush1.bf16.msra.mxu0 0
    %300 = vmatprep.subr.bf16.mxu0 0
    %301 = vmatpush1.bf16.msra.mxu0 0
    %302 = vmatprep.subr.bf16.mxu0 0
    %303 = vmatpush1.bf16.msra.mxu0 0
    %304 = vmatprep.subr.bf16.mxu0 0
    %305 = vmatpush1.bf16.msra.mxu0 0
    %306 = vmatprep.subr.bf16.mxu0 0
    %307 = vmatpush1.bf16.msra.mxu0 0
    %308 = vmatprep.subr.bf16.mxu0 0
    %309 = vmatpush1.bf16.msra.mxu0 0
    %310 = vmatprep.subr.bf16.mxu0 0
    %311 = vmatpush1.bf16.msra.mxu0 0
    %312 = vmatprep.subr.bf16.mxu0 0
    %313 = vmatpush1.bf16.msra.mxu0 0
    %314 = vmatprep.subr.bf16.mxu0 0
    %315 = vmatpush1.bf16.msra.mxu0 0
    %316 = vmatprep.subr.bf16.mxu0 0
    %317 = vmatpush1.bf16.msra.mxu0 0
    %318 = vmatprep.subr.bf16.mxu0 0
    %319 = vmatpush1.bf16.msra.mxu0 0
    %320 = vmatprep.subr.bf16.mxu0 0
    %321 = vmatpush1.bf16.msra.mxu0 0
    %322 = vmatprep.mubr.bf16.mxu0 0
    %323 = vmatmul.mubr.bf16.gmra.mrb[0].mxu0 %v282
    %v324 = vpop.f32.mrb[0].mxu0
    %v325 = vadd.f32 %v268, %v324
    %v326 = vpop.f32.mrb[0].mxu0
    %v327 = vpop.f32.mrb[0].mxu0
    %v328 = vadd.f32 %v268, %v327
    %v329 = vpop.f32.mrb[0].mxu0
    %330 = vmatprep.mubr.bf16.mxu0 0
    %331 = vmatmul.mubr.bf16.gmra.mrb[0].mxu0 %v285
    %v332 = vpop.f32.mrb[0].mxu0
    %v333 = vadd.f32 %v268, %v332
    %v334 = vpop.f32.mrb[0].mxu0
    %v335 = vpop.f32.mrb[0].mxu0
    %v336 = vadd.f32 %v268, %v335
    %v337 = vpop.f32.mrb[0].mxu0
    %338 = vmatprep.mubr.bf16.mxu0 0
    %339 = vmatmul.mubr.bf16.gmra.mrb[0].mxu0 %v288
    %v340 = vpop.f32.mrb[0].mxu0
    %v341 = vadd.f32 %v268, %v340
    %v342 = vpop.f32.mrb[0].mxu0
    %v343 = vpop.f32.mrb[0].mxu0
    %v344 = vpop.f32.mrb[0].mxu0
    %345 = vdwg.mxu0
    %v346 = vpack.c.bf16 %v328, %v325
    %v347 = vpack.c.bf16 %v336, %v333
    %v348 = vpack.c.bf16 %v341, %v341
    %351 = vrot.lane.b32.xlu0 %v346, 120
    %v352 = vpop.permute.xlu0 %351
    %353 = vrot.lane.b32.xlu0 %v347, 120
    %v354 = vpop.permute.xlu0 %353
    %355 = vrot.lane.b32.xlu0 %v346, 112
    %v356 = vpop.permute.xlu0 %355
    %357 = vrot.lane.b32.xlu0 %v347, 112
    %v358 = vpop.permute.xlu0 %357
    %359 = vrot.lane.b32.xlu0 %v346, 104
    %v360 = vpop.permute.xlu0 %359
    %361 = vrot.lane.b32.xlu0 %v347, 104
    %v362 = vpop.permute.xlu0 %361
    %vm363 = vsmask.f32 7424
    %v365 = vshrl.u32 %v347, 16
    %v367 = vshll.u32 %v347, 16
    %v369 = vrot.slane %v367, 1
    %v370 = vor.u32 %v365, %v369
    %v372 = vshll.u32 %v348, 16
    %v374 = vrot.slane %v372, 1
    %v375 = vsel %vm363, %v370, %v374
    %v376 = vshrl.u32 %v348, 16
    %378 = vrot.lane.b32.xlu0 %v375, 120
    %v379 = vpop.permute.xlu0 %378
    %380 = vrot.lane.b32.xlu0 %v376, 120
    %v381 = vpop.permute.xlu0 %380
    %382 = vrot.lane.b32.xlu0 %v375, 112
    %v383 = vpop.permute.xlu0 %382
    %384 = vrot.lane.b32.xlu0 %v376, 112
    %v385 = vpop.permute.xlu0 %384
    %386 = vrot.lane.b32.xlu0 %v375, 104
    %v387 = vpop.permute.xlu0 %386
    %388 = vrot.lane.b32.xlu0 %v376, 104
    %v389 = vpop.permute.xlu0 %388
    %390 = vrot.lane.b32.xlu0 %v346, 96
    %v391 = vpop.permute.xlu0 %390
    %392 = vrot.lane.b32.xlu0 %v347, 96
    %v393 = vpop.permute.xlu0 %392
    %vm394 = vcmask 64512
    %v396 = vsel %vm394, %v346, 0
    %v398 = vsel %vm394, %v347, 0
    %v401 = vsel %vm394, %v391, 0
    %v404 = vsel %vm394, %v393, 0
    %406 = vmatprep.subr.bf16.mxu0 0
    %407 = vmatpush1.bf16.xpose.msra.mxu0 %v401
    %408 = vmatprep.subr.bf16.mxu0 0
    %409 = vmatpush1.bf16.xpose.msra.mxu0 %v404
    %410 = vmatprep.subr.bf16.mxu0 0
    %411 = vmatpush1.bf16.xpose.msra.mxu0 0
    %412 = vmatprep.subr.bf16.mxu0 0
    %413 = vmatpush1.bf16.xpose.msra.mxu0 0
    %414 = vmatprep.subr.bf16.mxu0 0
    %415 = vmatpush1.bf16.xpose.msra.mxu0 0
    %416 = vmatprep.subr.bf16.mxu0 0
    %417 = vmatpush1.bf16.xpose.msra.mxu0 0
    %418 = vmatprep.subr.bf16.mxu0 0
    %419 = vmatpush1.bf16.xpose.msra.mxu0 0
    %420 = vmatprep.subr.bf16.mxu0 0
    %421 = vmatpush1.bf16.xpose.msra.mxu0 0
    %422 = vmatprep.subr.bf16.mxu0 0
    %423 = vmatpush1.bf16.xpose.msra.mxu0 0
    %424 = vmatprep.subr.bf16.mxu0 0
    %425 = vmatpush1.bf16.xpose.msra.mxu0 0
    %426 = vmatprep.subr.bf16.mxu0 0
    %427 = vmatpush1.bf16.xpose.msra.mxu0 0
    %428 = vmatprep.subr.bf16.mxu0 0
    %429 = vmatpush1.bf16.xpose.msra.mxu0 0
    %430 = vmatprep.subr.bf16.mxu0 0
    %431 = vmatpush1.bf16.xpose.msra.mxu0 0
    %432 = vmatprep.subr.bf16.mxu0 0
    %433 = vmatpush1.bf16.xpose.msra.mxu0 0
    %434 = vmatprep.subr.bf16.mxu0 0
    %435 = vmatpush1.bf16.xpose.msra.mxu0 0
    %436 = vmatprep.subr.bf16.mxu0 0
    %437 = vmatpush1.bf16.xpose.msra.mxu0 0
    %438 = vmatprep.mubr.bf16.mxu0 0
    %439 = vmatmul.mubr.bf16.gmra.mrb[0].mxu0 %v396
    %v440 = vpop.f32.mrb[0].mxu0
    %v441 = vadd.f32 0.0, %v440
    %v442 = vpop.f32.mrb[0].mxu0
    %v443 = vpop.f32.mrb[0].mxu0
    %v444 = vadd.f32 0.0, %v443
    %v445 = vpop.f32.mrb[0].mxu0
    %446 = vmatprep.mubr.bf16.mxu0 0
    %447 = vmatmul.mubr.bf16.gmra.mrb[0].mxu0 %v398
    %v448 = vpop.f32.mrb[0].mxu0
    %v449 = vadd.f32 0.0, %v448
    %v450 = vpop.f32.mrb[0].mxu0
    %v451 = vpop.f32.mrb[0].mxu0
    %v452 = vpop.f32.mrb[0].mxu0
    %453 = vdwg.mxu0
    %454 = vrot.lane.b32.xlu0 %v352, 96
    %v455 = vpop.permute.xlu0 %454
    %456 = vrot.lane.b32.xlu0 %v354, 96
    %v457 = vpop.permute.xlu0 %456
    %v459 = vsel %vm394, %v352, 0
    %v462 = vsel %vm394, %v354, 0
    %v465 = vsel %vm394, %v455, 0
    %v468 = vsel %vm394, %v457, 0
    %470 = vmatprep.subr.bf16.mxu0 0
    %471 = vmatpush1.bf16.xpose.msra.mxu0 %v465
    %472 = vmatprep.subr.bf16.mxu0 0
    %473 = vmatpush1.bf16.xpose.msra.mxu0 %v468
    %474 = vmatprep.subr.bf16.mxu0 0
    %475 = vmatpush1.bf16.xpose.msra.mxu0 0
    %476 = vmatprep.subr.bf16.mxu0 0
    %477 = vmatpush1.bf16.xpose.msra.mxu0 0
    %478 = vmatprep.subr.bf16.mxu0 0
    %479 = vmatpush1.bf16.xpose.msra.mxu0 0
    %480 = vmatprep.subr.bf16.mxu0 0
    %481 = vmatpush1.bf16.xpose.msra.mxu0 0
    %482 = vmatprep.subr.bf16.mxu0 0
    %483 = vmatpush1.bf16.xpose.msra.mxu0 0
    %484 = vmatprep.subr.bf16.mxu0 0
    %485 = vmatpush1.bf16.xpose.msra.mxu0 0
    %486 = vmatprep.subr.bf16.mxu0 0
    %487 = vmatpush1.bf16.xpose.msra.mxu0 0
    %488 = vmatprep.subr.bf16.mxu0 0
    %489 = vmatpush1.bf16.xpose.msra.mxu0 0
    %490 = vmatprep.subr.bf16.mxu0 0
    %491 = vmatpush1.bf16.xpose.msra.mxu0 0
    %492 = vmatprep.subr.bf16.mxu0 0
    %493 = vmatpush1.bf16.xpose.msra.mxu0 0
    %494 = vmatprep.subr.bf16.mxu0 0
    %495 = vmatpush1.bf16.xpose.msra.mxu0 0
    %496 = vmatprep.subr.bf16.mxu0 0
    %497 = vmatpush1.bf16.xpose.msra.mxu0 0
    %498 = vmatprep.subr.bf16.mxu0 0
    %499 = vmatpush1.bf16.xpose.msra.mxu0 0
    %500 = vmatprep.subr.bf16.mxu0 0
    %501 = vmatpush1.bf16.xpose.msra.mxu0 0
    %502 = vmatprep.mubr.bf16.mxu0 0
    %503 = vmatmul.mubr.bf16.gmra.mrb[0].mxu0 %v459
    %v504 = vpop.f32.mrb[0].mxu0
    %v505 = vadd.f32 0.0, %v504
    %v506 = vpop.f32.mrb[0].mxu0
    %v507 = vpop.f32.mrb[0].mxu0
    %v508 = vadd.f32 0.0, %v507
    %v509 = vpop.f32.mrb[0].mxu0
    %510 = vmatprep.mubr.bf16.mxu0 0
    %511 = vmatmul.mubr.bf16.gmra.mrb[0].mxu0 %v462
    %v512 = vpop.f32.mrb[0].mxu0
    %v513 = vadd.f32 0.0, %v512
    %v514 = vpop.f32.mrb[0].mxu0
    %v515 = vpop.f32.mrb[0].mxu0
    %v516 = vpop.f32.mrb[0].mxu0
    %517 = vdwg.mxu0
    %518 = vrot.lane.b32.xlu0 %v356, 96
    %v519 = vpop.permute.xlu0 %518
    %520 = vrot.lane.b32.xlu0 %v358, 96
    %v521 = vpop.permute.xlu0 %520
    %v523 = vsel %vm394, %v356, 0
    %v526 = vsel %vm394, %v358, 0
    %v529 = vsel %vm394, %v519, 0
    %v532 = vsel %vm394, %v521, 0
    %534 = vmatprep.subr.bf16.mxu0 0
    %535 = vmatpush1.bf16.xpose.msra.mxu0 %v529
    %536 = vmatprep.subr.bf16.mxu0 0
    %537 = vmatpush1.bf16.xpose.msra.mxu0 %v532
    %538 = vmatprep.subr.bf16.mxu0 0
    %539 = vmatpush1.bf16.xpose.msra.mxu0 0
    %540 = vmatprep.subr.bf16.mxu0 0
    %541 = vmatpush1.bf16.xpose.msra.mxu0 0
    %542 = vmatprep.subr.bf16.mxu0 0
    %543 = vmatpush1.bf16.xpose.msra.mxu0 0
    %544 = vmatprep.subr.bf16.mxu0 0
    %545 = vmatpush1.bf16.xpose.msra.mxu0 0
    %546 = vmatprep.subr.bf16.mxu0 0
    %547 = vmatpush1.bf16.xpose.msra.mxu0 0
    %548 = vmatprep.subr.bf16.mxu0 0
    %549 = vmatpush1.bf16.xpose.msra.mxu0 0
    %550 = vmatprep.subr.bf16.mxu0 0
    %551 = vmatpush1.bf16.xpose.msra.mxu0 0
    %552 = vmatprep.subr.bf16.mxu0 0
    %553 = vmatpush1.bf16.xpose.msra.mxu0 0
    %554 = vmatprep.subr.bf16.mxu0 0
    %555 = vmatpush1.bf16.xpose.msra.mxu0 0
    %556 = vmatprep.subr.bf16.mxu0 0
    %557 = vmatpush1.bf16.xpose.msra.mxu0 0
    %558 = vmatprep.subr.bf16.mxu0 0
    %559 = vmatpush1.bf16.xpose.msra.mxu0 0
    %560 = vmatprep.subr.bf16.mxu0 0
    %561 = vmatpush1.bf16.xpose.msra.mxu0 0
    %562 = vmatprep.subr.bf16.mxu0 0
    %563 = vmatpush1.bf16.xpose.msra.mxu0 0
    %564 = vmatprep.subr.bf16.mxu0 0
    %565 = vmatpush1.bf16.xpose.msra.mxu0 0
    %566 = vmatprep.mubr.bf16.mxu0 0
    %567 = vmatmul.mubr.bf16.gmra.mrb[0].mxu0 %v523
    %v568 = vpop.f32.mrb[0].mxu0
    %v569 = vadd.f32 0.0, %v568
    %v570 = vpop.f32.mrb[0].mxu0
    %v571 = vpop.f32.mrb[0].mxu0
    %v572 = vadd.f32 0.0, %v571
    %v573 = vpop.f32.mrb[0].mxu0
    %574 = vmatprep.mubr.bf16.mxu0 0
    %575 = vmatmul.mubr.bf16.gmra.mrb[0].mxu0 %v526
    %v576 = vpop.f32.mrb[0].mxu0
    %v577 = vadd.f32 0.0, %v576
    %v578 = vpop.f32.mrb[0].mxu0
    %v579 = vpop.f32.mrb[0].mxu0
    %v580 = vpop.f32.mrb[0].mxu0
    %581 = vdwg.mxu0
    %582 = vrot.lane.b32.xlu0 %v360, 96
    %v583 = vpop.permute.xlu0 %582
    %584 = vrot.lane.b32.xlu0 %v362, 96
    %v585 = vpop.permute.xlu0 %584
    %v587 = vsel %vm394, %v360, 0
    %v590 = vsel %vm394, %v362, 0
    %v593 = vsel %vm394, %v583, 0
    %v596 = vsel %vm394, %v585, 0
    %598 = vmatprep.subr.bf16.mxu0 0
    %599 = vmatpush1.bf16.xpose.msra.mxu0 %v593
    %600 = vmatprep.subr.bf16.mxu0 0
    %601 = vmatpush1.bf16.xpose.msra.mxu0 %v596
    %602 = vmatprep.subr.bf16.mxu0 0
    %603 = vmatpush1.bf16.xpose.msra.mxu0 0
    %604 = vmatprep.subr.bf16.mxu0 0
    %605 = vmatpush1.bf16.xpose.msra.mxu0 0
    %606 = vmatprep.subr.bf16.mxu0 0
    %607 = vmatpush1.bf16.xpose.msra.mxu0 0
    %608 = vmatprep.subr.bf16.mxu0 0
    %609 = vmatpush1.bf16.xpose.msra.mxu0 0
    %610 = vmatprep.subr.bf16.mxu0 0
    %611 = vmatpush1.bf16.xpose.msra.mxu0 0
    %612 = vmatprep.subr.bf16.mxu0 0
    %613 = vmatpush1.bf16.xpose.msra.mxu0 0
    %614 = vmatprep.subr.bf16.mxu0 0
    %615 = vmatpush1.bf16.xpose.msra.mxu0 0
    %616 = vmatprep.subr.bf16.mxu0 0
    %617 = vmatpush1.bf16.xpose.msra.mxu0 0
    %618 = vmatprep.subr.bf16.mxu0 0
    %619 = vmatpush1.bf16.xpose.msra.mxu0 0
    %620 = vmatprep.subr.bf16.mxu0 0
    %621 = vmatpush1.bf16.xpose.msra.mxu0 0
    %622 = vmatprep.subr.bf16.mxu0 0
    %623 = vmatpush1.bf16.xpose.msra.mxu0 0
    %624 = vmatprep.subr.bf16.mxu0 0
    %625 = vmatpush1.bf16.xpose.msra.mxu0 0
    %626 = vmatprep.subr.bf16.mxu0 0
    %627 = vmatpush1.bf16.xpose.msra.mxu0 0
    %628 = vmatprep.subr.bf16.mxu0 0
    %629 = vmatpush1.bf16.xpose.msra.mxu0 0
    %630 = vmatprep.mubr.bf16.mxu0 0
    %631 = vmatmul.mubr.bf16.gmra.mrb[0].mxu0 %v587
    %v632 = vpop.f32.mrb[0].mxu0
    %v633 = vadd.f32 0.0, %v632
    %v634 = vpop.f32.mrb[0].mxu0
    %v635 = vpop.f32.mrb[0].mxu0
    %v636 = vadd.f32 0.0, %v635
    %v637 = vpop.f32.mrb[0].mxu0
    %638 = vmatprep.mubr.bf16.mxu0 0
    %639 = vmatmul.mubr.bf16.gmra.mrb[0].mxu0 %v590
    %v640 = vpop.f32.mrb[0].mxu0
    %v641 = vadd.f32 0.0, %v640
    %v642 = vpop.f32.mrb[0].mxu0
    %v643 = vpop.f32.mrb[0].mxu0
    %v644 = vpop.f32.mrb[0].mxu0
    %645 = vdwg.mxu0
    %646 = vrot.lane.b32.xlu0 %v375, 96
    %v647 = vpop.permute.xlu0 %646
    %648 = vrot.lane.b32.xlu0 %v376, 96
    %v649 = vpop.permute.xlu0 %648
    %v651 = vsel %vm394, %v375, 0
    %v654 = vsel %vm394, %v376, 0
    %v657 = vsel %vm394, %v647, 0
    %v660 = vsel %vm394, %v649, 0
    %662 = vmatprep.subr.bf16.mxu0 0
    %663 = vmatpush1.bf16.xpose.msra.mxu0 %v657
    %664 = vmatprep.subr.bf16.mxu0 0
    %665 = vmatpush1.bf16.xpose.msra.mxu0 %v660
    %666 = vmatprep.subr.bf16.mxu0 0
    %667 = vmatpush1.bf16.xpose.msra.mxu0 0
    %668 = vmatprep.subr.bf16.mxu0 0
    %669 = vmatpush1.bf16.xpose.msra.mxu0 0
    %670 = vmatprep.subr.bf16.mxu0 0
    %671 = vmatpush1.bf16.xpose.msra.mxu0 0
    %672 = vmatprep.subr.bf16.mxu0 0
    %673 = vmatpush1.bf16.xpose.msra.mxu0 0
    %674 = vmatprep.subr.bf16.mxu0 0
    %675 = vmatpush1.bf16.xpose.msra.mxu0 0
    %676 = vmatprep.subr.bf16.mxu0 0
    %677 = vmatpush1.bf16.xpose.msra.mxu0 0
    %678 = vmatprep.subr.bf16.mxu0 0
    %679 = vmatpush1.bf16.xpose.msra.mxu0 0
    %680 = vmatprep.subr.bf16.mxu0 0
    %681 = vmatpush1.bf16.xpose.msra.mxu0 0
    %682 = vmatprep.subr.bf16.mxu0 0
    %683 = vmatpush1.bf16.xpose.msra.mxu0 0
    %684 = vmatprep.subr.bf16.mxu0 0
    %685 = vmatpush1.bf16.xpose.msra.mxu0 0
    %686 = vmatprep.subr.bf16.mxu0 0
    %687 = vmatpush1.bf16.xpose.msra.mxu0 0
    %688 = vmatprep.subr.bf16.mxu0 0
    %689 = vmatpush1.bf16.xpose.msra.mxu0 0
    %690 = vmatprep.subr.bf16.mxu0 0
    %691 = vmatpush1.bf16.xpose.msra.mxu0 0
    %692 = vmatprep.subr.bf16.mxu0 0
    %693 = vmatpush1.bf16.xpose.msra.mxu0 0
    %694 = vmatprep.mubr.bf16.mxu0 0
    %695 = vmatmul.mubr.bf16.gmra.mrb[0].mxu0 %v651
    %v696 = vpop.f32.mrb[0].mxu0
    %v697 = vadd.f32 0.0, %v696
    %v698 = vpop.f32.mrb[0].mxu0
    %v699 = vpop.f32.mrb[0].mxu0
    %v700 = vadd.f32 0.0, %v699
    %v701 = vpop.f32.mrb[0].mxu0
    %702 = vmatprep.mubr.bf16.mxu0 0
    %703 = vmatmul.mubr.bf16.gmra.mrb[0].mxu0 %v654
    %v704 = vpop.f32.mrb[0].mxu0
    %v705 = vadd.f32 0.0, %v704
    %v706 = vpop.f32.mrb[0].mxu0
    %v707 = vpop.f32.mrb[0].mxu0
    %v708 = vpop.f32.mrb[0].mxu0
    %709 = vdwg.mxu0
    %710 = vrot.lane.b32.xlu0 %v379, 96
    %v711 = vpop.permute.xlu0 %710
    %712 = vrot.lane.b32.xlu0 %v381, 96
    %v713 = vpop.permute.xlu0 %712
    %v715 = vsel %vm394, %v379, 0
    %v718 = vsel %vm394, %v381, 0
    %v721 = vsel %vm394, %v711, 0
    %v724 = vsel %vm394, %v713, 0
    %726 = vmatprep.subr.bf16.mxu0 0
    %727 = vmatpush1.bf16.xpose.msra.mxu0 %v721
    %728 = vmatprep.subr.bf16.mxu0 0
    %729 = vmatpush1.bf16.xpose.msra.mxu0 %v724
    %730 = vmatprep.subr.bf16.mxu0 0
    %731 = vmatpush1.bf16.xpose.msra.mxu0 0
    %732 = vmatprep.subr.bf16.mxu0 0
    %733 = vmatpush1.bf16.xpose.msra.mxu0 0
    %734 = vmatprep.subr.bf16.mxu0 0
    %735 = vmatpush1.bf16.xpose.msra.mxu0 0
    %736 = vmatprep.subr.bf16.mxu0 0
    %737 = vmatpush1.bf16.xpose.msra.mxu0 0
    %738 = vmatprep.subr.bf16.mxu0 0
    %739 = vmatpush1.bf16.xpose.msra.mxu0 0
    %740 = vmatprep.subr.bf16.mxu0 0
    %741 = vmatpush1.bf16.xpose.msra.mxu0 0
    %742 = vmatprep.subr.bf16.mxu0 0
    %743 = vmatpush1.bf16.xpose.msra.mxu0 0
    %744 = vmatprep.subr.bf16.mxu0 0
    %745 = vmatpush1.bf16.xpose.msra.mxu0 0
    %746 = vmatprep.subr.bf16.mxu0 0
    %747 = vmatpush1.bf16.xpose.msra.mxu0 0
    %748 = vmatprep.subr.bf16.mxu0 0
    %749 = vmatpush1.bf16.xpose.msra.mxu0 0
    %750 = vmatprep.subr.bf16.mxu0 0
    %751 = vmatpush1.bf16.xpose.msra.mxu0 0
    %752 = vmatprep.subr.bf16.mxu0 0
    %753 = vmatpush1.bf16.xpose.msra.mxu0 0
    %754 = vmatprep.subr.bf16.mxu0 0
    %755 = vmatpush1.bf16.xpose.msra.mxu0 0
    %756 = vmatprep.subr.bf16.mxu0 0
    %757 = vmatpush1.bf16.xpose.msra.mxu0 0
    %758 = vmatprep.mubr.bf16.mxu0 0
    %759 = vmatmul.mubr.bf16.gmra.mrb[0].mxu0 %v715
    %v760 = vpop.f32.mrb[0].mxu0
    %v761 = vadd.f32 0.0, %v760
    %v762 = vpop.f32.mrb[0].mxu0
    %v763 = vpop.f32.mrb[0].mxu0
    %v764 = vadd.f32 0.0, %v763
    %v765 = vpop.f32.mrb[0].mxu0
    %766 = vmatprep.mubr.bf16.mxu0 0
    %767 = vmatmul.mubr.bf16.gmra.mrb[0].mxu0 %v718
    %v768 = vpop.f32.mrb[0].mxu0
    %v769 = vadd.f32 0.0, %v768
    %v770 = vpop.f32.mrb[0].mxu0
    %v771 = vpop.f32.mrb[0].mxu0
    %v772 = vpop.f32.mrb[0].mxu0
    %773 = vdwg.mxu0
    %774 = vrot.lane.b32.xlu0 %v383, 96
    %v775 = vpop.permute.xlu0 %774
    %776 = vrot.lane.b32.xlu0 %v385, 96
    %v777 = vpop.permute.xlu0 %776
    %v779 = vsel %vm394, %v383, 0
    %v782 = vsel %vm394, %v385, 0
    %v785 = vsel %vm394, %v775, 0
    %v788 = vsel %vm394, %v777, 0
    %790 = vmatprep.subr.bf16.mxu0 0
    %791 = vmatpush1.bf16.xpose.msra.mxu0 %v785
    %792 = vmatprep.subr.bf16.mxu0 0
    %793 = vmatpush1.bf16.xpose.msra.mxu0 %v788
    %794 = vmatprep.subr.bf16.mxu0 0
    %795 = vmatpush1.bf16.xpose.msra.mxu0 0
    %796 = vmatprep.subr.bf16.mxu0 0
    %797 = vmatpush1.bf16.xpose.msra.mxu0 0
    %798 = vmatprep.subr.bf16.mxu0 0
    %799 = vmatpush1.bf16.xpose.msra.mxu0 0
    %800 = vmatprep.subr.bf16.mxu0 0
    %801 = vmatpush1.bf16.xpose.msra.mxu0 0
    %802 = vmatprep.subr.bf16.mxu0 0
    %803 = vmatpush1.bf16.xpose.msra.mxu0 0
    %804 = vmatprep.subr.bf16.mxu0 0
    %805 = vmatpush1.bf16.xpose.msra.mxu0 0
    %806 = vmatprep.subr.bf16.mxu0 0
    %807 = vmatpush1.bf16.xpose.msra.mxu0 0
    %808 = vmatprep.subr.bf16.mxu0 0
    %809 = vmatpush1.bf16.xpose.msra.mxu0 0
    %810 = vmatprep.subr.bf16.mxu0 0
    %811 = vmatpush1.bf16.xpose.msra.mxu0 0
    %812 = vmatprep.subr.bf16.mxu0 0
    %813 = vmatpush1.bf16.xpose.msra.mxu0 0
    %814 = vmatprep.subr.bf16.mxu0 0
    %815 = vmatpush1.bf16.xpose.msra.mxu0 0
    %816 = vmatprep.subr.bf16.mxu0 0
    %817 = vmatpush1.bf16.xpose.msra.mxu0 0
    %818 = vmatprep.subr.bf16.mxu0 0
    %819 = vmatpush1.bf16.xpose.msra.mxu0 0
    %820 = vmatprep.subr.bf16.mxu0 0
    %821 = vmatpush1.bf16.xpose.msra.mxu0 0
    %822 = vmatprep.mubr.bf16.mxu0 0
    %823 = vmatmul.mubr.bf16.gmra.mrb[0].mxu0 %v779
    %v824 = vpop.f32.mrb[0].mxu0
    %v825 = vadd.f32 0.0, %v824
    %v826 = vpop.f32.mrb[0].mxu0
    %v827 = vpop.f32.mrb[0].mxu0
    %v828 = vadd.f32 0.0, %v827
    %v829 = vpop.f32.mrb[0].mxu0
    %830 = vmatprep.mubr.bf16.mxu0 0
    %831 = vmatmul.mubr.bf16.gmra.mrb[0].mxu0 %v782
    %v832 = vpop.f32.mrb[0].mxu0
    %v833 = vadd.f32 0.0, %v832
    %v834 = vpop.f32.mrb[0].mxu0
    %v835 = vpop.f32.mrb[0].mxu0
    %v836 = vpop.f32.mrb[0].mxu0
    %837 = vdwg.mxu0
    %838 = vrot.lane.b32.xlu0 %v387, 96
    %v839 = vpop.permute.xlu0 %838
    %840 = vrot.lane.b32.xlu0 %v389, 96
    %v841 = vpop.permute.xlu0 %840
    %v843 = vsel %vm394, %v387, 0
    %v846 = vsel %vm394, %v389, 0
    %v849 = vsel %vm394, %v839, 0
    %v852 = vsel %vm394, %v841, 0
    %854 = vmatprep.subr.bf16.mxu0 0
    %855 = vmatpush1.bf16.xpose.msra.mxu0 %v849
    %856 = vmatprep.subr.bf16.mxu0 0
    %857 = vmatpush1.bf16.xpose.msra.mxu0 %v852
    %858 = vmatprep.subr.bf16.mxu0 0
    %859 = vmatpush1.bf16.xpose.msra.mxu0 0
    %860 = vmatprep.subr.bf16.mxu0 0
    %861 = vmatpush1.bf16.xpose.msra.mxu0 0
    %862 = vmatprep.subr.bf16.mxu0 0
    %863 = vmatpush1.bf16.xpose.msra.mxu0 0
    %864 = vmatprep.subr.bf16.mxu0 0
    %865 = vmatpush1.bf16.xpose.msra.mxu0 0
    %866 = vmatprep.subr.bf16.mxu0 0
    %867 = vmatpush1.bf16.xpose.msra.mxu0 0
    %868 = vmatprep.subr.bf16.mxu0 0
    %869 = vmatpush1.bf16.xpose.msra.mxu0 0
    %870 = vmatprep.subr.bf16.mxu0 0
    %871 = vmatpush1.bf16.xpose.msra.mxu0 0
    %872 = vmatprep.subr.bf16.mxu0 0
    %873 = vmatpush1.bf16.xpose.msra.mxu0 0
    %874 = vmatprep.subr.bf16.mxu0 0
    %875 = vmatpush1.bf16.xpose.msra.mxu0 0
    %876 = vmatprep.subr.bf16.mxu0 0
    %877 = vmatpush1.bf16.xpose.msra.mxu0 0
    %878 = vmatprep.subr.bf16.mxu0 0
    %879 = vmatpush1.bf16.xpose.msra.mxu0 0
    %880 = vmatprep.subr.bf16.mxu0 0
    %881 = vmatpush1.bf16.xpose.msra.mxu0 0
    %882 = vmatprep.subr.bf16.mxu0 0
    %883 = vmatpush1.bf16.xpose.msra.mxu0 0
    %884 = vmatprep.subr.bf16.mxu0 0
    %885 = vmatpush1.bf16.xpose.msra.mxu0 0
    %886 = vmatprep.mubr.bf16.mxu0 0
    %887 = vmatmul.mubr.bf16.gmra.mrb[0].mxu0 %v843
    %v888 = vpop.f32.mrb[0].mxu0
    %v889 = vadd.f32 0.0, %v888
    %v890 = vpop.f32.mrb[0].mxu0
    %v891 = vpop.f32.mrb[0].mxu0
    %v892 = vadd.f32 0.0, %v891
    %v893 = vpop.f32.mrb[0].mxu0
    %894 = vmatprep.mubr.bf16.mxu0 0
    %895 = vmatmul.mubr.bf16.gmra.mrb[0].mxu0 %v846
    %v896 = vpop.f32.mrb[0].mxu0
    %v897 = vadd.f32 0.0, %v896
    %v898 = vpop.f32.mrb[0].mxu0
    %v899 = vpop.f32.mrb[0].mxu0
    %v900 = vpop.f32.mrb[0].mxu0
    %901 = vdwg.mxu0
    %vm902 = vcmask 138240
    %v903 = vsel %vm902, %v441, -inf
    %904 = vmax.xlane.f32.xlu0 %v903
    %v905 = vpop.xlane.xlu0 %904
    %v906 = vsel %vm902, %v444, -inf
    %907 = vmax.xlane.f32.xlu0 %v906
    %v908 = vpop.xlane.xlu0 %907
    %vm909 = vcmask 131072
    %v910 = vsel %vm909, %v449, -inf
    %911 = vmax.xlane.f32.xlu0 %v910
    %v912 = vpop.xlane.xlu0 %911
    %v913 = vsel %vm902, %v505, -inf
    %914 = vmax.xlane.f32.xlu0 %v913
    %v915 = vpop.xlane.xlu0 %914
    %v916 = vsel %vm902, %v508, -inf
    %917 = vmax.xlane.f32.xlu0 %v916
    %v918 = vpop.xlane.xlu0 %917
    %v919 = vsel %vm909, %v513, -inf
    %920 = vmax.xlane.f32.xlu0 %v919
    %v921 = vpop.xlane.xlu0 %920
    %v922 = vsel %vm902, %v569, -inf
    %923 = vmax.xlane.f32.xlu0 %v922
    %v924 = vpop.xlane.xlu0 %923
    %v925 = vsel %vm902, %v572, -inf
    %926 = vmax.xlane.f32.xlu0 %v925
    %v927 = vpop.xlane.xlu0 %926
    %v928 = vsel %vm909, %v577, -inf
    %929 = vmax.xlane.f32.xlu0 %v928
    %v930 = vpop.xlane.xlu0 %929
    %v931 = vsel %vm902, %v633, -inf
    %932 = vmax.xlane.f32.xlu0 %v931
    %v933 = vpop.xlane.xlu0 %932
    %v934 = vsel %vm902, %v636, -inf
    %935 = vmax.xlane.f32.xlu0 %v934
    %v936 = vpop.xlane.xlu0 %935
    %v937 = vsel %vm909, %v641, -inf
    %938 = vmax.xlane.f32.xlu0 %v937
    %v939 = vpop.xlane.xlu0 %938
    %v940 = vsel %vm902, %v697, -inf
    %941 = vmax.xlane.f32.xlu0 %v940
    %v942 = vpop.xlane.xlu0 %941
    %v943 = vsel %vm902, %v700, -inf
    %944 = vmax.xlane.f32.xlu0 %v943
    %v945 = vpop.xlane.xlu0 %944
    %v946 = vsel %vm909, %v705, -inf
    %947 = vmax.xlane.f32.xlu0 %v946
    %v948 = vpop.xlane.xlu0 %947
    %v949 = vsel %vm902, %v761, -inf
    %950 = vmax.xlane.f32.xlu0 %v949
    %v951 = vpop.xlane.xlu0 %950
    %v952 = vsel %vm902, %v764, -inf
    %953 = vmax.xlane.f32.xlu0 %v952
    %v954 = vpop.xlane.xlu0 %953
    %v955 = vsel %vm909, %v769, -inf
    %956 = vmax.xlane.f32.xlu0 %v955
    %v957 = vpop.xlane.xlu0 %956
    %v958 = vsel %vm902, %v825, -inf
    %959 = vmax.xlane.f32.xlu0 %v958
    %v960 = vpop.xlane.xlu0 %959
    %v961 = vsel %vm902, %v828, -inf
    %962 = vmax.xlane.f32.xlu0 %v961
    %v963 = vpop.xlane.xlu0 %962
    %v964 = vsel %vm909, %v833, -inf
    %965 = vmax.xlane.f32.xlu0 %v964
    %v966 = vpop.xlane.xlu0 %965
    %v967 = vsel %vm902, %v889, -inf
    %968 = vmax.xlane.f32.xlu0 %v967
    %v969 = vpop.xlane.xlu0 %968
    %v970 = vsel %vm902, %v892, -inf
    %971 = vmax.xlane.f32.xlu0 %v970
    %v972 = vpop.xlane.xlu0 %971
    %v973 = vsel %vm909, %v897, -inf
    %974 = vmax.xlane.f32.xlu0 %v973
    %v975 = vpop.xlane.xlu0 %974
    %v976 = vsub.f32 %v441, %v905
    %v977 = vsub.f32 %v444, %v908
    %v978 = vsub.f32 %v449, %v912
    %v979 = vsub.f32 %v505, %v915
    %v980 = vsub.f32 %v508, %v918
    %v981 = vsub.f32 %v513, %v921
    %v982 = vsub.f32 %v569, %v924
    %v983 = vsub.f32 %v572, %v927
    %v984 = vsub.f32 %v577, %v930
    %v985 = vsub.f32 %v633, %v933
    %v986 = vsub.f32 %v636, %v936
    %v987 = vsub.f32 %v641, %v939
    %v988 = vsub.f32 %v697, %v942
    %v989 = vsub.f32 %v700, %v945
    %v990 = vsub.f32 %v705, %v948
    %v991 = vsub.f32 %v761, %v951
    %v992 = vsub.f32 %v764, %v954
    %v993 = vsub.f32 %v769, %v957
    %v994 = vsub.f32 %v825, %v960
    %v995 = vsub.f32 %v828, %v963
    %v996 = vsub.f32 %v833, %v966
    %v997 = vsub.f32 %v889, %v969
    %v998 = vsub.f32 %v892, %v972
    %v999 = vsub.f32 %v897, %v975
    %v1000 = vmul.f32 %v976, 1.442695
    %v1001 = vpow.pop %v1000
    %v1002 = vmul.f32 %v977, 1.442695
    %v1003 = vpow.pop %v1002
    %v1004 = vmul.f32 %v978, 1.442695
    %v1005 = vpow.pop %v1004
    %v1006 = vmul.f32 %v979, 1.442695
    %v1007 = vpow.pop %v1006
    %v1008 = vmul.f32 %v980, 1.442695
    %v1009 = vpow.pop %v1008
    %v1010 = vmul.f32 %v981, 1.442695
    %v1011 = vpow.pop %v1010
    %v1012 = vmul.f32 %v982, 1.442695
    %v1013 = vpow.pop %v1012
    %v1014 = vmul.f32 %v983, 1.442695
    %v1015 = vpow.pop %v1014
    %v1016 = vmul.f32 %v984, 1.442695
    %v1017 = vpow.pop %v1016
    %v1018 = vmul.f32 %v985, 1.442695
    %v1019 = vpow.pop %v1018
    %v1020 = vmul.f32 %v986, 1.442695
    %v1021 = vpow.pop %v1020
    %v1022 = vmul.f32 %v987, 1.442695
    %v1023 = vpow.pop %v1022
    %v1024 = vmul.f32 %v988, 1.442695
    %v1025 = vpow.pop %v1024
    %v1026 = vmul.f32 %v989, 1.442695
    %v1027 = vpow.pop %v1026
    %v1028 = vmul.f32 %v990, 1.442695
    %v1029 = vpow.pop %v1028
    %v1030 = vmul.f32 %v991, 1.442695
    %v1031 = vpow.pop %v1030
    %v1032 = vmul.f32 %v992, 1.442695
    %v1033 = vpow.pop %v1032
    %v1034 = vmul.f32 %v993, 1.442695
    %v1035 = vpow.pop %v1034
    %v1036 = vmul.f32 %v994, 1.442695
    %v1037 = vpow.pop %v1036
    %v1038 = vmul.f32 %v995, 1.442695
    %v1039 = vpow.pop %v1038
    %v1040 = vmul.f32 %v996, 1.442695
    %v1041 = vpow.pop %v1040
    %v1042 = vmul.f32 %v997, 1.442695
    %v1043 = vpow.pop %v1042
    %v1044 = vmul.f32 %v998, 1.442695
    %v1045 = vpow.pop %v1044
    %v1046 = vmul.f32 %v999, 1.442695
    %v1047 = vpow.pop %v1046
    %v1048 = vsel %vm902, %v1001, 0.0
    %1049 = vadd.xlane.f32.xlu0 %v1048
    %v1050 = vpop.xlane.xlu0 %1049
    %v1051 = vsel %vm902, %v1003, 0.0
    %1052 = vadd.xlane.f32.xlu0 %v1051
    %v1053 = vpop.xlane.xlu0 %1052
    %v1054 = vsel %vm909, %v1005, 0.0
    %1055 = vadd.xlane.f32.xlu0 %v1054
    %v1056 = vpop.xlane.xlu0 %1055
    %v1057 = vsel %vm902, %v1007, 0.0
    %1058 = vadd.xlane.f32.xlu0 %v1057
    %v1059 = vpop.xlane.xlu0 %1058
    %v1060 = vsel %vm902, %v1009, 0.0
    %1061 = vadd.xlane.f32.xlu0 %v1060
    %v1062 = vpop.xlane.xlu0 %1061
    %v1063 = vsel %vm909, %v1011, 0.0
    %1064 = vadd.xlane.f32.xlu0 %v1063
    %v1065 = vpop.xlane.xlu0 %1064
    %v1066 = vsel %vm902, %v1013, 0.0
    %1067 = vadd.xlane.f32.xlu0 %v1066
    %v1068 = vpop.xlane.xlu0 %1067
    %v1069 = vsel %vm902, %v1015, 0.0
    %1070 = vadd.xlane.f32.xlu0 %v1069
    %v1071 = vpop.xlane.xlu0 %1070
    %v1072 = vsel %vm909, %v1017, 0.0
    %1073 = vadd.xlane.f32.xlu0 %v1072
    %v1074 = vpop.xlane.xlu0 %1073
    %v1075 = vsel %vm902, %v1019, 0.0
    %1076 = vadd.xlane.f32.xlu0 %v1075
    %v1077 = vpop.xlane.xlu0 %1076
    %v1078 = vsel %vm902, %v1021, 0.0
    %1079 = vadd.xlane.f32.xlu0 %v1078
    %v1080 = vpop.xlane.xlu0 %1079
    %v1081 = vsel %vm909, %v1023, 0.0
    %1082 = vadd.xlane.f32.xlu0 %v1081
    %v1083 = vpop.xlane.xlu0 %1082
    %v1084 = vsel %vm902, %v1025, 0.0
    %1085 = vadd.xlane.f32.xlu0 %v1084
    %v1086 = vpop.xlane.xlu0 %1085
    %v1087 = vsel %vm902, %v1027, 0.0
    %1088 = vadd.xlane.f32.xlu0 %v1087
    %v1089 = vpop.xlane.xlu0 %1088
    %v1090 = vsel %vm909, %v1029, 0.0
    %1091 = vadd.xlane.f32.xlu0 %v1090
    %v1092 = vpop.xlane.xlu0 %1091
    %v1093 = vsel %vm902, %v1031, 0.0
    %1094 = vadd.xlane.f32.xlu0 %v1093
    %v1095 = vpop.xlane.xlu0 %1094
    %v1096 = vsel %vm902, %v1033, 0.0
    %1097 = vadd.xlane.f32.xlu0 %v1096
    %v1098 = vpop.xlane.xlu0 %1097
    %v1099 = vsel %vm909, %v1035, 0.0
    %1100 = vadd.xlane.f32.xlu0 %v1099
    %v1101 = vpop.xlane.xlu0 %1100
    %v1102 = vsel %vm902, %v1037, 0.0
    %1103 = vadd.xlane.f32.xlu0 %v1102
    %v1104 = vpop.xlane.xlu0 %1103
    %v1105 = vsel %vm902, %v1039, 0.0
    %1106 = vadd.xlane.f32.xlu0 %v1105
    %v1107 = vpop.xlane.xlu0 %1106
    %v1108 = vsel %vm909, %v1041, 0.0
    %1109 = vadd.xlane.f32.xlu0 %v1108
    %v1110 = vpop.xlane.xlu0 %1109
    %v1111 = vsel %vm902, %v1043, 0.0
    %1112 = vadd.xlane.f32.xlu0 %v1111
    %v1113 = vpop.xlane.xlu0 %1112
    %v1114 = vsel %vm902, %v1045, 0.0
    %1115 = vadd.xlane.f32.xlu0 %v1114
    %v1116 = vpop.xlane.xlu0 %1115
    %v1117 = vsel %vm909, %v1047, 0.0
    %1118 = vadd.xlane.f32.xlu0 %v1117
    %v1119 = vpop.xlane.xlu0 %1118
    %v1120 = vrcp.pop %v1050
    %v1121 = vrcp.pop %v1053
    %v1122 = vrcp.pop %v1056
    %v1123 = vrcp.pop %v1059
    %v1124 = vrcp.pop %v1062
    %v1125 = vrcp.pop %v1065
    %v1126 = vrcp.pop %v1068
    %v1127 = vrcp.pop %v1071
    %v1128 = vrcp.pop %v1074
    %v1129 = vrcp.pop %v1077
    %v1130 = vrcp.pop %v1080
    %v1131 = vrcp.pop %v1083
    %v1132 = vrcp.pop %v1086
    %v1133 = vrcp.pop %v1089
    %v1134 = vrcp.pop %v1092
    %v1135 = vrcp.pop %v1095
    %v1136 = vrcp.pop %v1098
    %v1137 = vrcp.pop %v1101
    %v1138 = vrcp.pop %v1104
    %v1139 = vrcp.pop %v1107
    %v1140 = vrcp.pop %v1110
    %v1141 = vrcp.pop %v1113
    %v1142 = vrcp.pop %v1116
    %v1143 = vrcp.pop %v1119
    %v1144 = vmul.f32 %v1001, %v1120
    %v1145 = vmul.f32 %v1003, %v1121
    %v1146 = vmul.f32 %v1005, %v1122
    %v1147 = vmul.f32 %v1007, %v1123
    %v1148 = vmul.f32 %v1009, %v1124
    %v1149 = vmul.f32 %v1011, %v1125
    %v1150 = vmul.f32 %v1013, %v1126
    %v1151 = vmul.f32 %v1015, %v1127
    %v1152 = vmul.f32 %v1017, %v1128
    %v1153 = vmul.f32 %v1019, %v1129
    %v1154 = vmul.f32 %v1021, %v1130
    %v1155 = vmul.f32 %v1023, %v1131
    %v1156 = vmul.f32 %v1025, %v1132
    %v1157 = vmul.f32 %v1027, %v1133
    %v1158 = vmul.f32 %v1029, %v1134
    %v1159 = vmul.f32 %v1031, %v1135
    %v1160 = vmul.f32 %v1033, %v1136
    %v1161 = vmul.f32 %v1035, %v1137
    %v1162 = vmul.f32 %v1037, %v1138
    %v1163 = vmul.f32 %v1039, %v1139
    %v1164 = vmul.f32 %v1041, %v1140
    %v1165 = vmul.f32 %v1043, %v1141
    %v1166 = vmul.f32 %v1045, %v1142
    %v1167 = vmul.f32 %v1047, %v1143
    %v1168 = vpack.c.bf16 %v1145, %v1144
    %v1169 = vpack.c.bf16 %v1146, %v1146
    %v1170 = vpack.c.bf16 %v1148, %v1147
    %v1171 = vpack.c.bf16 %v1149, %v1149
    %v1172 = vpack.c.bf16 %v1151, %v1150
    %v1173 = vpack.c.bf16 %v1152, %v1152
    %v1174 = vpack.c.bf16 %v1154, %v1153
    %v1175 = vpack.c.bf16 %v1155, %v1155
    %v1176 = vpack.c.bf16 %v1157, %v1156
    %v1177 = vpack.c.bf16 %v1158, %v1158
    %v1178 = vpack.c.bf16 %v1160, %v1159
    %v1179 = vpack.c.bf16 %v1161, %v1161
    %v1180 = vpack.c.bf16 %v1163, %v1162
    %v1181 = vpack.c.bf16 %v1164, %v1164
    %v1182 = vpack.c.bf16 %v1166, %v1165
    %v1183 = vpack.c.bf16 %v1167, %v1167
    %1184 = vrot.lane.b32.xlu0 %v346, 64
    %v1185 = vpop.permute.xlu0 %1184
    %1186 = vrot.lane.b32.xlu0 %v347, 64
    %v1187 = vpop.permute.xlu0 %1186
    %v1190 = vsel %vm902, %v1168, 0
    %v1193 = vsel %vm902, %v1169, 0
    %v1195 = vsel 0, 4294967295, 65535
    %v1196 = vsel %vm28, %v1195, 0
    %v1198 = vand.u32 %v1187, %v1196
    %1200 = vmatprep.subr.bf16.mxu0 0
    %1201 = vmatpush1.bf16.msra.mxu0 %v1185
    %1202 = vmatprep.subr.bf16.mxu0 0
    %1203 = vmatpush1.bf16.msra.mxu0 %v1198
    %1204 = vmatprep.subr.bf16.mxu0 0
    %1205 = vmatpush1.bf16.msra.mxu0 0
    %1206 = vmatprep.subr.bf16.mxu0 0
    %1207 = vmatpush1.bf16.msra.mxu0 0
    %1208 = vmatprep.subr.bf16.mxu0 0
    %1209 = vmatpush1.bf16.msra.mxu0 0
    %1210 = vmatprep.subr.bf16.mxu0 0
    %1211 = vmatpush1.bf16.msra.mxu0 0
    %1212 = vmatprep.subr.bf16.mxu0 0
    %1213 = vmatpush1.bf16.msra.mxu0 0
    %1214 = vmatprep.subr.bf16.mxu0 0
    %1215 = vmatpush1.bf16.msra.mxu0 0
    %1216 = vmatprep.subr.bf16.mxu0 0
    %1217 = vmatpush1.bf16.msra.mxu0 0
    %1218 = vmatprep.subr.bf16.mxu0 0
    %1219 = vmatpush1.bf16.msra.mxu0 0
    %1220 = vmatprep.subr.bf16.mxu0 0
    %1221 = vmatpush1.bf16.msra.mxu0 0
    %1222 = vmatprep.subr.bf16.mxu0 0
    %1223 = vmatpush1.bf16.msra.mxu0 0
    %1224 = vmatprep.subr.bf16.mxu0 0
    %1225 = vmatpush1.bf16.msra.mxu0 0
    %1226 = vmatprep.subr.bf16.mxu0 0
    %1227 = vmatpush1.bf16.msra.mxu0 0
    %1228 = vmatprep.subr.bf16.mxu0 0
    %1229 = vmatpush1.bf16.msra.mxu0 0
    %1230 = vmatprep.subr.bf16.mxu0 0
    %1231 = vmatpush1.bf16.msra.mxu0 0
    %1232 = vmatprep.mubr.bf16.mxu0 0
    %1233 = vmatmul.mubr.bf16.gmra.mrb[0].mxu0 %v1190
    %v1234 = vpop.f32.mrb[0].mxu0
    %v1235 = vadd.f32 0.0, %v1234
    %v1236 = vpop.f32.mrb[0].mxu0
    %v1237 = vpop.f32.mrb[0].mxu0
    %v1238 = vadd.f32 0.0, %v1237
    %v1239 = vpop.f32.mrb[0].mxu0
    %1240 = vmatprep.mubr.bf16.mxu0 0
    %1241 = vmatmul.mubr.bf16.gmra.mrb[0].mxu0 %v1193
    %v1242 = vpop.f32.mrb[0].mxu0
    %v1243 = vadd.f32 0.0, %v1242
    %v1244 = vpop.f32.mrb[0].mxu0
    %v1245 = vpop.f32.mrb[0].mxu0
    %v1246 = vpop.f32.mrb[0].mxu0
    %1247 = vdwg.mxu0
    %1248 = vrot.lane.b32.xlu0 %v352, 64
    %v1249 = vpop.permute.xlu0 %1248
    %1250 = vrot.lane.b32.xlu0 %v354, 64
    %v1251 = vpop.permute.xlu0 %1250
    %v1254 = vsel %vm902, %v1170, 0
    %v1257 = vsel %vm902, %v1171, 0
    %v1260 = vand.u32 %v1251, %v1196
    %1262 = vmatprep.subr.bf16.mxu0 0
    %1263 = vmatpush1.bf16.msra.mxu0 %v1249
    %1264 = vmatprep.subr.bf16.mxu0 0
    %1265 = vmatpush1.bf16.msra.mxu0 %v1260
    %1266 = vmatprep.subr.bf16.mxu0 0
    %1267 = vmatpush1.bf16.msra.mxu0 0
    %1268 = vmatprep.subr.bf16.mxu0 0
    %1269 = vmatpush1.bf16.msra.mxu0 0
    %1270 = vmatprep.subr.bf16.mxu0 0
    %1271 = vmatpush1.bf16.msra.mxu0 0
    %1272 = vmatprep.subr.bf16.mxu0 0
    %1273 = vmatpush1.bf16.msra.mxu0 0
    %1274 = vmatprep.subr.bf16.mxu0 0
    %1275 = vmatpush1.bf16.msra.mxu0 0
    %1276 = vmatprep.subr.bf16.mxu0 0
    %1277 = vmatpush1.bf16.msra.mxu0 0
    %1278 = vmatprep.subr.bf16.mxu0 0
    %1279 = vmatpush1.bf16.msra.mxu0 0
    %1280 = vmatprep.subr.bf16.mxu0 0
    %1281 = vmatpush1.bf16.msra.mxu0 0
    %1282 = vmatprep.subr.bf16.mxu0 0
    %1283 = vmatpush1.bf16.msra.mxu0 0
    %1284 = vmatprep.subr.bf16.mxu0 0
    %1285 = vmatpush1.bf16.msra.mxu0 0
    %1286 = vmatprep.subr.bf16.mxu0 0
    %1287 = vmatpush1.bf16.msra.mxu0 0
    %1288 = vmatprep.subr.bf16.mxu0 0
    %1289 = vmatpush1.bf16.msra.mxu0 0
    %1290 = vmatprep.subr.bf16.mxu0 0
    %1291 = vmatpush1.bf16.msra.mxu0 0
    %1292 = vmatprep.subr.bf16.mxu0 0
    %1293 = vmatpush1.bf16.msra.mxu0 0
    %1294 = vmatprep.mubr.bf16.mxu0 0
    %1295 = vmatmul.mubr.bf16.gmra.mrb[0].mxu0 %v1254
    %v1296 = vpop.f32.mrb[0].mxu0
    %v1297 = vadd.f32 0.0, %v1296
    %v1298 = vpop.f32.mrb[0].mxu0
    %v1299 = vpop.f32.mrb[0].mxu0
    %v1300 = vadd.f32 0.0, %v1299
    %v1301 = vpop.f32.mrb[0].mxu0
    %1302 = vmatprep.mubr.bf16.mxu0 0
    %1303 = vmatmul.mubr.bf16.gmra.mrb[0].mxu0 %v1257
    %v1304 = vpop.f32.mrb[0].mxu0
    %v1305 = vadd.f32 0.0, %v1304
    %v1306 = vpop.f32.mrb[0].mxu0
    %v1307 = vpop.f32.mrb[0].mxu0
    %v1308 = vpop.f32.mrb[0].mxu0
    %1309 = vdwg.mxu0
    %1310 = vrot.lane.b32.xlu0 %v356, 64
    %v1311 = vpop.permute.xlu0 %1310
    %1312 = vrot.lane.b32.xlu0 %v358, 64
    %v1313 = vpop.permute.xlu0 %1312
    %v1316 = vsel %vm902, %v1172, 0
    %v1319 = vsel %vm902, %v1173, 0
    %v1322 = vand.u32 %v1313, %v1196
    %1324 = vmatprep.subr.bf16.mxu0 0
    %1325 = vmatpush1.bf16.msra.mxu0 %v1311
    %1326 = vmatprep.subr.bf16.mxu0 0
    %1327 = vmatpush1.bf16.msra.mxu0 %v1322
    %1328 = vmatprep.subr.bf16.mxu0 0
    %1329 = vmatpush1.bf16.msra.mxu0 0
    %1330 = vmatprep.subr.bf16.mxu0 0
    %1331 = vmatpush1.bf16.msra.mxu0 0
    %1332 = vmatprep.subr.bf16.mxu0 0
    %1333 = vmatpush1.bf16.msra.mxu0 0
    %1334 = vmatprep.subr.bf16.mxu0 0
    %1335 = vmatpush1.bf16.msra.mxu0 0
    %1336 = vmatprep.subr.bf16.mxu0 0
    %1337 = vmatpush1.bf16.msra.mxu0 0
    %1338 = vmatprep.subr.bf16.mxu0 0
    %1339 = vmatpush1.bf16.msra.mxu0 0
    %1340 = vmatprep.subr.bf16.mxu0 0
    %1341 = vmatpush1.bf16.msra.mxu0 0
    %1342 = vmatprep.subr.bf16.mxu0 0
    %1343 = vmatpush1.bf16.msra.mxu0 0
    %1344 = vmatprep.subr.bf16.mxu0 0
    %1345 = vmatpush1.bf16.msra.mxu0 0
    %1346 = vmatprep.subr.bf16.mxu0 0
    %1347 = vmatpush1.bf16.msra.mxu0 0
    %1348 = vmatprep.subr.bf16.mxu0 0
    %1349 = vmatpush1.bf16.msra.mxu0 0
    %1350 = vmatprep.subr.bf16.mxu0 0
    %1351 = vmatpush1.bf16.msra.mxu0 0
    %1352 = vmatprep.subr.bf16.mxu0 0
    %1353 = vmatpush1.bf16.msra.mxu0 0
    %1354 = vmatprep.subr.bf16.mxu0 0
    %1355 = vmatpush1.bf16.msra.mxu0 0
    %1356 = vmatprep.mubr.bf16.mxu0 0
    %1357 = vmatmul.mubr.bf16.gmra.mrb[0].mxu0 %v1316
    %v1358 = vpop.f32.mrb[0].mxu0
    %v1359 = vadd.f32 0.0, %v1358
    %v1360 = vpop.f32.mrb[0].mxu0
    %v1361 = vpop.f32.mrb[0].mxu0
    %v1362 = vadd.f32 0.0, %v1361
    %v1363 = vpop.f32.mrb[0].mxu0
    %1364 = vmatprep.mubr.bf16.mxu0 0
    %1365 = vmatmul.mubr.bf16.gmra.mrb[0].mxu0 %v1319
    %v1366 = vpop.f32.mrb[0].mxu0
    %v1367 = vadd.f32 0.0, %v1366
    %v1368 = vpop.f32.mrb[0].mxu0
    %v1369 = vpop.f32.mrb[0].mxu0
    %v1370 = vpop.f32.mrb[0].mxu0
    %1371 = vdwg.mxu0
    %1372 = vrot.lane.b32.xlu0 %v360, 64
    %v1373 = vpop.permute.xlu0 %1372
    %1374 = vrot.lane.b32.xlu0 %v362, 64
    %v1375 = vpop.permute.xlu0 %1374
    %v1378 = vsel %vm902, %v1174, 0
    %v1381 = vsel %vm902, %v1175, 0
    %v1384 = vand.u32 %v1375, %v1196
    %1386 = vmatprep.subr.bf16.mxu0 0
    %1387 = vmatpush1.bf16.msra.mxu0 %v1373
    %1388 = vmatprep.subr.bf16.mxu0 0
    %1389 = vmatpush1.bf16.msra.mxu0 %v1384
    %1390 = vmatprep.subr.bf16.mxu0 0
    %1391 = vmatpush1.bf16.msra.mxu0 0
    %1392 = vmatprep.subr.bf16.mxu0 0
    %1393 = vmatpush1.bf16.msra.mxu0 0
    %1394 = vmatprep.subr.bf16.mxu0 0
    %1395 = vmatpush1.bf16.msra.mxu0 0
    %1396 = vmatprep.subr.bf16.mxu0 0
    %1397 = vmatpush1.bf16.msra.mxu0 0
    %1398 = vmatprep.subr.bf16.mxu0 0
    %1399 = vmatpush1.bf16.msra.mxu0 0
    %1400 = vmatprep.subr.bf16.mxu0 0
    %1401 = vmatpush1.bf16.msra.mxu0 0
    %1402 = vmatprep.subr.bf16.mxu0 0
    %1403 = vmatpush1.bf16.msra.mxu0 0
    %1404 = vmatprep.subr.bf16.mxu0 0
    %1405 = vmatpush1.bf16.msra.mxu0 0
    %1406 = vmatprep.subr.bf16.mxu0 0
    %1407 = vmatpush1.bf16.msra.mxu0 0
    %1408 = vmatprep.subr.bf16.mxu0 0
    %1409 = vmatpush1.bf16.msra.mxu0 0
    %1410 = vmatprep.subr.bf16.mxu0 0
    %1411 = vmatpush1.bf16.msra.mxu0 0
    %1412 = vmatprep.subr.bf16.mxu0 0
    %1413 = vmatpush1.bf16.msra.mxu0 0
    %1414 = vmatprep.subr.bf16.mxu0 0
    %1415 = vmatpush1.bf16.msra.mxu0 0
    %1416 = vmatprep.subr.bf16.mxu0 0
    %1417 = vmatpush1.bf16.msra.mxu0 0
    %1418 = vmatprep.mubr.bf16.mxu0 0
    %1419 = vmatmul.mubr.bf16.gmra.mrb[0].mxu0 %v1378
    %v1420 = vpop.f32.mrb[0].mxu0
    %v1421 = vadd.f32 0.0, %v1420
    %v1422 = vpop.f32.mrb[0].mxu0
    %v1423 = vpop.f32.mrb[0].mxu0
    %v1424 = vadd.f32 0.0, %v1423
    %v1425 = vpop.f32.mrb[0].mxu0
    %1426 = vmatprep.mubr.bf16.mxu0 0
    %1427 = vmatmul.mubr.bf16.gmra.mrb[0].mxu0 %v1381
    %v1428 = vpop.f32.mrb[0].mxu0
    %v1429 = vadd.f32 0.0, %v1428
    %v1430 = vpop.f32.mrb[0].mxu0
    %v1431 = vpop.f32.mrb[0].mxu0
    %v1432 = vpop.f32.mrb[0].mxu0
    %1433 = vdwg.mxu0
    %1434 = vrot.lane.b32.xlu0 %v375, 64
    %v1435 = vpop.permute.xlu0 %1434
    %1436 = vrot.lane.b32.xlu0 %v376, 64
    %v1437 = vpop.permute.xlu0 %1436
    %v1440 = vsel %vm902, %v1176, 0
    %v1443 = vsel %vm902, %v1177, 0
    %v1446 = vand.u32 %v1437, %v1196
    %1448 = vmatprep.subr.bf16.mxu0 0
    %1449 = vmatpush1.bf16.msra.mxu0 %v1435
    %1450 = vmatprep.subr.bf16.mxu0 0
    %1451 = vmatpush1.bf16.msra.mxu0 %v1446
    %1452 = vmatprep.subr.bf16.mxu0 0
    %1453 = vmatpush1.bf16.msra.mxu0 0
    %1454 = vmatprep.subr.bf16.mxu0 0
    %1455 = vmatpush1.bf16.msra.mxu0 0
    %1456 = vmatprep.subr.bf16.mxu0 0
    %1457 = vmatpush1.bf16.msra.mxu0 0
    %1458 = vmatprep.subr.bf16.mxu0 0
    %1459 = vmatpush1.bf16.msra.mxu0 0
    %1460 = vmatprep.subr.bf16.mxu0 0
    %1461 = vmatpush1.bf16.msra.mxu0 0
    %1462 = vmatprep.subr.bf16.mxu0 0
    %1463 = vmatpush1.bf16.msra.mxu0 0
    %1464 = vmatprep.subr.bf16.mxu0 0
    %1465 = vmatpush1.bf16.msra.mxu0 0
    %1466 = vmatprep.subr.bf16.mxu0 0
    %1467 = vmatpush1.bf16.msra.mxu0 0
    %1468 = vmatprep.subr.bf16.mxu0 0
    %1469 = vmatpush1.bf16.msra.mxu0 0
    %1470 = vmatprep.subr.bf16.mxu0 0
    %1471 = vmatpush1.bf16.msra.mxu0 0
    %1472 = vmatprep.subr.bf16.mxu0 0
    %1473 = vmatpush1.bf16.msra.mxu0 0
    %1474 = vmatprep.subr.bf16.mxu0 0
    %1475 = vmatpush1.bf16.msra.mxu0 0
    %1476 = vmatprep.subr.bf16.mxu0 0
    %1477 = vmatpush1.bf16.msra.mxu0 0
    %1478 = vmatprep.subr.bf16.mxu0 0
    %1479 = vmatpush1.bf16.msra.mxu0 0
    %1480 = vmatprep.mubr.bf16.mxu0 0
    %1481 = vmatmul.mubr.bf16.gmra.mrb[0].mxu0 %v1440
    %v1482 = vpop.f32.mrb[0].mxu0
    %v1483 = vadd.f32 0.0, %v1482
    %v1484 = vpop.f32.mrb[0].mxu0
    %v1485 = vpop.f32.mrb[0].mxu0
    %v1486 = vadd.f32 0.0, %v1485
    %v1487 = vpop.f32.mrb[0].mxu0
    %1488 = vmatprep.mubr.bf16.mxu0 0
    %1489 = vmatmul.mubr.bf16.gmra.mrb[0].mxu0 %v1443
    %v1490 = vpop.f32.mrb[0].mxu0
    %v1491 = vadd.f32 0.0, %v1490
    %v1492 = vpop.f32.mrb[0].mxu0
    %v1493 = vpop.f32.mrb[0].mxu0
    %v1494 = vpop.f32.mrb[0].mxu0
    %1495 = vdwg.mxu0
    %1496 = vrot.lane.b32.xlu0 %v379, 64
    %v1497 = vpop.permute.xlu0 %1496
    %1498 = vrot.lane.b32.xlu0 %v381, 64
    %v1499 = vpop.permute.xlu0 %1498
    %v1502 = vsel %vm902, %v1178, 0
    %v1505 = vsel %vm902, %v1179, 0
    %v1508 = vand.u32 %v1499, %v1196
    %1510 = vmatprep.subr.bf16.mxu0 0
    %1511 = vmatpush1.bf16.msra.mxu0 %v1497
    %1512 = vmatprep.subr.bf16.mxu0 0
    %1513 = vmatpush1.bf16.msra.mxu0 %v1508
    %1514 = vmatprep.subr.bf16.mxu0 0
    %1515 = vmatpush1.bf16.msra.mxu0 0
    %1516 = vmatprep.subr.bf16.mxu0 0
    %1517 = vmatpush1.bf16.msra.mxu0 0
    %1518 = vmatprep.subr.bf16.mxu0 0
    %1519 = vmatpush1.bf16.msra.mxu0 0
    %1520 = vmatprep.subr.bf16.mxu0 0
    %1521 = vmatpush1.bf16.msra.mxu0 0
    %1522 = vmatprep.subr.bf16.mxu0 0
    %1523 = vmatpush1.bf16.msra.mxu0 0
    %1524 = vmatprep.subr.bf16.mxu0 0
    %1525 = vmatpush1.bf16.msra.mxu0 0
    %1526 = vmatprep.subr.bf16.mxu0 0
    %1527 = vmatpush1.bf16.msra.mxu0 0
    %1528 = vmatprep.subr.bf16.mxu0 0
    %1529 = vmatpush1.bf16.msra.mxu0 0
    %1530 = vmatprep.subr.bf16.mxu0 0
    %1531 = vmatpush1.bf16.msra.mxu0 0
    %1532 = vmatprep.subr.bf16.mxu0 0
    %1533 = vmatpush1.bf16.msra.mxu0 0
    %1534 = vmatprep.subr.bf16.mxu0 0
    %1535 = vmatpush1.bf16.msra.mxu0 0
    %1536 = vmatprep.subr.bf16.mxu0 0
    %1537 = vmatpush1.bf16.msra.mxu0 0
    %1538 = vmatprep.subr.bf16.mxu0 0
    %1539 = vmatpush1.bf16.msra.mxu0 0
    %1540 = vmatprep.subr.bf16.mxu0 0
    %1541 = vmatpush1.bf16.msra.mxu0 0
    %1542 = vmatprep.mubr.bf16.mxu0 0
    %1543 = vmatmul.mubr.bf16.gmra.mrb[0].mxu0 %v1502
    %v1544 = vpop.f32.mrb[0].mxu0
    %v1545 = vadd.f32 0.0, %v1544
    %v1546 = vpop.f32.mrb[0].mxu0
    %v1547 = vpop.f32.mrb[0].mxu0
    %v1548 = vadd.f32 0.0, %v1547
    %v1549 = vpop.f32.mrb[0].mxu0
    %1550 = vmatprep.mubr.bf16.mxu0 0
    %1551 = vmatmul.mubr.bf16.gmra.mrb[0].mxu0 %v1505
    %v1552 = vpop.f32.mrb[0].mxu0
    %v1553 = vadd.f32 0.0, %v1552
    %v1554 = vpop.f32.mrb[0].mxu0
    %v1555 = vpop.f32.mrb[0].mxu0
    %v1556 = vpop.f32.mrb[0].mxu0
    %1557 = vdwg.mxu0
    %1558 = vrot.lane.b32.xlu0 %v383, 64
    %v1559 = vpop.permute.xlu0 %1558
    %1560 = vrot.lane.b32.xlu0 %v385, 64
    %v1561 = vpop.permute.xlu0 %1560
    %v1564 = vsel %vm902, %v1180, 0
    %v1567 = vsel %vm902, %v1181, 0
    %v1570 = vand.u32 %v1561, %v1196
    %1572 = vmatprep.subr.bf16.mxu0 0
    %1573 = vmatpush1.bf16.msra.mxu0 %v1559
    %1574 = vmatprep.subr.bf16.mxu0 0
    %1575 = vmatpush1.bf16.msra.mxu0 %v1570
    %1576 = vmatprep.subr.bf16.mxu0 0
    %1577 = vmatpush1.bf16.msra.mxu0 0
    %1578 = vmatprep.subr.bf16.mxu0 0
    %1579 = vmatpush1.bf16.msra.mxu0 0
    %1580 = vmatprep.subr.bf16.mxu0 0
    %1581 = vmatpush1.bf16.msra.mxu0 0
    %1582 = vmatprep.subr.bf16.mxu0 0
    %1583 = vmatpush1.bf16.msra.mxu0 0
    %1584 = vmatprep.subr.bf16.mxu0 0
    %1585 = vmatpush1.bf16.msra.mxu0 0
    %1586 = vmatprep.subr.bf16.mxu0 0
    %1587 = vmatpush1.bf16.msra.mxu0 0
    %1588 = vmatprep.subr.bf16.mxu0 0
    %1589 = vmatpush1.bf16.msra.mxu0 0
    %1590 = vmatprep.subr.bf16.mxu0 0
    %1591 = vmatpush1.bf16.msra.mxu0 0
    %1592 = vmatprep.subr.bf16.mxu0 0
    %1593 = vmatpush1.bf16.msra.mxu0 0
    %1594 = vmatprep.subr.bf16.mxu0 0
    %1595 = vmatpush1.bf16.msra.mxu0 0
    %1596 = vmatprep.subr.bf16.mxu0 0
    %1597 = vmatpush1.bf16.msra.mxu0 0
    %1598 = vmatprep.subr.bf16.mxu0 0
    %1599 = vmatpush1.bf16.msra.mxu0 0
    %1600 = vmatprep.subr.bf16.mxu0 0
    %1601 = vmatpush1.bf16.msra.mxu0 0
    %1602 = vmatprep.subr.bf16.mxu0 0
    %1603 = vmatpush1.bf16.msra.mxu0 0
    %1604 = vmatprep.mubr.bf16.mxu0 0
    %1605 = vmatmul.mubr.bf16.gmra.mrb[0].mxu0 %v1564
    %v1606 = vpop.f32.mrb[0].mxu0
    %v1607 = vadd.f32 0.0, %v1606
    %v1608 = vpop.f32.mrb[0].mxu0
    %v1609 = vpop.f32.mrb[0].mxu0
    %v1610 = vadd.f32 0.0, %v1609
    %v1611 = vpop.f32.mrb[0].mxu0
    %1612 = vmatprep.mubr.bf16.mxu0 0
    %1613 = vmatmul.mubr.bf16.gmra.mrb[0].mxu0 %v1567
    %v1614 = vpop.f32.mrb[0].mxu0
    %v1615 = vadd.f32 0.0, %v1614
    %v1616 = vpop.f32.mrb[0].mxu0
    %v1617 = vpop.f32.mrb[0].mxu0
    %v1618 = vpop.f32.mrb[0].mxu0
    %1619 = vdwg.mxu0
    %1620 = vrot.lane.b32.xlu0 %v387, 64
    %v1621 = vpop.permute.xlu0 %1620
    %1622 = vrot.lane.b32.xlu0 %v389, 64
    %v1623 = vpop.permute.xlu0 %1622
    %v1626 = vsel %vm902, %v1182, 0
    %v1629 = vsel %vm902, %v1183, 0
    %v1632 = vand.u32 %v1623, %v1196
    %1634 = vmatprep.subr.bf16.mxu0 0
    %1635 = vmatpush1.bf16.msra.mxu0 %v1621
    %1636 = vmatprep.subr.bf16.mxu0 0
    %1637 = vmatpush1.bf16.msra.mxu0 %v1632
    %1638 = vmatprep.subr.bf16.mxu0 0
    %1639 = vmatpush1.bf16.msra.mxu0 0
    %1640 = vmatprep.subr.bf16.mxu0 0
    %1641 = vmatpush1.bf16.msra.mxu0 0
    %1642 = vmatprep.subr.bf16.mxu0 0
    %1643 = vmatpush1.bf16.msra.mxu0 0
    %1644 = vmatprep.subr.bf16.mxu0 0
    %1645 = vmatpush1.bf16.msra.mxu0 0
    %1646 = vmatprep.subr.bf16.mxu0 0
    %1647 = vmatpush1.bf16.msra.mxu0 0
    %1648 = vmatprep.subr.bf16.mxu0 0
    %1649 = vmatpush1.bf16.msra.mxu0 0
    %1650 = vmatprep.subr.bf16.mxu0 0
    %1651 = vmatpush1.bf16.msra.mxu0 0
    %1652 = vmatprep.subr.bf16.mxu0 0
    %1653 = vmatpush1.bf16.msra.mxu0 0
    %1654 = vmatprep.subr.bf16.mxu0 0
    %1655 = vmatpush1.bf16.msra.mxu0 0
    %1656 = vmatprep.subr.bf16.mxu0 0
    %1657 = vmatpush1.bf16.msra.mxu0 0
    %1658 = vmatprep.subr.bf16.mxu0 0
    %1659 = vmatpush1.bf16.msra.mxu0 0
    %1660 = vmatprep.subr.bf16.mxu0 0
    %1661 = vmatpush1.bf16.msra.mxu0 0
    %1662 = vmatprep.subr.bf16.mxu0 0
    %1663 = vmatpush1.bf16.msra.mxu0 0
    %1664 = vmatprep.subr.bf16.mxu0 0
    %1665 = vmatpush1.bf16.msra.mxu0 0
    %1666 = vmatprep.mubr.bf16.mxu0 0
    %1667 = vmatmul.mubr.bf16.gmra.mrb[0].mxu0 %v1626
    %v1668 = vpop.f32.mrb[0].mxu0
    %v1669 = vadd.f32 0.0, %v1668
    %v1670 = vpop.f32.mrb[0].mxu0
    %v1671 = vpop.f32.mrb[0].mxu0
    %v1672 = vadd.f32 0.0, %v1671
    %v1673 = vpop.f32.mrb[0].mxu0
    %1674 = vmatprep.mubr.bf16.mxu0 0
    %1675 = vmatmul.mubr.bf16.gmra.mrb[0].mxu0 %v1629
    %v1676 = vpop.f32.mrb[0].mxu0
    %v1677 = vadd.f32 0.0, %v1676
    %v1678 = vpop.f32.mrb[0].mxu0
    %v1679 = vpop.f32.mrb[0].mxu0
    %v1680 = vpop.f32.mrb[0].mxu0
    %1681 = vdwg.mxu0
    %1685 = vrot.lane.b32.xlu0 %v1297, 8
    %v1686 = vpop.permute.xlu0 %1685
    %1687 = vrot.lane.b32.xlu0 %v1300, 8
    %v1688 = vpop.permute.xlu0 %1687
    %1689 = vrot.lane.b32.xlu0 %v1305, 8
    %v1690 = vpop.permute.xlu0 %1689
    %1697 = vrot.lane.b32.xlu0 %v1359, 16
    %v1698 = vpop.permute.xlu0 %1697
    %1699 = vrot.lane.b32.xlu0 %v1362, 16
    %v1700 = vpop.permute.xlu0 %1699
    %1701 = vrot.lane.b32.xlu0 %v1367, 16
    %v1702 = vpop.permute.xlu0 %1701
    %1709 = vrot.lane.b32.xlu0 %v1421, 24
    %v1710 = vpop.permute.xlu0 %1709
    %1711 = vrot.lane.b32.xlu0 %v1424, 24
    %v1712 = vpop.permute.xlu0 %1711
    %1713 = vrot.lane.b32.xlu0 %v1429, 24
    %v1714 = vpop.permute.xlu0 %1713
    %v1718 = vsel %vm394, %v1235, %v1686
    %v1719 = vsel %vm394, %v1238, %v1688
    %v1720 = vsel %vm394, %v1243, %v1690
    %vm1721 = vcmask 130048
    %v1722 = vsel %vm1721, %v1718, %v1698
    %v1723 = vsel %vm1721, %v1719, %v1700
    %v1724 = vsel %vm1721, %v1720, %v1702
    %vm1725 = vcmask 195584
    %v1726 = vsel %vm1725, %v1722, %v1710
    %v1727 = vsel %vm1725, %v1723, %v1712
    %v1728 = vsel %vm1725, %v1724, %v1714
    %1732 = vrot.lane.b32.xlu0 %v1545, 8
    %v1733 = vpop.permute.xlu0 %1732
    %1734 = vrot.lane.b32.xlu0 %v1548, 8
    %v1735 = vpop.permute.xlu0 %1734
    %1736 = vrot.lane.b32.xlu0 %v1553, 8
    %v1737 = vpop.permute.xlu0 %1736
    %1744 = vrot.lane.b32.xlu0 %v1607, 16
    %v1745 = vpop.permute.xlu0 %1744
    %1746 = vrot.lane.b32.xlu0 %v1610, 16
    %v1747 = vpop.permute.xlu0 %1746
    %1748 = vrot.lane.b32.xlu0 %v1615, 16
    %v1749 = vpop.permute.xlu0 %1748
    %1756 = vrot.lane.b32.xlu0 %v1669, 24
    %v1757 = vpop.permute.xlu0 %1756
    %1758 = vrot.lane.b32.xlu0 %v1672, 24
    %v1759 = vpop.permute.xlu0 %1758
    %1760 = vrot.lane.b32.xlu0 %v1677, 24
    %v1761 = vpop.permute.xlu0 %1760
    %v1765 = vsel %vm394, %v1483, %v1733
    %v1766 = vsel %vm394, %v1486, %v1735
    %v1767 = vsel %vm394, %v1491, %v1737
    %v1768 = vsel %vm1721, %v1765, %v1745
    %v1769 = vsel %vm1721, %v1766, %v1747
    %v1770 = vsel %vm1721, %v1767, %v1749
    %v1771 = vsel %vm1725, %v1768, %v1757
    %v1772 = vsel %vm1725, %v1769, %v1759
    %v1773 = vsel %vm1725, %v1770, %v1761
    %v1777 = vrot.slane %v1771, 7
    %v1778 = vrot.slane %v1772, 7
    %v1779 = vsel %vm28, %v1777, %v1778
    %v1780 = vrot.slane %v1773, 7
    %v1781 = vsel %vm28, %v1778, %v1780
    %v1785 = vsel %vm28, %v1728, %v1777
    %v1786 = vpack.c.bf16 %v1727, %v1726
    %v1787 = vpack.c.bf16 %v1779, %v1785
    %v1788 = vpack.c.bf16 %v1781, %v1781
    %v1789 = vlaneseq
    %v1790 = vshrl.u32 %v1789, 7
    %v1791 = vsub.s32 0, %v1790
    %v1792 = vrot.slane %v171, %v1791
    %v1797 = vunpack.c.l.b16 %v144
    %v1798 = vunpack.c.l.b16 %v145
    %v1799 = vunpack.c.l.b16 %v146
    %v1800 = vunpack.c.l.b16 %v147
    %v1801 = vpack.c.b16 %v1798, %v1797
    %v1802 = vpack.c.b16 %v1800, %v1799
    %v1806 = vsel %vm176, %v1786, 0
    %v1809 = vsel %vm176, %v1787, 0
    %v1812 = vsel %vm176, %v1788, 0
    %1814 = vmatprep.subr.bf16.mxu0 0
    %1815 = vmatpush1.bf16.msra.mxu0 %v1801
    %1816 = vmatprep.subr.bf16.mxu0 0
    %1817 = vmatpush1.bf16.msra.mxu0 %v1802
    %1818 = vmatprep.subr.bf16.mxu0 0
    %1819 = vmatpush1.bf16.msra.mxu0 0
    %1820 = vmatprep.subr.bf16.mxu0 0
    %1821 = vmatpush1.bf16.msra.mxu0 0
    %1822 = vmatprep.subr.bf16.mxu0 0
    %1823 = vmatpush1.bf16.msra.mxu0 0
    %1824 = vmatprep.subr.bf16.mxu0 0
    %1825 = vmatpush1.bf16.msra.mxu0 0
    %1826 = vmatprep.subr.bf16.mxu0 0
    %1827 = vmatpush1.bf16.msra.mxu0 0
    %1828 = vmatprep.subr.bf16.mxu0 0
    %1829 = vmatpush1.bf16.msra.mxu0 0
    %1830 = vmatprep.subr.bf16.mxu0 0
    %1831 = vmatpush1.bf16.msra.mxu0 0
    %1832 = vmatprep.subr.bf16.mxu0 0
    %1833 = vmatpush1.bf16.msra.mxu0 0
    %1834 = vmatprep.subr.bf16.mxu0 0
    %1835 = vmatpush1.bf16.msra.mxu0 0
    %1836 = vmatprep.subr.bf16.mxu0 0
    %1837 = vmatpush1.bf16.msra.mxu0 0
    %1838 = vmatprep.subr.bf16.mxu0 0
    %1839 = vmatpush1.bf16.msra.mxu0 0
    %1840 = vmatprep.subr.bf16.mxu0 0
    %1841 = vmatpush1.bf16.msra.mxu0 0
    %1842 = vmatprep.subr.bf16.mxu0 0
    %1843 = vmatpush1.bf16.msra.mxu0 0
    %1844 = vmatprep.subr.bf16.mxu0 0
    %1845 = vmatpush1.bf16.msra.mxu0 0
    %1846 = vmatprep.mubr.bf16.mxu0 0
    %1847 = vmatmul.mubr.bf16.gmra.mrb[0].mxu0 %v1806
    %v1848 = vpop.f32.mrb[0].mxu0
    %v1849 = vadd.f32 %v1792, %v1848
    %v1850 = vpop.f32.mrb[0].mxu0
    %v1851 = vpop.f32.mrb[0].mxu0
    %v1852 = vadd.f32 %v1792, %v1851
    %v1853 = vpop.f32.mrb[0].mxu0
    %1854 = vmatprep.mubr.bf16.mxu0 0
    %1855 = vmatmul.mubr.bf16.gmra.mrb[0].mxu0 %v1809
    %v1856 = vpop.f32.mrb[0].mxu0
    %v1857 = vadd.f32 %v1792, %v1856
    %v1858 = vpop.f32.mrb[0].mxu0
    %v1859 = vpop.f32.mrb[0].mxu0
    %v1860 = vadd.f32 %v1792, %v1859
    %v1861 = vpop.f32.mrb[0].mxu0
    %1862 = vmatprep.mubr.bf16.mxu0 0
    %1863 = vmatmul.mubr.bf16.gmra.mrb[0].mxu0 %v1812
    %v1864 = vpop.f32.mrb[0].mxu0
    %v1865 = vadd.f32 %v1792, %v1864
    %v1866 = vpop.f32.mrb[0].mxu0
    %v1867 = vpop.f32.mrb[0].mxu0
    %v1868 = vpop.f32.mrb[0].mxu0
    %1869 = vdwg.mxu0
    %v1870 = vadd.f32 %v119, %v1849
    %v1871 = vadd.f32 %v122, %v1852
    %v1872 = vadd.f32 %v127, %v1857
    %v1873 = vadd.f32 %v130, %v1860
    %v1874 = vadd.f32 %v135, %v1865
    %v1875 = vsel %vm176, %v1870, 0.0
    %1876 = vadd.xlane.f32.xlu0 %v1875
    %v1877 = vpop.xlane.xlu0 %1876
    %v1878 = vsel %vm176, %v1871, 0.0
    %1879 = vadd.xlane.f32.xlu0 %v1878
    %v1880 = vpop.xlane.xlu0 %1879
    %v1881 = vsel %vm176, %v1872, 0.0
    %1882 = vadd.xlane.f32.xlu0 %v1881
    %v1883 = vpop.xlane.xlu0 %1882
    %v1884 = vsel %vm176, %v1873, 0.0
    %1885 = vadd.xlane.f32.xlu0 %v1884
    %v1886 = vpop.xlane.xlu0 %1885
    %v1887 = vsel %vm189, %v1874, 0.0
    %1888 = vadd.xlane.f32.xlu0 %v1887
    %v1889 = vpop.xlane.xlu0 %1888
    %v1890 = vmul.f32 %v1877, %v193
    %v1891 = vmul.f32 %v1880, %v193
    %v1892 = vmul.f32 %v1883, %v193
    %v1893 = vmul.f32 %v1886, %v193
    %v1894 = vmul.f32 %v1889, %v193
    %v1895 = vsub.f32 %v1870, %v1890
    %v1896 = vsub.f32 %v1871, %v1891
    %v1897 = vsub.f32 %v1872, %v1892
    %v1898 = vsub.f32 %v1873, %v1893
    %v1899 = vsub.f32 %v1874, %v1894
    %v1900 = vmul.f32 %v1895, %v1895
    %v1901 = vmul.f32 %v1896, %v1896
    %v1902 = vmul.f32 %v1897, %v1897
    %v1903 = vmul.f32 %v1898, %v1898
    %v1904 = vmul.f32 %v1899, %v1899
    %v1905 = vsel %vm176, %v1900, 0.0
    %1906 = vadd.xlane.f32.xlu0 %v1905
    %v1907 = vpop.xlane.xlu0 %1906
    %v1908 = vsel %vm176, %v1901, 0.0
    %1909 = vadd.xlane.f32.xlu0 %v1908
    %v1910 = vpop.xlane.xlu0 %1909
    %v1911 = vsel %vm176, %v1902, 0.0
    %1912 = vadd.xlane.f32.xlu0 %v1911
    %v1913 = vpop.xlane.xlu0 %1912
    %v1914 = vsel %vm176, %v1903, 0.0
    %1915 = vadd.xlane.f32.xlu0 %v1914
    %v1916 = vpop.xlane.xlu0 %1915
    %v1917 = vsel %vm189, %v1904, 0.0
    %1918 = vadd.xlane.f32.xlu0 %v1917
    %v1919 = vpop.xlane.xlu0 %1918
    %v1920 = vmul.f32 %v1907, %v193
    %v1921 = vmul.f32 %v1910, %v193
    %v1922 = vmul.f32 %v1913, %v193
    %v1923 = vmul.f32 %v1916, %v193
    %v1924 = vmul.f32 %v1919, %v193
    %v1925 = vadd.f32 %v1920, 1e-06
    %v1926 = vadd.f32 %v1921, 1e-06
    %v1927 = vadd.f32 %v1922, 1e-06
    %v1928 = vadd.f32 %v1923, 1e-06
    %v1929 = vadd.f32 %v1924, 1e-06
    %v1930 = vrsqrt.pop %v1925
    %v1931 = vrsqrt.pop %v1926
    %v1932 = vrsqrt.pop %v1927
    %v1933 = vrsqrt.pop %v1928
    %v1934 = vrsqrt.pop %v1929
    %v1935 = vmul.f32 %v1895, %v1930
    %v1936 = vmul.f32 %v1896, %v1931
    %v1937 = vmul.f32 %v1897, %v1932
    %v1938 = vmul.f32 %v1898, %v1933
    %v1939 = vmul.f32 %v1899, %v1934
    %v1940 = vlaneseq
    %v1941 = vshrl.u32 %v1940, 7
    %v1942 = vsub.s32 0, %v1941
    %v1943 = vrot.slane %v172, %v1942
    %v1944 = vmul.f32 %v1935, %v1943
    %v1945 = vmul.f32 %v1936, %v1943
    %v1946 = vmul.f32 %v1937, %v1943
    %v1947 = vmul.f32 %v1938, %v1943
    %v1948 = vmul.f32 %v1939, %v1943
    %v1949 = vlaneseq
    %v1950 = vshrl.u32 %v1949, 7
    %v1951 = vsub.s32 0, %v1950
    %v1952 = vrot.slane %v173, %v1951
    %v1953 = vadd.f32 %v1944, %v1952
    %v1954 = vadd.f32 %v1945, %v1952
    %v1955 = vadd.f32 %v1946, %v1952
    %v1956 = vadd.f32 %v1947, %v1952
    %v1957 = vadd.f32 %v1948, %v1952
    %v1958 = vpack.c.bf16 %v1954, %v1953
    %v1959 = vpack.c.bf16 %v1956, %v1955
    %v1960 = vpack.c.bf16 %v1957, %v1957
    %v1961 = vlaneseq
    %v1962 = vshrl.u32 %v1961, 7
    %v1963 = vsub.s32 0, %v1962
    %v1964 = vrot.slane %v174, %v1963
    %v1969 = vunpack.c.l.b16 %v148
    %v1970 = vunpack.c.l.b16 %v149
    %v1971 = vunpack.c.l.b16 %v150
    %v1972 = vunpack.c.l.b16 %v151
    %v1973 = vpack.c.b16 %v1970, %v1969
    %v1974 = vpack.c.b16 %v1972, %v1971
    %v1978 = vsel %vm176, %v1958, 0
    %v1981 = vsel %vm176, %v1959, 0
    %v1984 = vsel %vm176, %v1960, 0
    %1986 = vmatprep.subr.bf16.mxu0 0
    %1987 = vmatpush1.bf16.msra.mxu0 %v1973
    %1988 = vmatprep.subr.bf16.mxu0 0
    %1989 = vmatpush1.bf16.msra.mxu0 %v1974
    %1990 = vmatprep.subr.bf16.mxu0 0
    %1991 = vmatpush1.bf16.msra.mxu0 0
    %1992 = vmatprep.subr.bf16.mxu0 0
    %1993 = vmatpush1.bf16.msra.mxu0 0
    %1994 = vmatprep.subr.bf16.mxu0 0
    %1995 = vmatpush1.bf16.msra.mxu0 0
    %1996 = vmatprep.subr.bf16.mxu0 0
    %1997 = vmatpush1.bf16.msra.mxu0 0
    %1998 = vmatprep.subr.bf16.mxu0 0
    %1999 = vmatpush1.bf16.msra.mxu0 0
    %2000 = vmatprep.subr.bf16.mxu0 0
    %2001 = vmatpush1.bf16.msra.mxu0 0
    %2002 = vmatprep.subr.bf16.mxu0 0
    %2003 = vmatpush1.bf16.msra.mxu0 0
    %2004 = vmatprep.subr.bf16.mxu0 0
    %2005 = vmatpush1.bf16.msra.mxu0 0
    %2006 = vmatprep.subr.bf16.mxu0 0
    %2007 = vmatpush1.bf16.msra.mxu0 0
    %2008 = vmatprep.subr.bf16.mxu0 0
    %2009 = vmatpush1.bf16.msra.mxu0 0
    %2010 = vmatprep.subr.bf16.mxu0 0
    %2011 = vmatpush1.bf16.msra.mxu0 0
    %2012 = vmatprep.subr.bf16.mxu0 0
    %2013 = vmatpush1.bf16.msra.mxu0 0
    %2014 = vmatprep.subr.bf16.mxu0 0
    %2015 = vmatpush1.bf16.msra.mxu0 0
    %2016 = vmatprep.subr.bf16.mxu0 0
    %2017 = vmatpush1.bf16.msra.mxu0 0
    %2018 = vmatprep.mubr.bf16.mxu0 0
    %2019 = vmatmul.mubr.bf16.gmra.mrb[0].mxu0 %v1978
    %v2020 = vpop.f32.mrb[0].mxu0
    %v2021 = vadd.f32 %v1964, %v2020
    %v2022 = vpop.f32.mrb[0].mxu0
    %v2023 = vpop.f32.mrb[0].mxu0
    %v2024 = vadd.f32 %v1964, %v2023
    %v2025 = vpop.f32.mrb[0].mxu0
    %2026 = vmatprep.mubr.bf16.mxu0 0
    %2027 = vmatmul.mubr.bf16.gmra.mrb[0].mxu0 %v1981
    %v2028 = vpop.f32.mrb[0].mxu0
    %v2029 = vadd.f32 %v1964, %v2028
    %v2030 = vpop.f32.mrb[0].mxu0
    %v2031 = vpop.f32.mrb[0].mxu0
    %v2032 = vadd.f32 %v1964, %v2031
    %v2033 = vpop.f32.mrb[0].mxu0
    %2034 = vmatprep.mubr.bf16.mxu0 0
    %2035 = vmatmul.mubr.bf16.gmra.mrb[0].mxu0 %v1984
    %v2036 = vpop.f32.mrb[0].mxu0
    %v2037 = vadd.f32 %v1964, %v2036
    %v2038 = vpop.f32.mrb[0].mxu0
    %v2039 = vpop.f32.mrb[0].mxu0
    %v2040 = vpop.f32.mrb[0].mxu0
    %2041 = vdwg.mxu0
    %v2042 = vmul.f32 %v2021, 0.5
    %v2043 = vmul.f32 %v2024, 0.5
    %v2044 = vmul.f32 %v2029, 0.5
    %v2045 = vmul.f32 %v2032, 0.5
    %v2046 = vmul.f32 %v2037, 0.5
    %v2047 = vmul.f32 %v2021, 0.044715
    %v2048 = vmul.f32 %v2024, 0.044715
    %v2049 = vmul.f32 %v2029, 0.044715
    %v2050 = vmul.f32 %v2032, 0.044715
    %v2051 = vmul.f32 %v2037, 0.044715
    %v2052 = vmul.f32 %v2047, %v2021
    %v2053 = vmul.f32 %v2048, %v2024
    %v2054 = vmul.f32 %v2049, %v2029
    %v2055 = vmul.f32 %v2050, %v2032
    %v2056 = vmul.f32 %v2051, %v2037
    %v2057 = vmul.f32 %v2052, %v2021
    %v2058 = vmul.f32 %v2053, %v2024
    %v2059 = vmul.f32 %v2054, %v2029
    %v2060 = vmul.f32 %v2055, %v2032
    %v2061 = vmul.f32 %v2056, %v2037
    %v2062 = vadd.f32 %v2021, %v2057
    %v2063 = vadd.f32 %v2024, %v2058
    %v2064 = vadd.f32 %v2029, %v2059
    %v2065 = vadd.f32 %v2032, %v2060
    %v2066 = vadd.f32 %v2037, %v2061
    %v2067 = vmul.f32 %v2062, 0.7978846
    %v2068 = vmul.f32 %v2063, 0.7978846
    %v2069 = vmul.f32 %v2064, 0.7978846
    %v2070 = vmul.f32 %v2065, 0.7978846
    %v2071 = vmul.f32 %v2066, 0.7978846
    %v2072 = vtanh.pop %v2067
    %v2073 = vtanh.pop %v2068
    %v2074 = vtanh.pop %v2069
    %v2075 = vtanh.pop %v2070
    %v2076 = vtanh.pop %v2071
    %v2077 = vadd.f32 %v2072, 1.0
    %v2078 = vadd.f32 %v2073, 1.0
    %v2079 = vadd.f32 %v2074, 1.0
    %v2080 = vadd.f32 %v2075, 1.0
    %v2081 = vadd.f32 %v2076, 1.0
    %v2082 = vmul.f32 %v2042, %v2077
    %v2083 = vmul.f32 %v2043, %v2078
    %v2084 = vmul.f32 %v2044, %v2079
    %v2085 = vmul.f32 %v2045, %v2080
    %v2086 = vmul.f32 %v2046, %v2081
    %v2087 = vpack.c.bf16 %v2083, %v2082
    %v2088 = vpack.c.bf16 %v2085, %v2084
    %v2089 = vpack.c.bf16 %v2086, %v2086
    %v2090 = vlaneseq
    %v2091 = vshrl.u32 %v2090, 7
    %v2092 = vsub.s32 0, %v2091
    %v2093 = vrot.slane %v175, %v2092
    %v2110 = vunpack.c.l.b16 %v152
    %v2111 = vunpack.c.l.b16 %v153
    %v2112 = vunpack.c.l.b16 %v154
    %v2113 = vunpack.c.l.b16 %v155
    %v2114 = vunpack.c.l.b16 %v156
    %v2115 = vunpack.c.l.b16 %v157
    %v2116 = vunpack.c.l.b16 %v158
    %v2117 = vunpack.c.l.b16 %v159
    %v2118 = vunpack.c.l.b16 %v160
    %v2119 = vunpack.c.l.b16 %v161
    %v2120 = vunpack.c.l.b16 %v162
    %v2121 = vunpack.c.l.b16 %v163
    %v2122 = vunpack.c.l.b16 %v164
    %v2123 = vunpack.c.l.b16 %v165
    %v2124 = vunpack.c.l.b16 %v166
    %v2125 = vunpack.c.l.b16 %v167
    %v2126 = vpack.c.b16 %v2111, %v2110
    %v2127 = vpack.c.b16 %v2113, %v2112
    %v2128 = vpack.c.b16 %v2115, %v2114
    %v2129 = vpack.c.b16 %v2117, %v2116
    %v2130 = vpack.c.b16 %v2119, %v2118
    %v2131 = vpack.c.b16 %v2121, %v2120
    %v2132 = vpack.c.b16 %v2123, %v2122
    %v2133 = vpack.c.b16 %v2125, %v2124
    %2142 = vmatprep.subr.bf16.mxu0 0
    %2143 = vmatpush1.bf16.msra.mxu0 %v2126
    %2144 = vmatprep.subr.bf16.mxu0 0
    %2145 = vmatpush1.bf16.msra.mxu0 %v2127
    %2146 = vmatprep.subr.bf16.mxu0 0
    %2147 = vmatpush1.bf16.msra.mxu0 %v2128
    %2148 = vmatprep.subr.bf16.mxu0 0
    %2149 = vmatpush1.bf16.msra.mxu0 %v2129
    %2150 = vmatprep.subr.bf16.mxu0 0
    %2151 = vmatpush1.bf16.msra.mxu0 %v2130
    %2152 = vmatprep.subr.bf16.mxu0 0
    %2153 = vmatpush1.bf16.msra.mxu0 %v2131
    %2154 = vmatprep.subr.bf16.mxu0 0
    %2155 = vmatpush1.bf16.msra.mxu0 %v2132
    %2156 = vmatprep.subr.bf16.mxu0 0
    %2157 = vmatpush1.bf16.msra.mxu0 %v2133
    %2158 = vmatprep.subr.bf16.mxu0 0
    %2159 = vmatpush1.bf16.msra.mxu0 0
    %2160 = vmatprep.subr.bf16.mxu0 0
    %2161 = vmatpush1.bf16.msra.mxu0 0
    %2162 = vmatprep.subr.bf16.mxu0 0
    %2163 = vmatpush1.bf16.msra.mxu0 0
    %2164 = vmatprep.subr.bf16.mxu0 0
    %2165 = vmatpush1.bf16.msra.mxu0 0
    %2166 = vmatprep.subr.bf16.mxu0 0
    %2167 = vmatpush1.bf16.msra.mxu0 0
    %2168 = vmatprep.subr.bf16.mxu0 0
    %2169 = vmatpush1.bf16.msra.mxu0 0
    %2170 = vmatprep.subr.bf16.mxu0 0
    %2171 = vmatpush1.bf16.msra.mxu0 0
    %2172 = vmatprep.subr.bf16.mxu0 0
    %2173 = vmatpush1.bf16.msra.mxu0 0
    %2174 = vmatprep.mubr.bf16.mxu0 0
    %2175 = vmatmul.mubr.bf16.gmra.mrb[0].mxu0 %v2087
    %v2176 = vpop.f32.mrb[0].mxu0
    %v2177 = vadd.f32 %v2093, %v2176
    %v2178 = vpop.f32.mrb[0].mxu0
    %v2179 = vpop.f32.mrb[0].mxu0
    %v2180 = vadd.f32 %v2093, %v2179
    %v2181 = vpop.f32.mrb[0].mxu0
    %2182 = vmatprep.mubr.bf16.mxu0 0
    %2183 = vmatmul.mubr.bf16.gmra.mrb[0].mxu0 %v2088
    %v2184 = vpop.f32.mrb[0].mxu0
    %v2185 = vadd.f32 %v2093, %v2184
    %v2186 = vpop.f32.mrb[0].mxu0
    %v2187 = vpop.f32.mrb[0].mxu0
    %v2188 = vadd.f32 %v2093, %v2187
    %v2189 = vpop.f32.mrb[0].mxu0
    %2190 = vmatprep.mubr.bf16.mxu0 0
    %2191 = vmatmul.mubr.bf16.gmra.mrb[0].mxu0 %v2089
    %v2192 = vpop.f32.mrb[0].mxu0
    %v2193 = vadd.f32 %v2093, %v2192
    %v2194 = vpop.f32.mrb[0].mxu0
    %v2195 = vpop.f32.mrb[0].mxu0
    %v2196 = vpop.f32.mrb[0].mxu0
    %2197 = vdwg.mxu0
    %v2198 = vadd.f32 %v1870, %v2177
    %v2199 = vadd.f32 %v1871, %v2180
    %v2200 = vadd.f32 %v1872, %v2185
    %v2201 = vadd.f32 %v1873, %v2188
    %v2202 = vadd.f32 %v1874, %v2193
    %v2203 = vld [vmem:[%s1 + $0x88] sm:$0xf]
    %v2204 = vld [vmem:[%s1 + $0x8c] sm:$0xf]
    %v2205 = vld [vmem:[%s1 + $0x90] sm:$0xf]
    %v2206 = vld [vmem:[%s1 + $0x94] sm:$0xf]
    %v2207 = vld [vmem:[%s1 + $0x98] sm:$0xf]
    %v2208 = vld [vmem:[%s1 + $0x9c] sm:$0xf]
    %v2209 = vld [vmem:[%s1 + $0xa0] sm:$0xf]
    %v2210 = vld [vmem:[%s1 + $0xa4] sm:$0xf]
    %v2211 = vld [vmem:[%s1 + $0xa8] sm:$0xf]
    %v2212 = vld [vmem:[%s1 + $0xac] sm:$0xf]
    %v2213 = vld [vmem:[%s1 + $0xb0] sm:$0xf]
    %v2214 = vld [vmem:[%s1 + $0xb4] sm:$0xf]
    %v2215 = vld [vmem:[%s1 + $0xb8] sm:$0xf]
    %v2216 = vld [vmem:[%s1 + $0xbc] sm:$0xf]
    %v2217 = vld [vmem:[%s1 + $0xc0] sm:$0xf]
    %v2218 = vld [vmem:[%s1 + $0xc4] sm:$0xf]
    %v2219 = vld [vmem:[%s1 + $0xc8] sm:$0xf]
    %v2220 = vld [vmem:[%s1 + $0xcc] sm:$0xf]
    %v2221 = vld [vmem:[%s1 + $0xd0] sm:$0xf]
    %v2222 = vld [vmem:[%s1 + $0xd4] sm:$0xf]
    %v2223 = vld [vmem:[%s1 + $0xd8] sm:$0xf]
    %v2224 = vld [vmem:[%s1 + $0xdc] sm:$0xf]
    %v2225 = vld [vmem:[%s1 + $0xe0] sm:$0xf]
    %v2226 = vld [vmem:[%s1 + $0xe4] sm:$0xf]
    %v2227 = vld [vmem:[%s1 + $0xe8] sm:$0xf]
    %v2228 = vld [vmem:[%s1 + $0xec] sm:$0xf]
    %v2229 = vld [vmem:[%s1 + $0xf0] sm:$0xf]
    %v2230 = vld [vmem:[%s1 + $0xf4] sm:$0xf]
    %v2231 = vld [vmem:[%s2 + $0x40] sm:$0x1]
    %v2232 = vld [vmem:[%s2 + $0x41] sm:$0x1]
    %v2233 = vld [vmem:[%s2 + $0x42] sm:$0x1]
    %v2234 = vld [vmem:[%s2 + $0x43] sm:$0x1]
    %v2235 = vld [vmem:[%s2 + $0x44] sm:$0x1]
    %v2236 = vld [vmem:[%s2 + $0x45] sm:$0x1]
    %v2237 = vld [vmem:[%s2 + $0x46] sm:$0x1]
    %v2238 = vld [vmem:[%s2 + $0x47] sm:$0x1]
    %v2239 = vsel %vm176, %v2198, 0.0
    %2240 = vadd.xlane.f32.xlu0 %v2239
    %v2241 = vpop.xlane.xlu0 %2240
    %v2242 = vsel %vm176, %v2199, 0.0
    %2243 = vadd.xlane.f32.xlu0 %v2242
    %v2244 = vpop.xlane.xlu0 %2243
    %v2245 = vsel %vm176, %v2200, 0.0
    %2246 = vadd.xlane.f32.xlu0 %v2245
    %v2247 = vpop.xlane.xlu0 %2246
    %v2248 = vsel %vm176, %v2201, 0.0
    %2249 = vadd.xlane.f32.xlu0 %v2248
    %v2250 = vpop.xlane.xlu0 %2249
    %v2251 = vsel %vm189, %v2202, 0.0
    %2252 = vadd.xlane.f32.xlu0 %v2251
    %v2253 = vpop.xlane.xlu0 %2252
    %v2254 = vmul.f32 %v2241, %v193
    %v2255 = vmul.f32 %v2244, %v193
    %v2256 = vmul.f32 %v2247, %v193
    %v2257 = vmul.f32 %v2250, %v193
    %v2258 = vmul.f32 %v2253, %v193
    %v2259 = vsub.f32 %v2198, %v2254
    %v2260 = vsub.f32 %v2199, %v2255
    %v2261 = vsub.f32 %v2200, %v2256
    %v2262 = vsub.f32 %v2201, %v2257
    %v2263 = vsub.f32 %v2202, %v2258
    %v2264 = vmul.f32 %v2259, %v2259
    %v2265 = vmul.f32 %v2260, %v2260
    %v2266 = vmul.f32 %v2261, %v2261
    %v2267 = vmul.f32 %v2262, %v2262
    %v2268 = vmul.f32 %v2263, %v2263
    %v2269 = vsel %vm176, %v2264, 0.0
    %2270 = vadd.xlane.f32.xlu0 %v2269
    %v2271 = vpop.xlane.xlu0 %2270
    %v2272 = vsel %vm176, %v2265, 0.0
    %2273 = vadd.xlane.f32.xlu0 %v2272
    %v2274 = vpop.xlane.xlu0 %2273
    %v2275 = vsel %vm176, %v2266, 0.0
    %2276 = vadd.xlane.f32.xlu0 %v2275
    %v2277 = vpop.xlane.xlu0 %2276
    %v2278 = vsel %vm176, %v2267, 0.0
    %2279 = vadd.xlane.f32.xlu0 %v2278
    %v2280 = vpop.xlane.xlu0 %2279
    %v2281 = vsel %vm189, %v2268, 0.0
    %2282 = vadd.xlane.f32.xlu0 %v2281
    %v2283 = vpop.xlane.xlu0 %2282
    %v2284 = vmul.f32 %v2271, %v193
    %v2285 = vmul.f32 %v2274, %v193
    %v2286 = vmul.f32 %v2277, %v193
    %v2287 = vmul.f32 %v2280, %v193
    %v2288 = vmul.f32 %v2283, %v193
    %v2289 = vadd.f32 %v2284, 1e-06
    %v2290 = vadd.f32 %v2285, 1e-06
    %v2291 = vadd.f32 %v2286, 1e-06
    %v2292 = vadd.f32 %v2287, 1e-06
    %v2293 = vadd.f32 %v2288, 1e-06
    %v2294 = vrsqrt.pop %v2289
    %v2295 = vrsqrt.pop %v2290
    %v2296 = vrsqrt.pop %v2291
    %v2297 = vrsqrt.pop %v2292
    %v2298 = vrsqrt.pop %v2293
    %v2299 = vmul.f32 %v2259, %v2294
    %v2300 = vmul.f32 %v2260, %v2295
    %v2301 = vmul.f32 %v2261, %v2296
    %v2302 = vmul.f32 %v2262, %v2297
    %v2303 = vmul.f32 %v2263, %v2298
    %v2304 = vlaneseq
    %v2305 = vshrl.u32 %v2304, 7
    %v2306 = vsub.s32 0, %v2305
    %v2307 = vrot.slane %v2231, %v2306
    %v2308 = vmul.f32 %v2299, %v2307
    %v2309 = vmul.f32 %v2300, %v2307
    %v2310 = vmul.f32 %v2301, %v2307
    %v2311 = vmul.f32 %v2302, %v2307
    %v2312 = vmul.f32 %v2303, %v2307
    %v2313 = vlaneseq
    %v2314 = vshrl.u32 %v2313, 7
    %v2315 = vsub.s32 0, %v2314
    %v2316 = vrot.slane %v2232, %v2315
    %v2317 = vadd.f32 %v2308, %v2316
    %v2318 = vadd.f32 %v2309, %v2316
    %v2319 = vadd.f32 %v2310, %v2316
    %v2320 = vadd.f32 %v2311, %v2316
    %v2321 = vadd.f32 %v2312, %v2316
    %v2322 = vpack.c.bf16 %v2318, %v2317
    %v2323 = vpack.c.bf16 %v2320, %v2319
    %v2324 = vpack.c.bf16 %v2321, %v2321
    %v2325 = vlaneseq
    %v2326 = vshrl.u32 %v2325, 7
    %v2327 = vsub.s32 0, %v2326
    %v2328 = vrot.slane %v2233, %v2327
    %v2333 = vunpack.c.l.b16 %v2203
    %v2334 = vunpack.c.l.b16 %v2204
    %v2335 = vunpack.c.l.b16 %v2205
    %v2336 = vunpack.c.l.b16 %v2206
    %v2337 = vpack.c.b16 %v2334, %v2333
    %v2338 = vpack.c.b16 %v2336, %v2335
    %v2342 = vsel %vm176, %v2322, 0
    %v2345 = vsel %vm176, %v2323, 0
    %v2348 = vsel %vm176, %v2324, 0
    %2350 = vmatprep.subr.bf16.mxu0 0
    %2351 = vmatpush1.bf16.msra.mxu0 %v2337
    %2352 = vmatprep.subr.bf16.mxu0 0
    %2353 = vmatpush1.bf16.msra.mxu0 %v2338
    %2354 = vmatprep.subr.bf16.mxu0 0
    %2355 = vmatpush1.bf16.msra.mxu0 0
    %2356 = vmatprep.subr.bf16.mxu0 0
    %2357 = vmatpush1.bf16.msra.mxu0 0
    %2358 = vmatprep.subr.bf16.mxu0 0
    %2359 = vmatpush1.bf16.msra.mxu0 0
    %2360 = vmatprep.subr.bf16.mxu0 0
    %2361 = vmatpush1.bf16.msra.mxu0 0
    %2362 = vmatprep.subr.bf16.mxu0 0
    %2363 = vmatpush1.bf16.msra.mxu0 0
    %2364 = vmatprep.subr.bf16.mxu0 0
    %2365 = vmatpush1.bf16.msra.mxu0 0
    %2366 = vmatprep.subr.bf16.mxu0 0
    %2367 = vmatpush1.bf16.msra.mxu0 0
    %2368 = vmatprep.subr.bf16.mxu0 0
    %2369 = vmatpush1.bf16.msra.mxu0 0
    %2370 = vmatprep.subr.bf16.mxu0 0
    %2371 = vmatpush1.bf16.msra.mxu0 0
    %2372 = vmatprep.subr.bf16.mxu0 0
    %2373 = vmatpush1.bf16.msra.mxu0 0
    %2374 = vmatprep.subr.bf16.mxu0 0
    %2375 = vmatpush1.bf16.msra.mxu0 0
    %2376 = vmatprep.subr.bf16.mxu0 0
    %2377 = vmatpush1.bf16.msra.mxu0 0
    %2378 = vmatprep.subr.bf16.mxu0 0
    %2379 = vmatpush1.bf16.msra.mxu0 0
    %2380 = vmatprep.subr.bf16.mxu0 0
    %2381 = vmatpush1.bf16.msra.mxu0 0
    %2382 = vmatprep.mubr.bf16.mxu0 0
    %2383 = vmatmul.mubr.bf16.gmra.mrb[0].mxu0 %v2342
    %v2384 = vpop.f32.mrb[0].mxu0
    %v2385 = vadd.f32 %v2328, %v2384
    %v2386 = vpop.f32.mrb[0].mxu0
    %v2387 = vpop.f32.mrb[0].mxu0
    %v2388 = vadd.f32 %v2328, %v2387
    %v2389 = vpop.f32.mrb[0].mxu0
    %2390 = vmatprep.mubr.bf16.mxu0 0
    %2391 = vmatmul.mubr.bf16.gmra.mrb[0].mxu0 %v2345
    %v2392 = vpop.f32.mrb[0].mxu0
    %v2393 = vadd.f32 %v2328, %v2392
    %v2394 = vpop.f32.mrb[0].mxu0
    %v2395 = vpop.f32.mrb[0].mxu0
    %v2396 = vadd.f32 %v2328, %v2395
    %v2397 = vpop.f32.mrb[0].mxu0
    %2398 = vmatprep.mubr.bf16.mxu0 0
    %2399 = vmatmul.mubr.bf16.gmra.mrb[0].mxu0 %v2348
    %v2400 = vpop.f32.mrb[0].mxu0
    %v2401 = vadd.f32 %v2328, %v2400
    %v2402 = vpop.f32.mrb[0].mxu0
    %v2403 = vpop.f32.mrb[0].mxu0
    %v2404 = vpop.f32.mrb[0].mxu0
    %2405 = vdwg.mxu0
    %v2406 = vpack.c.bf16 %v2388, %v2385
    %v2407 = vpack.c.bf16 %v2396, %v2393
    %v2408 = vpack.c.bf16 %v2401, %v2401
    %2411 = vrot.lane.b32.xlu0 %v2406, 120
    %v2412 = vpop.permute.xlu0 %2411
    %2413 = vrot.lane.b32.xlu0 %v2407, 120
    %v2414 = vpop.permute.xlu0 %2413
    %2415 = vrot.lane.b32.xlu0 %v2406, 112
    %v2416 = vpop.permute.xlu0 %2415
    %2417 = vrot.lane.b32.xlu0 %v2407, 112
    %v2418 = vpop.permute.xlu0 %2417
    %2419 = vrot.lane.b32.xlu0 %v2406, 104
    %v2420 = vpop.permute.xlu0 %2419
    %2421 = vrot.lane.b32.xlu0 %v2407, 104
    %v2422 = vpop.permute.xlu0 %2421
    %v2424 = vshrl.u32 %v2407, 16
    %v2426 = vshll.u32 %v2407, 16
    %v2428 = vrot.slane %v2426, 1
    %v2429 = vor.u32 %v2424, %v2428
    %v2431 = vshll.u32 %v2408, 16
    %v2433 = vrot.slane %v2431, 1
    %v2434 = vsel %vm363, %v2429, %v2433
    %v2435 = vshrl.u32 %v2408, 16
    %2437 = vrot.lane.b32.xlu0 %v2434, 120
    %v2438 = vpop.permute.xlu0 %2437
    %2439 = vrot.lane.b32.xlu0 %v2435, 120
    %v2440 = vpop.permute.xlu0 %2439
    %2441 = vrot.lane.b32.xlu0 %v2434, 112
    %v2442 = vpop.permute.xlu0 %2441
    %2443 = vrot.lane.b32.xlu0 %v2435, 112
    %v2444 = vpop.permute.xlu0 %2443
    %2445 = vrot.lane.b32.xlu0 %v2434, 104
    %v2446 = vpop.permute.xlu0 %2445
    %2447 = vrot.lane.b32.xlu0 %v2435, 104
    %v2448 = vpop.permute.xlu0 %2447
    %2449 = vrot.lane.b32.xlu0 %v2406, 96
    %v2450 = vpop.permute.xlu0 %2449
    %2451 = vrot.lane.b32.xlu0 %v2407, 96
    %v2452 = vpop.permute.xlu0 %2451
    %v2454 = vsel %vm394, %v2406, 0
    %v2456 = vsel %vm394, %v2407, 0
    %v2459 = vsel %vm394, %v2450, 0
    %v2462 = vsel %vm394, %v2452, 0
    %2464 = vmatprep.subr.bf16.mxu0 0
    %2465 = vmatpush1.bf16.xpose.msra.mxu0 %v2459
    %2466 = vmatprep.subr.bf16.mxu0 0
    %2467 = vmatpush1.bf16.xpose.msra.mxu0 %v2462
    %2468 = vmatprep.subr.bf16.mxu0 0
    %2469 = vmatpush1.bf16.xpose.msra.mxu0 0
    %2470 = vmatprep.subr.bf16.mxu0 0
    %2471 = vmatpush1.bf16.xpose.msra.mxu0 0
    %2472 = vmatprep.subr.bf16.mxu0 0
    %2473 = vmatpush1.bf16.xpose.msra.mxu0 0
    %2474 = vmatprep.subr.bf16.mxu0 0
    %2475 = vmatpush1.bf16.xpose.msra.mxu0 0
    %2476 = vmatprep.subr.bf16.mxu0 0
    %2477 = vmatpush1.bf16.xpose.msra.mxu0 0
    %2478 = vmatprep.subr.bf16.mxu0 0
    %2479 = vmatpush1.bf16.xpose.msra.mxu0 0
    %2480 = vmatprep.subr.bf16.mxu0 0
    %2481 = vmatpush1.bf16.xpose.msra.mxu0 0
    %2482 = vmatprep.subr.bf16.mxu0 0
    %2483 = vmatpush1.bf16.xpose.msra.mxu0 0
    %2484 = vmatprep.subr.bf16.mxu0 0
    %2485 = vmatpush1.bf16.xpose.msra.mxu0 0
    %2486 = vmatprep.subr.bf16.mxu0 0
    %2487 = vmatpush1.bf16.xpose.msra.mxu0 0
    %2488 = vmatprep.subr.bf16.mxu0 0
    %2489 = vmatpush1.bf16.xpose.msra.mxu0 0
    %2490 = vmatprep.subr.bf16.mxu0 0
    %2491 = vmatpush1.bf16.xpose.msra.mxu0 0
    %2492 = vmatprep.subr.bf16.mxu0 0
    %2493 = vmatpush1.bf16.xpose.msra.mxu0 0
    %2494 = vmatprep.subr.bf16.mxu0 0
    %2495 = vmatpush1.bf16.xpose.msra.mxu0 0
    %2496 = vmatprep.mubr.bf16.mxu0 0
    %2497 = vmatmul.mubr.bf16.gmra.mrb[0].mxu0 %v2454
    %v2498 = vpop.f32.mrb[0].mxu0
    %v2499 = vadd.f32 0.0, %v2498
    %v2500 = vpop.f32.mrb[0].mxu0
    %v2501 = vpop.f32.mrb[0].mxu0
    %v2502 = vadd.f32 0.0, %v2501
    %v2503 = vpop.f32.mrb[0].mxu0
    %2504 = vmatprep.mubr.bf16.mxu0 0
    %2505 = vmatmul.mubr.bf16.gmra.mrb[0].mxu0 %v2456
    %v2506 = vpop.f32.mrb[0].mxu0
    %v2507 = vadd.f32 0.0, %v2506
    %v2508 = vpop.f32.mrb[0].mxu0
    %v2509 = vpop.f32.mrb[0].mxu0
    %v2510 = vpop.f32.mrb[0].mxu0
    %2511 = vdwg.mxu0
    %2512 = vrot.lane.b32.xlu0 %v2412, 96
    %v2513 = vpop.permute.xlu0 %2512
    %2514 = vrot.lane.b32.xlu0 %v2414, 96
    %v2515 = vpop.permute.xlu0 %2514
    %v2517 = vsel %vm394, %v2412, 0
    %v2520 = vsel %vm394, %v2414, 0
    %v2523 = vsel %vm394, %v2513, 0
    %v2526 = vsel %vm394, %v2515, 0
    %2528 = vmatprep.subr.bf16.mxu0 0
    %2529 = vmatpush1.bf16.xpose.msra.mxu0 %v2523
    %2530 = vmatprep.subr.bf16.mxu0 0
    %2531 = vmatpush1.bf16.xpose.msra.mxu0 %v2526
    %2532 = vmatprep.subr.bf16.mxu0 0
    %2533 = vmatpush1.bf16.xpose.msra.mxu0 0
    %2534 = vmatprep.subr.bf16.mxu0 0
    %2535 = vmatpush1.bf16.xpose.msra.mxu0 0
    %2536 = vmatprep.subr.bf16.mxu0 0
    %2537 = vmatpush1.bf16.xpose.msra.mxu0 0
    %2538 = vmatprep.subr.bf16.mxu0 0
    %2539 = vmatpush1.bf16.xpose.msra.mxu0 0
    %2540 = vmatprep.subr.bf16.mxu0 0
    %2541 = vmatpush1.bf16.xpose.msra.mxu0 0
    %2542 = vmatprep.subr.bf16.mxu0 0
    %2543 = vmatpush1.bf16.xpose.msra.mxu0 0
    %2544 = vmatprep.subr.bf16.mxu0 0
    %2545 = vmatpush1.bf16.xpose.msra.mxu0 0
    %2546 = vmatprep.subr.bf16.mxu0 0
    %2547 = vmatpush1.bf16.xpose.msra.mxu0 0
    %2548 = vmatprep.subr.bf16.mxu0 0
    %2549 = vmatpush1.bf16.xpose.msra.mxu0 0
    %2550 = vmatprep.subr.bf16.mxu0 0
    %2551 = vmatpush1.bf16.xpose.msra.mxu0 0
    %2552 = vmatprep.subr.bf16.mxu0 0
    %2553 = vmatpush1.bf16.xpose.msra.mxu0 0
    %2554 = vmatprep.subr.bf16.mxu0 0
    %2555 = vmatpush1.bf16.xpose.msra.mxu0 0
    %2556 = vmatprep.subr.bf16.mxu0 0
    %2557 = vmatpush1.bf16.xpose.msra.mxu0 0
    %2558 = vmatprep.subr.bf16.mxu0 0
    %2559 = vmatpush1.bf16.xpose.msra.mxu0 0
    %2560 = vmatprep.mubr.bf16.mxu0 0
    %2561 = vmatmul.mubr.bf16.gmra.mrb[0].mxu0 %v2517
    %v2562 = vpop.f32.mrb[0].mxu0
    %v2563 = vadd.f32 0.0, %v2562
    %v2564 = vpop.f32.mrb[0].mxu0
    %v2565 = vpop.f32.mrb[0].mxu0
    %v2566 = vadd.f32 0.0, %v2565
    %v2567 = vpop.f32.mrb[0].mxu0
    %2568 = vmatprep.mubr.bf16.mxu0 0
    %2569 = vmatmul.mubr.bf16.gmra.mrb[0].mxu0 %v2520
    %v2570 = vpop.f32.mrb[0].mxu0
    %v2571 = vadd.f32 0.0, %v2570
    %v2572 = vpop.f32.mrb[0].mxu0
    %v2573 = vpop.f32.mrb[0].mxu0
    %v2574 = vpop.f32.mrb[0].mxu0
    %2575 = vdwg.mxu0
    %2576 = vrot.lane.b32.xlu0 %v2416, 96
    %v2577 = vpop.permute.xlu0 %2576
    %2578 = vrot.lane.b32.xlu0 %v2418, 96
    %v2579 = vpop.permute.xlu0 %2578
    %v2581 = vsel %vm394, %v2416, 0
    %v2584 = vsel %vm394, %v2418, 0
    %v2587 = vsel %vm394, %v2577, 0
    %v2590 = vsel %vm394, %v2579, 0
    %2592 = vmatprep.subr.bf16.mxu0 0
    %2593 = vmatpush1.bf16.xpose.msra.mxu0 %v2587
    %2594 = vmatprep.subr.bf16.mxu0 0
    %2595 = vmatpush1.bf16.xpose.msra.mxu0 %v2590
    %2596 = vmatprep.subr.bf16.mxu0 0
    %2597 = vmatpush1.bf16.xpose.msra.mxu0 0
    %2598 = vmatprep.subr.bf16.mxu0 0
    %2599 = vmatpush1.bf16.xpose.msra.mxu0 0
    %2600 = vmatprep.subr.bf16.mxu0 0
    %2601 = vmatpush1.bf16.xpose.msra.mxu0 0
    %2602 = vmatprep.subr.bf16.mxu0 0
    %2603 = vmatpush1.bf16.xpose.msra.mxu0 0
    %2604 = vmatprep.subr.bf16.mxu0 0
    %2605 = vmatpush1.bf16.xpose.msra.mxu0 0
    %2606 = vmatprep.subr.bf16.mxu0 0
    %2607 = vmatpush1.bf16.xpose.msra.mxu0 0
    %2608 = vmatprep.subr.bf16.mxu0 0
    %2609 = vmatpush1.bf16.xpose.msra.mxu0 0
    %2610 = vmatprep.subr.bf16.mxu0 0
    %2611 = vmatpush1.bf16.xpose.msra.mxu0 0
    %2612 = vmatprep.subr.bf16.mxu0 0
    %2613 = vmatpush1.bf16.xpose.msra.mxu0 0
    %2614 = vmatprep.subr.bf16.mxu0 0
    %2615 = vmatpush1.bf16.xpose.msra.mxu0 0
    %2616 = vmatprep.subr.bf16.mxu0 0
    %2617 = vmatpush1.bf16.xpose.msra.mxu0 0
    %2618 = vmatprep.subr.bf16.mxu0 0
    %2619 = vmatpush1.bf16.xpose.msra.mxu0 0
    %2620 = vmatprep.subr.bf16.mxu0 0
    %2621 = vmatpush1.bf16.xpose.msra.mxu0 0
    %2622 = vmatprep.subr.bf16.mxu0 0
    %2623 = vmatpush1.bf16.xpose.msra.mxu0 0
    %2624 = vmatprep.mubr.bf16.mxu0 0
    %2625 = vmatmul.mubr.bf16.gmra.mrb[0].mxu0 %v2581
    %v2626 = vpop.f32.mrb[0].mxu0
    %v2627 = vadd.f32 0.0, %v2626
    %v2628 = vpop.f32.mrb[0].mxu0
    %v2629 = vpop.f32.mrb[0].mxu0
    %v2630 = vadd.f32 0.0, %v2629
    %v2631 = vpop.f32.mrb[0].mxu0
    %2632 = vmatprep.mubr.bf16.mxu0 0
    %2633 = vmatmul.mubr.bf16.gmra.mrb[0].mxu0 %v2584
    %v2634 = vpop.f32.mrb[0].mxu0
    %v2635 = vadd.f32 0.0, %v2634
    %v2636 = vpop.f32.mrb[0].mxu0
    %v2637 = vpop.f32.mrb[0].mxu0
    %v2638 = vpop.f32.mrb[0].mxu0
    %2639 = vdwg.mxu0
    %2640 = vrot.lane.b32.xlu0 %v2420, 96
    %v2641 = vpop.permute.xlu0 %2640
    %2642 = vrot.lane.b32.xlu0 %v2422, 96
    %v2643 = vpop.permute.xlu0 %2642
    %v2645 = vsel %vm394, %v2420, 0
    %v2648 = vsel %vm394, %v2422, 0
    %v2651 = vsel %vm394, %v2641, 0
    %v2654 = vsel %vm394, %v2643, 0
    %2656 = vmatprep.subr.bf16.mxu0 0
    %2657 = vmatpush1.bf16.xpose.msra.mxu0 %v2651
    %2658 = vmatprep.subr.bf16.mxu0 0
    %2659 = vmatpush1.bf16.xpose.msra.mxu0 %v2654
    %2660 = vmatprep.subr.bf16.mxu0 0
    %2661 = vmatpush1.bf16.xpose.msra.mxu0 0
    %2662 = vmatprep.subr.bf16.mxu0 0
    %2663 = vmatpush1.bf16.xpose.msra.mxu0 0
    %2664 = vmatprep.subr.bf16.mxu0 0
    %2665 = vmatpush1.bf16.xpose.msra.mxu0 0
    %2666 = vmatprep.subr.bf16.mxu0 0
    %2667 = vmatpush1.bf16.xpose.msra.mxu0 0
    %2668 = vmatprep.subr.bf16.mxu0 0
    %2669 = vmatpush1.bf16.xpose.msra.mxu0 0
    %2670 = vmatprep.subr.bf16.mxu0 0
    %2671 = vmatpush1.bf16.xpose.msra.mxu0 0
    %2672 = vmatprep.subr.bf16.mxu0 0
    %2673 = vmatpush1.bf16.xpose.msra.mxu0 0
    %2674 = vmatprep.subr.bf16.mxu0 0
    %2675 = vmatpush1.bf16.xpose.msra.mxu0 0
    %2676 = vmatprep.subr.bf16.mxu0 0
    %2677 = vmatpush1.bf16.xpose.msra.mxu0 0
    %2678 = vmatprep.subr.bf16.mxu0 0
    %2679 = vmatpush1.bf16.xpose.msra.mxu0 0
    %2680 = vmatprep.subr.bf16.mxu0 0
    %2681 = vmatpush1.bf16.xpose.msra.mxu0 0
    %2682 = vmatprep.subr.bf16.mxu0 0
    %2683 = vmatpush1.bf16.xpose.msra.mxu0 0
    %2684 = vmatprep.subr.bf16.mxu0 0
    %2685 = vmatpush1.bf16.xpose.msra.mxu0 0
    %2686 = vmatprep.subr.bf16.mxu0 0
    %2687 = vmatpush1.bf16.xpose.msra.mxu0 0
    %2688 = vmatprep.mubr.bf16.mxu0 0
    %2689 = vmatmul.mubr.bf16.gmra.mrb[0].mxu0 %v2645
    %v2690 = vpop.f32.mrb[0].mxu0
    %v2691 = vadd.f32 0.0, %v2690
    %v2692 = vpop.f32.mrb[0].mxu0
    %v2693 = vpop.f32.mrb[0].mxu0
    %v2694 = vadd.f32 0.0, %v2693
    %v2695 = vpop.f32.mrb[0].mxu0
    %2696 = vmatprep.mubr.bf16.mxu0 0
    %2697 = vmatmul.mubr.bf16.gmra.mrb[0].mxu0 %v2648
    %v2698 = vpop.f32.mrb[0].mxu0
    %v2699 = vadd.f32 0.0, %v2698
    %v2700 = vpop.f32.mrb[0].mxu0
    %v2701 = vpop.f32.mrb[0].mxu0
    %v2702 = vpop.f32.mrb[0].mxu0
    %2703 = vdwg.mxu0
    %2704 = vrot.lane.b32.xlu0 %v2434, 96
    %v2705 = vpop.permute.xlu0 %2704
    %2706 = vrot.lane.b32.xlu0 %v2435, 96
    %v2707 = vpop.permute.xlu0 %2706
    %v2709 = vsel %vm394, %v2434, 0
    %v2712 = vsel %vm394, %v2435, 0
    %v2715 = vsel %vm394, %v2705, 0
    %v2718 = vsel %vm394, %v2707, 0
    %2720 = vmatprep.subr.bf16.mxu0 0
    %2721 = vmatpush1.bf16.xpose.msra.mxu0 %v2715
    %2722 = vmatprep.subr.bf16.mxu0 0
    %2723 = vmatpush1.bf16.xpose.msra.mxu0 %v2718
    %2724 = vmatprep.subr.bf16.mxu0 0
    %2725 = vmatpush1.bf16.xpose.msra.mxu0 0
    %2726 = vmatprep.subr.bf16.mxu0 0
    %2727 = vmatpush1.bf16.xpose.msra.mxu0 0
    %2728 = vmatprep.subr.bf16.mxu0 0
    %2729 = vmatpush1.bf16.xpose.msra.mxu0 0
    %2730 = vmatprep.subr.bf16.mxu0 0
    %2731 = vmatpush1.bf16.xpose.msra.mxu0 0
    %2732 = vmatprep.subr.bf16.mxu0 0
    %2733 = vmatpush1.bf16.xpose.msra.mxu0 0
    %2734 = vmatprep.subr.bf16.mxu0 0
    %2735 = vmatpush1.bf16.xpose.msra.mxu0 0
    %2736 = vmatprep.subr.bf16.mxu0 0
    %2737 = vmatpush1.bf16.xpose.msra.mxu0 0
    %2738 = vmatprep.subr.bf16.mxu0 0
    %2739 = vmatpush1.bf16.xpose.msra.mxu0 0
    %2740 = vmatprep.subr.bf16.mxu0 0
    %2741 = vmatpush1.bf16.xpose.msra.mxu0 0
    %2742 = vmatprep.subr.bf16.mxu0 0
    %2743 = vmatpush1.bf16.xpose.msra.mxu0 0
    %2744 = vmatprep.subr.bf16.mxu0 0
    %2745 = vmatpush1.bf16.xpose.msra.mxu0 0
    %2746 = vmatprep.subr.bf16.mxu0 0
    %2747 = vmatpush1.bf16.xpose.msra.mxu0 0
    %2748 = vmatprep.subr.bf16.mxu0 0
    %2749 = vmatpush1.bf16.xpose.msra.mxu0 0
    %2750 = vmatprep.subr.bf16.mxu0 0
    %2751 = vmatpush1.bf16.xpose.msra.mxu0 0
    %2752 = vmatprep.mubr.bf16.mxu0 0
    %2753 = vmatmul.mubr.bf16.gmra.mrb[0].mxu0 %v2709
    %v2754 = vpop.f32.mrb[0].mxu0
    %v2755 = vadd.f32 0.0, %v2754
    %v2756 = vpop.f32.mrb[0].mxu0
    %v2757 = vpop.f32.mrb[0].mxu0
    %v2758 = vadd.f32 0.0, %v2757
    %v2759 = vpop.f32.mrb[0].mxu0
    %2760 = vmatprep.mubr.bf16.mxu0 0
    %2761 = vmatmul.mubr.bf16.gmra.mrb[0].mxu0 %v2712
    %v2762 = vpop.f32.mrb[0].mxu0
    %v2763 = vadd.f32 0.0, %v2762
    %v2764 = vpop.f32.mrb[0].mxu0
    %v2765 = vpop.f32.mrb[0].mxu0
    %v2766 = vpop.f32.mrb[0].mxu0
    %2767 = vdwg.mxu0
    %2768 = vrot.lane.b32.xlu0 %v2438, 96
    %v2769 = vpop.permute.xlu0 %2768
    %2770 = vrot.lane.b32.xlu0 %v2440, 96
    %v2771 = vpop.permute.xlu0 %2770
    %v2773 = vsel %vm394, %v2438, 0
    %v2776 = vsel %vm394, %v2440, 0
    %v2779 = vsel %vm394, %v2769, 0
    %v2782 = vsel %vm394, %v2771, 0
    %2784 = vmatprep.subr.bf16.mxu0 0
    %2785 = vmatpush1.bf16.xpose.msra.mxu0 %v2779
    %2786 = vmatprep.subr.bf16.mxu0 0
    %2787 = vmatpush1.bf16.xpose.msra.mxu0 %v2782
    %2788 = vmatprep.subr.bf16.mxu0 0
    %2789 = vmatpush1.bf16.xpose.msra.mxu0 0
    %2790 = vmatprep.subr.bf16.mxu0 0
    %2791 = vmatpush1.bf16.xpose.msra.mxu0 0
    %2792 = vmatprep.subr.bf16.mxu0 0
    %2793 = vmatpush1.bf16.xpose.msra.mxu0 0
    %2794 = vmatprep.subr.bf16.mxu0 0
    %2795 = vmatpush1.bf16.xpose.msra.mxu0 0
    %2796 = vmatprep.subr.bf16.mxu0 0
    %2797 = vmatpush1.bf16.xpose.msra.mxu0 0
    %2798 = vmatprep.subr.bf16.mxu0 0
    %2799 = vmatpush1.bf16.xpose.msra.mxu0 0
    %2800 = vmatprep.subr.bf16.mxu0 0
    %2801 = vmatpush1.bf16.xpose.msra.mxu0 0
    %2802 = vmatprep.subr.bf16.mxu0 0
    %2803 = vmatpush1.bf16.xpose.msra.mxu0 0
    %2804 = vmatprep.subr.bf16.mxu0 0
    %2805 = vmatpush1.bf16.xpose.msra.mxu0 0
    %2806 = vmatprep.subr.bf16.mxu0 0
    %2807 = vmatpush1.bf16.xpose.msra.mxu0 0
    %2808 = vmatprep.subr.bf16.mxu0 0
    %2809 = vmatpush1.bf16.xpose.msra.mxu0 0
    %2810 = vmatprep.subr.bf16.mxu0 0
    %2811 = vmatpush1.bf16.xpose.msra.mxu0 0
    %2812 = vmatprep.subr.bf16.mxu0 0
    %2813 = vmatpush1.bf16.xpose.msra.mxu0 0
    %2814 = vmatprep.subr.bf16.mxu0 0
    %2815 = vmatpush1.bf16.xpose.msra.mxu0 0
    %2816 = vmatprep.mubr.bf16.mxu0 0
    %2817 = vmatmul.mubr.bf16.gmra.mrb[0].mxu0 %v2773
    %v2818 = vpop.f32.mrb[0].mxu0
    %v2819 = vadd.f32 0.0, %v2818
    %v2820 = vpop.f32.mrb[0].mxu0
    %v2821 = vpop.f32.mrb[0].mxu0
    %v2822 = vadd.f32 0.0, %v2821
    %v2823 = vpop.f32.mrb[0].mxu0
    %2824 = vmatprep.mubr.bf16.mxu0 0
    %2825 = vmatmul.mubr.bf16.gmra.mrb[0].mxu0 %v2776
    %v2826 = vpop.f32.mrb[0].mxu0
    %v2827 = vadd.f32 0.0, %v2826
    %v2828 = vpop.f32.mrb[0].mxu0
    %v2829 = vpop.f32.mrb[0].mxu0
    %v2830 = vpop.f32.mrb[0].mxu0
    %2831 = vdwg.mxu0
    %2832 = vrot.lane.b32.xlu0 %v2442, 96
    %v2833 = vpop.permute.xlu0 %2832
    %2834 = vrot.lane.b32.xlu0 %v2444, 96
    %v2835 = vpop.permute.xlu0 %2834
    %v2837 = vsel %vm394, %v2442, 0
    %v2840 = vsel %vm394, %v2444, 0
    %v2843 = vsel %vm394, %v2833, 0
    %v2846 = vsel %vm394, %v2835, 0
    %2848 = vmatprep.subr.bf16.mxu0 0
    %2849 = vmatpush1.bf16.xpose.msra.mxu0 %v2843
    %2850 = vmatprep.subr.bf16.mxu0 0
    %2851 = vmatpush1.bf16.xpose.msra.mxu0 %v2846
    %2852 = vmatprep.subr.bf16.mxu0 0
    %2853 = vmatpush1.bf16.xpose.msra.mxu0 0
    %2854 = vmatprep.subr.bf16.mxu0 0
    %2855 = vmatpush1.bf16.xpose.msra.mxu0 0
    %2856 = vmatprep.subr.bf16.mxu0 0
    %2857 = vmatpush1.bf16.xpose.msra.mxu0 0
    %2858 = vmatprep.subr.bf16.mxu0 0
    %2859 = vmatpush1.bf16.xpose.msra.mxu0 0
    %2860 = vmatprep.subr.bf16.mxu0 0
    %2861 = vmatpush1.bf16.xpose.msra.mxu0 0
    %2862 = vmatprep.subr.bf16.mxu0 0
    %2863 = vmatpush1.bf16.xpose.msra.mxu0 0
    %2864 = vmatprep.subr.bf16.mxu0 0
    %2865 = vmatpush1.bf16.xpose.msra.mxu0 0
    %2866 = vmatprep.subr.bf16.mxu0 0
    %2867 = vmatpush1.bf16.xpose.msra.mxu0 0
    %2868 = vmatprep.subr.bf16.mxu0 0
    %2869 = vmatpush1.bf16.xpose.msra.mxu0 0
    %2870 = vmatprep.subr.bf16.mxu0 0
    %2871 = vmatpush1.bf16.xpose.msra.mxu0 0
    %2872 = vmatprep.subr.bf16.mxu0 0
    %2873 = vmatpush1.bf16.xpose.msra.mxu0 0
    %2874 = vmatprep.subr.bf16.mxu0 0
    %2875 = vmatpush1.bf16.xpose.msra.mxu0 0
    %2876 = vmatprep.subr.bf16.mxu0 0
    %2877 = vmatpush1.bf16.xpose.msra.mxu0 0
    %2878 = vmatprep.subr.bf16.mxu0 0
    %2879 = vmatpush1.bf16.xpose.msra.mxu0 0
    %2880 = vmatprep.mubr.bf16.mxu0 0
    %2881 = vmatmul.mubr.bf16.gmra.mrb[0].mxu0 %v2837
    %v2882 = vpop.f32.mrb[0].mxu0
    %v2883 = vadd.f32 0.0, %v2882
    %v2884 = vpop.f32.mrb[0].mxu0
    %v2885 = vpop.f32.mrb[0].mxu0
    %v2886 = vadd.f32 0.0, %v2885
    %v2887 = vpop.f32.mrb[0].mxu0
    %2888 = vmatprep.mubr.bf16.mxu0 0
    %2889 = vmatmul.mubr.bf16.gmra.mrb[0].mxu0 %v2840
    %v2890 = vpop.f32.mrb[0].mxu0
    %v2891 = vadd.f32 0.0, %v2890
    %v2892 = vpop.f32.mrb[0].mxu0
    %v2893 = vpop.f32.mrb[0].mxu0
    %v2894 = vpop.f32.mrb[0].mxu0
    %2895 = vdwg.mxu0
    %2896 = vrot.lane.b32.xlu0 %v2446, 96
    %v2897 = vpop.permute.xlu0 %2896
    %2898 = vrot.lane.b32.xlu0 %v2448, 96
    %v2899 = vpop.permute.xlu0 %2898
    %v2901 = vsel %vm394, %v2446, 0
    %v2904 = vsel %vm394, %v2448, 0
    %v2907 = vsel %vm394, %v2897, 0
    %v2910 = vsel %vm394, %v2899, 0
    %2912 = vmatprep.subr.bf16.mxu0 0
    %2913 = vmatpush1.bf16.xpose.msra.mxu0 %v2907
    %2914 = vmatprep.subr.bf16.mxu0 0
    %2915 = vmatpush1.bf16.xpose.msra.mxu0 %v2910
    %2916 = vmatprep.subr.bf16.mxu0 0
    %2917 = vmatpush1.bf16.xpose.msra.mxu0 0
    %2918 = vmatprep.subr.bf16.mxu0 0
    %2919 = vmatpush1.bf16.xpose.msra.mxu0 0
    %2920 = vmatprep.subr.bf16.mxu0 0
    %2921 = vmatpush1.bf16.xpose.msra.mxu0 0
    %2922 = vmatprep.subr.bf16.mxu0 0
    %2923 = vmatpush1.bf16.xpose.msra.mxu0 0
    %2924 = vmatprep.subr.bf16.mxu0 0
    %2925 = vmatpush1.bf16.xpose.msra.mxu0 0
    %2926 = vmatprep.subr.bf16.mxu0 0
    %2927 = vmatpush1.bf16.xpose.msra.mxu0 0
    %2928 = vmatprep.subr.bf16.mxu0 0
    %2929 = vmatpush1.bf16.xpose.msra.mxu0 0
    %2930 = vmatprep.subr.bf16.mxu0 0
    %2931 = vmatpush1.bf16.xpose.msra.mxu0 0
    %2932 = vmatprep.subr.bf16.mxu0 0
    %2933 = vmatpush1.bf16.xpose.msra.mxu0 0
    %2934 = vmatprep.subr.bf16.mxu0 0
    %2935 = vmatpush1.bf16.xpose.msra.mxu0 0
    %2936 = vmatprep.subr.bf16.mxu0 0
    %2937 = vmatpush1.bf16.xpose.msra.mxu0 0
    %2938 = vmatprep.subr.bf16.mxu0 0
    %2939 = vmatpush1.bf16.xpose.msra.mxu0 0
    %2940 = vmatprep.subr.bf16.mxu0 0
    %2941 = vmatpush1.bf16.xpose.msra.mxu0 0
    %2942 = vmatprep.subr.bf16.mxu0 0
    %2943 = vmatpush1.bf16.xpose.msra.mxu0 0
    %2944 = vmatprep.mubr.bf16.mxu0 0
    %2945 = vmatmul.mubr.bf16.gmra.mrb[0].mxu0 %v2901
    %v2946 = vpop.f32.mrb[0].mxu0
    %v2947 = vadd.f32 0.0, %v2946
    %v2948 = vpop.f32.mrb[0].mxu0
    %v2949 = vpop.f32.mrb[0].mxu0
    %v2950 = vadd.f32 0.0, %v2949
    %v2951 = vpop.f32.mrb[0].mxu0
    %2952 = vmatprep.mubr.bf16.mxu0 0
    %2953 = vmatmul.mubr.bf16.gmra.mrb[0].mxu0 %v2904
    %v2954 = vpop.f32.mrb[0].mxu0
    %v2955 = vadd.f32 0.0, %v2954
    %v2956 = vpop.f32.mrb[0].mxu0
    %v2957 = vpop.f32.mrb[0].mxu0
    %v2958 = vpop.f32.mrb[0].mxu0
    %2959 = vdwg.mxu0
    %v2960 = vsel %vm902, %v2499, -inf
    %2961 = vmax.xlane.f32.xlu0 %v2960
    %v2962 = vpop.xlane.xlu0 %2961
    %v2963 = vsel %vm902, %v2502, -inf
    %2964 = vmax.xlane.f32.xlu0 %v2963
    %v2965 = vpop.xlane.xlu0 %2964
    %v2966 = vsel %vm909, %v2507, -inf
    %2967 = vmax.xlane.f32.xlu0 %v2966
    %v2968 = vpop.xlane.xlu0 %2967
    %v2969 = vsel %vm902, %v2563, -inf
    %2970 = vmax.xlane.f32.xlu0 %v2969
    %v2971 = vpop.xlane.xlu0 %2970
    %v2972 = vsel %vm902, %v2566, -inf
    %2973 = vmax.xlane.f32.xlu0 %v2972
    %v2974 = vpop.xlane.xlu0 %2973
    %v2975 = vsel %vm909, %v2571, -inf
    %2976 = vmax.xlane.f32.xlu0 %v2975
    %v2977 = vpop.xlane.xlu0 %2976
    %v2978 = vsel %vm902, %v2627, -inf
    %2979 = vmax.xlane.f32.xlu0 %v2978
    %v2980 = vpop.xlane.xlu0 %2979
    %v2981 = vsel %vm902, %v2630, -inf
    %2982 = vmax.xlane.f32.xlu0 %v2981
    %v2983 = vpop.xlane.xlu0 %2982
    %v2984 = vsel %vm909, %v2635, -inf
    %2985 = vmax.xlane.f32.xlu0 %v2984
    %v2986 = vpop.xlane.xlu0 %2985
    %v2987 = vsel %vm902, %v2691, -inf
    %2988 = vmax.xlane.f32.xlu0 %v2987
    %v2989 = vpop.xlane.xlu0 %2988
    %v2990 = vsel %vm902, %v2694, -inf
    %2991 = vmax.xlane.f32.xlu0 %v2990
    %v2992 = vpop.xlane.xlu0 %2991
    %v2993 = vsel %vm909, %v2699, -inf
    %2994 = vmax.xlane.f32.xlu0 %v2993
    %v2995 = vpop.xlane.xlu0 %2994
    %v2996 = vsel %vm902, %v2755, -inf
    %2997 = vmax.xlane.f32.xlu0 %v2996
    %v2998 = vpop.xlane.xlu0 %2997
    %v2999 = vsel %vm902, %v2758, -inf
    %3000 = vmax.xlane.f32.xlu0 %v2999
    %v3001 = vpop.xlane.xlu0 %3000
    %v3002 = vsel %vm909, %v2763, -inf
    %3003 = vmax.xlane.f32.xlu0 %v3002
    %v3004 = vpop.xlane.xlu0 %3003
    %v3005 = vsel %vm902, %v2819, -inf
    %3006 = vmax.xlane.f32.xlu0 %v3005
    %v3007 = vpop.xlane.xlu0 %3006
    %v3008 = vsel %vm902, %v2822, -inf
    %3009 = vmax.xlane.f32.xlu0 %v3008
    %v3010 = vpop.xlane.xlu0 %3009
    %v3011 = vsel %vm909, %v2827, -inf
    %3012 = vmax.xlane.f32.xlu0 %v3011
    %v3013 = vpop.xlane.xlu0 %3012
    %v3014 = vsel %vm902, %v2883, -inf
    %3015 = vmax.xlane.f32.xlu0 %v3014
    %v3016 = vpop.xlane.xlu0 %3015
    %v3017 = vsel %vm902, %v2886, -inf
    %3018 = vmax.xlane.f32.xlu0 %v3017
    %v3019 = vpop.xlane.xlu0 %3018
    %v3020 = vsel %vm909, %v2891, -inf
    %3021 = vmax.xlane.f32.xlu0 %v3020
    %v3022 = vpop.xlane.xlu0 %3021
    %v3023 = vsel %vm902, %v2947, -inf
    %3024 = vmax.xlane.f32.xlu0 %v3023
    %v3025 = vpop.xlane.xlu0 %3024
    %v3026 = vsel %vm902, %v2950, -inf
    %3027 = vmax.xlane.f32.xlu0 %v3026
    %v3028 = vpop.xlane.xlu0 %3027
    %v3029 = vsel %vm909, %v2955, -inf
    %3030 = vmax.xlane.f32.xlu0 %v3029
    %v3031 = vpop.xlane.xlu0 %3030
    %v3032 = vsub.f32 %v2499, %v2962
    %v3033 = vsub.f32 %v2502, %v2965
    %v3034 = vsub.f32 %v2507, %v2968
    %v3035 = vsub.f32 %v2563, %v2971
    %v3036 = vsub.f32 %v2566, %v2974
    %v3037 = vsub.f32 %v2571, %v2977
    %v3038 = vsub.f32 %v2627, %v2980
    %v3039 = vsub.f32 %v2630, %v2983
    %v3040 = vsub.f32 %v2635, %v2986
    %v3041 = vsub.f32 %v2691, %v2989
    %v3042 = vsub.f32 %v2694, %v2992
    %v3043 = vsub.f32 %v2699, %v2995
    %v3044 = vsub.f32 %v2755, %v2998
    %v3045 = vsub.f32 %v2758, %v3001
    %v3046 = vsub.f32 %v2763, %v3004
    %v3047 = vsub.f32 %v2819, %v3007
    %v3048 = vsub.f32 %v2822, %v3010
    %v3049 = vsub.f32 %v2827, %v3013
    %v3050 = vsub.f32 %v2883, %v3016
    %v3051 = vsub.f32 %v2886, %v3019
    %v3052 = vsub.f32 %v2891, %v3022
    %v3053 = vsub.f32 %v2947, %v3025
    %v3054 = vsub.f32 %v2950, %v3028
    %v3055 = vsub.f32 %v2955, %v3031
    %v3056 = vmul.f32 %v3032, 1.442695
    %v3057 = vpow.pop %v3056
    %v3058 = vmul.f32 %v3033, 1.442695
    %v3059 = vpow.pop %v3058
    %v3060 = vmul.f32 %v3034, 1.442695
    %v3061 = vpow.pop %v3060
    %v3062 = vmul.f32 %v3035, 1.442695
    %v3063 = vpow.pop %v3062
    %v3064 = vmul.f32 %v3036, 1.442695
    %v3065 = vpow.pop %v3064
    %v3066 = vmul.f32 %v3037, 1.442695
    %v3067 = vpow.pop %v3066
    %v3068 = vmul.f32 %v3038, 1.442695
    %v3069 = vpow.pop %v3068
    %v3070 = vmul.f32 %v3039, 1.442695
    %v3071 = vpow.pop %v3070
    %v3072 = vmul.f32 %v3040, 1.442695
    %v3073 = vpow.pop %v3072
    %v3074 = vmul.f32 %v3041, 1.442695
    %v3075 = vpow.pop %v3074
    %v3076 = vmul.f32 %v3042, 1.442695
    %v3077 = vpow.pop %v3076
    %v3078 = vmul.f32 %v3043, 1.442695
    %v3079 = vpow.pop %v3078
    %v3080 = vmul.f32 %v3044, 1.442695
    %v3081 = vpow.pop %v3080
    %v3082 = vmul.f32 %v3045, 1.442695
    %v3083 = vpow.pop %v3082
    %v3084 = vmul.f32 %v3046, 1.442695
    %v3085 = vpow.pop %v3084
    %v3086 = vmul.f32 %v3047, 1.442695
    %v3087 = vpow.pop %v3086
    %v3088 = vmul.f32 %v3048, 1.442695
    %v3089 = vpow.pop %v3088
    %v3090 = vmul.f32 %v3049, 1.442695
    %v3091 = vpow.pop %v3090
    %v3092 = vmul.f32 %v3050, 1.442695
    %v3093 = vpow.pop %v3092
    %v3094 = vmul.f32 %v3051, 1.442695
    %v3095 = vpow.pop %v3094
    %v3096 = vmul.f32 %v3052, 1.442695
    %v3097 = vpow.pop %v3096
    %v3098 = vmul.f32 %v3053, 1.442695
    %v3099 = vpow.pop %v3098
    %v3100 = vmul.f32 %v3054, 1.442695
    %v3101 = vpow.pop %v3100
    %v3102 = vmul.f32 %v3055, 1.442695
    %v3103 = vpow.pop %v3102
    %v3104 = vsel %vm902, %v3057, 0.0
    %3105 = vadd.xlane.f32.xlu0 %v3104
    %v3106 = vpop.xlane.xlu0 %3105
    %v3107 = vsel %vm902, %v3059, 0.0
    %3108 = vadd.xlane.f32.xlu0 %v3107
    %v3109 = vpop.xlane.xlu0 %3108
    %v3110 = vsel %vm909, %v3061, 0.0
    %3111 = vadd.xlane.f32.xlu0 %v3110
    %v3112 = vpop.xlane.xlu0 %3111
    %v3113 = vsel %vm902, %v3063, 0.0
    %3114 = vadd.xlane.f32.xlu0 %v3113
    %v3115 = vpop.xlane.xlu0 %3114
    %v3116 = vsel %vm902, %v3065, 0.0
    %3117 = vadd.xlane.f32.xlu0 %v3116
    %v3118 = vpop.xlane.xlu0 %3117
    %v3119 = vsel %vm909, %v3067, 0.0
    %3120 = vadd.xlane.f32.xlu0 %v3119
    %v3121 = vpop.xlane.xlu0 %3120
    %v3122 = vsel %vm902, %v3069, 0.0
    %3123 = vadd.xlane.f32.xlu0 %v3122
    %v3124 = vpop.xlane.xlu0 %3123
    %v3125 = vsel %vm902, %v3071, 0.0
    %3126 = vadd.xlane.f32.xlu0 %v3125
    %v3127 = vpop.xlane.xlu0 %3126
    %v3128 = vsel %vm909, %v3073, 0.0
    %3129 = vadd.xlane.f32.xlu0 %v3128
    %v3130 = vpop.xlane.xlu0 %3129
    %v3131 = vsel %vm902, %v3075, 0.0
    %3132 = vadd.xlane.f32.xlu0 %v3131
    %v3133 = vpop.xlane.xlu0 %3132
    %v3134 = vsel %vm902, %v3077, 0.0
    %3135 = vadd.xlane.f32.xlu0 %v3134
    %v3136 = vpop.xlane.xlu0 %3135
    %v3137 = vsel %vm909, %v3079, 0.0
    %3138 = vadd.xlane.f32.xlu0 %v3137
    %v3139 = vpop.xlane.xlu0 %3138
    %v3140 = vsel %vm902, %v3081, 0.0
    %3141 = vadd.xlane.f32.xlu0 %v3140
    %v3142 = vpop.xlane.xlu0 %3141
    %v3143 = vsel %vm902, %v3083, 0.0
    %3144 = vadd.xlane.f32.xlu0 %v3143
    %v3145 = vpop.xlane.xlu0 %3144
    %v3146 = vsel %vm909, %v3085, 0.0
    %3147 = vadd.xlane.f32.xlu0 %v3146
    %v3148 = vpop.xlane.xlu0 %3147
    %v3149 = vsel %vm902, %v3087, 0.0
    %3150 = vadd.xlane.f32.xlu0 %v3149
    %v3151 = vpop.xlane.xlu0 %3150
    %v3152 = vsel %vm902, %v3089, 0.0
    %3153 = vadd.xlane.f32.xlu0 %v3152
    %v3154 = vpop.xlane.xlu0 %3153
    %v3155 = vsel %vm909, %v3091, 0.0
    %3156 = vadd.xlane.f32.xlu0 %v3155
    %v3157 = vpop.xlane.xlu0 %3156
    %v3158 = vsel %vm902, %v3093, 0.0
    %3159 = vadd.xlane.f32.xlu0 %v3158
    %v3160 = vpop.xlane.xlu0 %3159
    %v3161 = vsel %vm902, %v3095, 0.0
    %3162 = vadd.xlane.f32.xlu0 %v3161
    %v3163 = vpop.xlane.xlu0 %3162
    %v3164 = vsel %vm909, %v3097, 0.0
    %3165 = vadd.xlane.f32.xlu0 %v3164
    %v3166 = vpop.xlane.xlu0 %3165
    %v3167 = vsel %vm902, %v3099, 0.0
    %3168 = vadd.xlane.f32.xlu0 %v3167
    %v3169 = vpop.xlane.xlu0 %3168
    %v3170 = vsel %vm902, %v3101, 0.0
    %3171 = vadd.xlane.f32.xlu0 %v3170
    %v3172 = vpop.xlane.xlu0 %3171
    %v3173 = vsel %vm909, %v3103, 0.0
    %3174 = vadd.xlane.f32.xlu0 %v3173
    %v3175 = vpop.xlane.xlu0 %3174
    %v3176 = vrcp.pop %v3106
    %v3177 = vrcp.pop %v3109
    %v3178 = vrcp.pop %v3112
    %v3179 = vrcp.pop %v3115
    %v3180 = vrcp.pop %v3118
    %v3181 = vrcp.pop %v3121
    %v3182 = vrcp.pop %v3124
    %v3183 = vrcp.pop %v3127
    %v3184 = vrcp.pop %v3130
    %v3185 = vrcp.pop %v3133
    %v3186 = vrcp.pop %v3136
    %v3187 = vrcp.pop %v3139
    %v3188 = vrcp.pop %v3142
    %v3189 = vrcp.pop %v3145
    %v3190 = vrcp.pop %v3148
    %v3191 = vrcp.pop %v3151
    %v3192 = vrcp.pop %v3154
    %v3193 = vrcp.pop %v3157
    %v3194 = vrcp.pop %v3160
    %v3195 = vrcp.pop %v3163
    %v3196 = vrcp.pop %v3166
    %v3197 = vrcp.pop %v3169
    %v3198 = vrcp.pop %v3172
    %v3199 = vrcp.pop %v3175
    %v3200 = vmul.f32 %v3057, %v3176
    %v3201 = vmul.f32 %v3059, %v3177
    %v3202 = vmul.f32 %v3061, %v3178
    %v3203 = vmul.f32 %v3063, %v3179
    %v3204 = vmul.f32 %v3065, %v3180
    %v3205 = vmul.f32 %v3067, %v3181
    %v3206 = vmul.f32 %v3069, %v3182
    %v3207 = vmul.f32 %v3071, %v3183
    %v3208 = vmul.f32 %v3073, %v3184
    %v3209 = vmul.f32 %v3075, %v3185
    %v3210 = vmul.f32 %v3077, %v3186
    %v3211 = vmul.f32 %v3079, %v3187
    %v3212 = vmul.f32 %v3081, %v3188
    %v3213 = vmul.f32 %v3083, %v3189
    %v3214 = vmul.f32 %v3085, %v3190
    %v3215 = vmul.f32 %v3087, %v3191
    %v3216 = vmul.f32 %v3089, %v3192
    %v3217 = vmul.f32 %v3091, %v3193
    %v3218 = vmul.f32 %v3093, %v3194
    %v3219 = vmul.f32 %v3095, %v3195
    %v3220 = vmul.f32 %v3097, %v3196
    %v3221 = vmul.f32 %v3099, %v3197
    %v3222 = vmul.f32 %v3101, %v3198
    %v3223 = vmul.f32 %v3103, %v3199
    %v3224 = vpack.c.bf16 %v3201, %v3200
    %v3225 = vpack.c.bf16 %v3202, %v3202
    %v3226 = vpack.c.bf16 %v3204, %v3203
    %v3227 = vpack.c.bf16 %v3205, %v3205
    %v3228 = vpack.c.bf16 %v3207, %v3206
    %v3229 = vpack.c.bf16 %v3208, %v3208
    %v3230 = vpack.c.bf16 %v3210, %v3209
    %v3231 = vpack.c.bf16 %v3211, %v3211
    %v3232 = vpack.c.bf16 %v3213, %v3212
    %v3233 = vpack.c.bf16 %v3214, %v3214
    %v3234 = vpack.c.bf16 %v3216, %v3215
    %v3235 = vpack.c.bf16 %v3217, %v3217
    %v3236 = vpack.c.bf16 %v3219, %v3218
    %v3237 = vpack.c.bf16 %v3220, %v3220
    %v3238 = vpack.c.bf16 %v3222, %v3221
    %v3239 = vpack.c.bf16 %v3223, %v3223
    %3240 = vrot.lane.b32.xlu0 %v2406, 64
    %v3241 = vpop.permute.xlu0 %3240
    %3242 = vrot.lane.b32.xlu0 %v2407, 64
    %v3243 = vpop.permute.xlu0 %3242
    %v3246 = vsel %vm902, %v3224, 0
    %v3249 = vsel %vm902, %v3225, 0
    %v3252 = vand.u32 %v3243, %v1196
    %3254 = vmatprep.subr.bf16.mxu0 0
    %3255 = vmatpush1.bf16.msra.mxu0 %v3241
    %3256 = vmatprep.subr.bf16.mxu0 0
    %3257 = vmatpush1.bf16.msra.mxu0 %v3252
    %3258 = vmatprep.subr.bf16.mxu0 0
    %3259 = vmatpush1.bf16.msra.mxu0 0
    %3260 = vmatprep.subr.bf16.mxu0 0
    %3261 = vmatpush1.bf16.msra.mxu0 0
    %3262 = vmatprep.subr.bf16.mxu0 0
    %3263 = vmatpush1.bf16.msra.mxu0 0
    %3264 = vmatprep.subr.bf16.mxu0 0
    %3265 = vmatpush1.bf16.msra.mxu0 0
    %3266 = vmatprep.subr.bf16.mxu0 0
    %3267 = vmatpush1.bf16.msra.mxu0 0
    %3268 = vmatprep.subr.bf16.mxu0 0
    %3269 = vmatpush1.bf16.msra.mxu0 0
    %3270 = vmatprep.subr.bf16.mxu0 0
    %3271 = vmatpush1.bf16.msra.mxu0 0
    %3272 = vmatprep.subr.bf16.mxu0 0
    %3273 = vmatpush1.bf16.msra.mxu0 0
    %3274 = vmatprep.subr.bf16.mxu0 0
    %3275 = vmatpush1.bf16.msra.mxu0 0
    %3276 = vmatprep.subr.bf16.mxu0 0
    %3277 = vmatpush1.bf16.msra.mxu0 0
    %3278 = vmatprep.subr.bf16.mxu0 0
    %3279 = vmatpush1.bf16.msra.mxu0 0
    %3280 = vmatprep.subr.bf16.mxu0 0
    %3281 = vmatpush1.bf16.msra.mxu0 0
    %3282 = vmatprep.subr.bf16.mxu0 0
    %3283 = vmatpush1.bf16.msra.mxu0 0
    %3284 = vmatprep.subr.bf16.mxu0 0
    %3285 = vmatpush1.bf16.msra.mxu0 0
    %3286 = vmatprep.mubr.bf16.mxu0 0
    %3287 = vmatmul.mubr.bf16.gmra.mrb[0].mxu0 %v3246
    %v3288 = vpop.f32.mrb[0].mxu0
    %v3289 = vadd.f32 0.0, %v3288
    %v3290 = vpop.f32.mrb[0].mxu0
    %v3291 = vpop.f32.mrb[0].mxu0
    %v3292 = vadd.f32 0.0, %v3291
    %v3293 = vpop.f32.mrb[0].mxu0
    %3294 = vmatprep.mubr.bf16.mxu0 0
    %3295 = vmatmul.mubr.bf16.gmra.mrb[0].mxu0 %v3249
    %v3296 = vpop.f32.mrb[0].mxu0
    %v3297 = vadd.f32 0.0, %v3296
    %v3298 = vpop.f32.mrb[0].mxu0
    %v3299 = vpop.f32.mrb[0].mxu0
    %v3300 = vpop.f32.mrb[0].mxu0
    %3301 = vdwg.mxu0
    %3302 = vrot.lane.b32.xlu0 %v2412, 64
    %v3303 = vpop.permute.xlu0 %3302
    %3304 = vrot.lane.b32.xlu0 %v2414, 64
    %v3305 = vpop.permute.xlu0 %3304
    %v3308 = vsel %vm902, %v3226, 0
    %v3311 = vsel %vm902, %v3227, 0
    %v3314 = vand.u32 %v3305, %v1196
    %3316 = vmatprep.subr.bf16.mxu0 0
    %3317 = vmatpush1.bf16.msra.mxu0 %v3303
    %3318 = vmatprep.subr.bf16.mxu0 0
    %3319 = vmatpush1.bf16.msra.mxu0 %v3314
    %3320 = vmatprep.subr.bf16.mxu0 0
    %3321 = vmatpush1.bf16.msra.mxu0 0
    %3322 = vmatprep.subr.bf16.mxu0 0
    %3323 = vmatpush1.bf16.msra.mxu0 0
    %3324 = vmatprep.subr.bf16.mxu0 0
    %3325 = vmatpush1.bf16.msra.mxu0 0
    %3326 = vmatprep.subr.bf16.mxu0 0
    %3327 = vmatpush1.bf16.msra.mxu0 0
    %3328 = vmatprep.subr.bf16.mxu0 0
    %3329 = vmatpush1.bf16.msra.mxu0 0
    %3330 = vmatprep.subr.bf16.mxu0 0
    %3331 = vmatpush1.bf16.msra.mxu0 0
    %3332 = vmatprep.subr.bf16.mxu0 0
    %3333 = vmatpush1.bf16.msra.mxu0 0
    %3334 = vmatprep.subr.bf16.mxu0 0
    %3335 = vmatpush1.bf16.msra.mxu0 0
    %3336 = vmatprep.subr.bf16.mxu0 0
    %3337 = vmatpush1.bf16.msra.mxu0 0
    %3338 = vmatprep.subr.bf16.mxu0 0
    %3339 = vmatpush1.bf16.msra.mxu0 0
    %3340 = vmatprep.subr.bf16.mxu0 0
    %3341 = vmatpush1.bf16.msra.mxu0 0
    %3342 = vmatprep.subr.bf16.mxu0 0
    %3343 = vmatpush1.bf16.msra.mxu0 0
    %3344 = vmatprep.subr.bf16.mxu0 0
    %3345 = vmatpush1.bf16.msra.mxu0 0
    %3346 = vmatprep.subr.bf16.mxu0 0
    %3347 = vmatpush1.bf16.msra.mxu0 0
    %3348 = vmatprep.mubr.bf16.mxu0 0
    %3349 = vmatmul.mubr.bf16.gmra.mrb[0].mxu0 %v3308
    %v3350 = vpop.f32.mrb[0].mxu0
    %v3351 = vadd.f32 0.0, %v3350
    %v3352 = vpop.f32.mrb[0].mxu0
    %v3353 = vpop.f32.mrb[0].mxu0
    %v3354 = vadd.f32 0.0, %v3353
    %v3355 = vpop.f32.mrb[0].mxu0
    %3356 = vmatprep.mubr.bf16.mxu0 0
    %3357 = vmatmul.mubr.bf16.gmra.mrb[0].mxu0 %v3311
    %v3358 = vpop.f32.mrb[0].mxu0
    %v3359 = vadd.f32 0.0, %v3358
    %v3360 = vpop.f32.mrb[0].mxu0
    %v3361 = vpop.f32.mrb[0].mxu0
    %v3362 = vpop.f32.mrb[0].mxu0
    %3363 = vdwg.mxu0
    %3364 = vrot.lane.b32.xlu0 %v2416, 64
    %v3365 = vpop.permute.xlu0 %3364
    %3366 = vrot.lane.b32.xlu0 %v2418, 64
    %v3367 = vpop.permute.xlu0 %3366
    %v3370 = vsel %vm902, %v3228, 0
    %v3373 = vsel %vm902, %v3229, 0
    %v3376 = vand.u32 %v3367, %v1196
    %3378 = vmatprep.subr.bf16.mxu0 0
    %3379 = vmatpush1.bf16.msra.mxu0 %v3365
    %3380 = vmatprep.subr.bf16.mxu0 0
    %3381 = vmatpush1.bf16.msra.mxu0 %v3376
    %3382 = vmatprep.subr.bf16.mxu0 0
    %3383 = vmatpush1.bf16.msra.mxu0 0
    %3384 = vmatprep.subr.bf16.mxu0 0
    %3385 = vmatpush1.bf16.msra.mxu0 0
    %3386 = vmatprep.subr.bf16.mxu0 0
    %3387 = vmatpush1.bf16.msra.mxu0 0
    %3388 = vmatprep.subr.bf16.mxu0 0
    %3389 = vmatpush1.bf16.msra.mxu0 0
    %3390 = vmatprep.subr.bf16.mxu0 0
    %3391 = vmatpush1.bf16.msra.mxu0 0
    %3392 = vmatprep.subr.bf16.mxu0 0
    %3393 = vmatpush1.bf16.msra.mxu0 0
    %3394 = vmatprep.subr.bf16.mxu0 0
    %3395 = vmatpush1.bf16.msra.mxu0 0
    %3396 = vmatprep.subr.bf16.mxu0 0
    %3397 = vmatpush1.bf16.msra.mxu0 0
    %3398 = vmatprep.subr.bf16.mxu0 0
    %3399 = vmatpush1.bf16.msra.mxu0 0
    %3400 = vmatprep.subr.bf16.mxu0 0
    %3401 = vmatpush1.bf16.msra.mxu0 0
    %3402 = vmatprep.subr.bf16.mxu0 0
    %3403 = vmatpush1.bf16.msra.mxu0 0
    %3404 = vmatprep.subr.bf16.mxu0 0
    %3405 = vmatpush1.bf16.msra.mxu0 0
    %3406 = vmatprep.subr.bf16.mxu0 0
    %3407 = vmatpush1.bf16.msra.mxu0 0
    %3408 = vmatprep.subr.bf16.mxu0 0
    %3409 = vmatpush1.bf16.msra.mxu0 0
    %3410 = vmatprep.mubr.bf16.mxu0 0
    %3411 = vmatmul.mubr.bf16.gmra.mrb[0].mxu0 %v3370
    %v3412 = vpop.f32.mrb[0].mxu0
    %v3413 = vadd.f32 0.0, %v3412
    %v3414 = vpop.f32.mrb[0].mxu0
    %v3415 = vpop.f32.mrb[0].mxu0
    %v3416 = vadd.f32 0.0, %v3415
    %v3417 = vpop.f32.mrb[0].mxu0
    %3418 = vmatprep.mubr.bf16.mxu0 0
    %3419 = vmatmul.mubr.bf16.gmra.mrb[0].mxu0 %v3373
    %v3420 = vpop.f32.mrb[0].mxu0
    %v3421 = vadd.f32 0.0, %v3420
    %v3422 = vpop.f32.mrb[0].mxu0
    %v3423 = vpop.f32.mrb[0].mxu0
    %v3424 = vpop.f32.mrb[0].mxu0
    %3425 = vdwg.mxu0
    %3426 = vrot.lane.b32.xlu0 %v2420, 64
    %v3427 = vpop.permute.xlu0 %3426
    %3428 = vrot.lane.b32.xlu0 %v2422, 64
    %v3429 = vpop.permute.xlu0 %3428
    %v3432 = vsel %vm902, %v3230, 0
    %v3435 = vsel %vm902, %v3231, 0
    %v3438 = vand.u32 %v3429, %v1196
    %3440 = vmatprep.subr.bf16.mxu0 0
    %3441 = vmatpush1.bf16.msra.mxu0 %v3427
    %3442 = vmatprep.subr.bf16.mxu0 0
    %3443 = vmatpush1.bf16.msra.mxu0 %v3438
    %3444 = vmatprep.subr.bf16.mxu0 0
    %3445 = vmatpush1.bf16.msra.mxu0 0
    %3446 = vmatprep.subr.bf16.mxu0 0
    %3447 = vmatpush1.bf16.msra.mxu0 0
    %3448 = vmatprep.subr.bf16.mxu0 0
    %3449 = vmatpush1.bf16.msra.mxu0 0
    %3450 = vmatprep.subr.bf16.mxu0 0
    %3451 = vmatpush1.bf16.msra.mxu0 0
    %3452 = vmatprep.subr.bf16.mxu0 0
    %3453 = vmatpush1.bf16.msra.mxu0 0
    %3454 = vmatprep.subr.bf16.mxu0 0
    %3455 = vmatpush1.bf16.msra.mxu0 0
    %3456 = vmatprep.subr.bf16.mxu0 0
    %3457 = vmatpush1.bf16.msra.mxu0 0
    %3458 = vmatprep.subr.bf16.mxu0 0
    %3459 = vmatpush1.bf16.msra.mxu0 0
    %3460 = vmatprep.subr.bf16.mxu0 0
    %3461 = vmatpush1.bf16.msra.mxu0 0
    %3462 = vmatprep.subr.bf16.mxu0 0
    %3463 = vmatpush1.bf16.msra.mxu0 0
    %3464 = vmatprep.subr.bf16.mxu0 0
    %3465 = vmatpush1.bf16.msra.mxu0 0
    %3466 = vmatprep.subr.bf16.mxu0 0
    %3467 = vmatpush1.bf16.msra.mxu0 0
    %3468 = vmatprep.subr.bf16.mxu0 0
    %3469 = vmatpush1.bf16.msra.mxu0 0
    %3470 = vmatprep.subr.bf16.mxu0 0
    %3471 = vmatpush1.bf16.msra.mxu0 0
    %3472 = vmatprep.mubr.bf16.mxu0 0
    %3473 = vmatmul.mubr.bf16.gmra.mrb[0].mxu0 %v3432
    %v3474 = vpop.f32.mrb[0].mxu0
    %v3475 = vadd.f32 0.0, %v3474
    %v3476 = vpop.f32.mrb[0].mxu0
    %v3477 = vpop.f32.mrb[0].mxu0
    %v3478 = vadd.f32 0.0, %v3477
    %v3479 = vpop.f32.mrb[0].mxu0
    %3480 = vmatprep.mubr.bf16.mxu0 0
    %3481 = vmatmul.mubr.bf16.gmra.mrb[0].mxu0 %v3435
    %v3482 = vpop.f32.mrb[0].mxu0
    %v3483 = vadd.f32 0.0, %v3482
    %v3484 = vpop.f32.mrb[0].mxu0
    %v3485 = vpop.f32.mrb[0].mxu0
    %v3486 = vpop.f32.mrb[0].mxu0
    %3487 = vdwg.mxu0
    %3488 = vrot.lane.b32.xlu0 %v2434, 64
    %v3489 = vpop.permute.xlu0 %3488
    %3490 = vrot.lane.b32.xlu0 %v2435, 64
    %v3491 = vpop.permute.xlu0 %3490
    %v3494 = vsel %vm902, %v3232, 0
    %v3497 = vsel %vm902, %v3233, 0
    %v3500 = vand.u32 %v3491, %v1196
    %3502 = vmatprep.subr.bf16.mxu0 0
    %3503 = vmatpush1.bf16.msra.mxu0 %v3489
    %3504 = vmatprep.subr.bf16.mxu0 0
    %3505 = vmatpush1.bf16.msra.mxu0 %v3500
    %3506 = vmatprep.subr.bf16.mxu0 0
    %3507 = vmatpush1.bf16.msra.mxu0 0
    %3508 = vmatprep.subr.bf16.mxu0 0
    %3509 = vmatpush1.bf16.msra.mxu0 0
    %3510 = vmatprep.subr.bf16.mxu0 0
    %3511 = vmatpush1.bf16.msra.mxu0 0
    %3512 = vmatprep.subr.bf16.mxu0 0
    %3513 = vmatpush1.bf16.msra.mxu0 0
    %3514 = vmatprep.subr.bf16.mxu0 0
    %3515 = vmatpush1.bf16.msra.mxu0 0
    %3516 = vmatprep.subr.bf16.mxu0 0
    %3517 = vmatpush1.bf16.msra.mxu0 0
    %3518 = vmatprep.subr.bf16.mxu0 0
    %3519 = vmatpush1.bf16.msra.mxu0 0
    %3520 = vmatprep.subr.bf16.mxu0 0
    %3521 = vmatpush1.bf16.msra.mxu0 0
    %3522 = vmatprep.subr.bf16.mxu0 0
    %3523 = vmatpush1.bf16.msra.mxu0 0
    %3524 = vmatprep.subr.bf16.mxu0 0
    %3525 = vmatpush1.bf16.msra.mxu0 0
    %3526 = vmatprep.subr.bf16.mxu0 0
    %3527 = vmatpush1.bf16.msra.mxu0 0
    %3528 = vmatprep.subr.bf16.mxu0 0
    %3529 = vmatpush1.bf16.msra.mxu0 0
    %3530 = vmatprep.subr.bf16.mxu0 0
    %3531 = vmatpush1.bf16.msra.mxu0 0
    %3532 = vmatprep.subr.bf16.mxu0 0
    %3533 = vmatpush1.bf16.msra.mxu0 0
    %3534 = vmatprep.mubr.bf16.mxu0 0
    %3535 = vmatmul.mubr.bf16.gmra.mrb[0].mxu0 %v3494
    %v3536 = vpop.f32.mrb[0].mxu0
    %v3537 = vadd.f32 0.0, %v3536
    %v3538 = vpop.f32.mrb[0].mxu0
    %v3539 = vpop.f32.mrb[0].mxu0
    %v3540 = vadd.f32 0.0, %v3539
    %v3541 = vpop.f32.mrb[0].mxu0
    %3542 = vmatprep.mubr.bf16.mxu0 0
    %3543 = vmatmul.mubr.bf16.gmra.mrb[0].mxu0 %v3497
    %v3544 = vpop.f32.mrb[0].mxu0
    %v3545 = vadd.f32 0.0, %v3544
    %v3546 = vpop.f32.mrb[0].mxu0
    %v3547 = vpop.f32.mrb[0].mxu0
    %v3548 = vpop.f32.mrb[0].mxu0
    %3549 = vdwg.mxu0
    %3550 = vrot.lane.b32.xlu0 %v2438, 64
    %v3551 = vpop.permute.xlu0 %3550
    %3552 = vrot.lane.b32.xlu0 %v2440, 64
    %v3553 = vpop.permute.xlu0 %3552
    %v3556 = vsel %vm902, %v3234, 0
    %v3559 = vsel %vm902, %v3235, 0
    %v3562 = vand.u32 %v3553, %v1196
    %3564 = vmatprep.subr.bf16.mxu0 0
    %3565 = vmatpush1.bf16.msra.mxu0 %v3551
    %3566 = vmatprep.subr.bf16.mxu0 0
    %3567 = vmatpush1.bf16.msra.mxu0 %v3562
    %3568 = vmatprep.subr.bf16.mxu0 0
    %3569 = vmatpush1.bf16.msra.mxu0 0
    %3570 = vmatprep.subr.bf16.mxu0 0
    %3571 = vmatpush1.bf16.msra.mxu0 0
    %3572 = vmatprep.subr.bf16.mxu0 0
    %3573 = vmatpush1.bf16.msra.mxu0 0
    %3574 = vmatprep.subr.bf16.mxu0 0
    %3575 = vmatpush1.bf16.msra.mxu0 0
    %3576 = vmatprep.subr.bf16.mxu0 0
    %3577 = vmatpush1.bf16.msra.mxu0 0
    %3578 = vmatprep.subr.bf16.mxu0 0
    %3579 = vmatpush1.bf16.msra.mxu0 0
    %3580 = vmatprep.subr.bf16.mxu0 0
    %3581 = vmatpush1.bf16.msra.mxu0 0
    %3582 = vmatprep.subr.bf16.mxu0 0
    %3583 = vmatpush1.bf16.msra.mxu0 0
    %3584 = vmatprep.subr.bf16.mxu0 0
    %3585 = vmatpush1.bf16.msra.mxu0 0
    %3586 = vmatprep.subr.bf16.mxu0 0
    %3587 = vmatpush1.bf16.msra.mxu0 0
    %3588 = vmatprep.subr.bf16.mxu0 0
    %3589 = vmatpush1.bf16.msra.mxu0 0
    %3590 = vmatprep.subr.bf16.mxu0 0
    %3591 = vmatpush1.bf16.msra.mxu0 0
    %3592 = vmatprep.subr.bf16.mxu0 0
    %3593 = vmatpush1.bf16.msra.mxu0 0
    %3594 = vmatprep.subr.bf16.mxu0 0
    %3595 = vmatpush1.bf16.msra.mxu0 0
    %3596 = vmatprep.mubr.bf16.mxu0 0
    %3597 = vmatmul.mubr.bf16.gmra.mrb[0].mxu0 %v3556
    %v3598 = vpop.f32.mrb[0].mxu0
    %v3599 = vadd.f32 0.0, %v3598
    %v3600 = vpop.f32.mrb[0].mxu0
    %v3601 = vpop.f32.mrb[0].mxu0
    %v3602 = vadd.f32 0.0, %v3601
    %v3603 = vpop.f32.mrb[0].mxu0
    %3604 = vmatprep.mubr.bf16.mxu0 0
    %3605 = vmatmul.mubr.bf16.gmra.mrb[0].mxu0 %v3559
    %v3606 = vpop.f32.mrb[0].mxu0
    %v3607 = vadd.f32 0.0, %v3606
    %v3608 = vpop.f32.mrb[0].mxu0
    %v3609 = vpop.f32.mrb[0].mxu0
    %v3610 = vpop.f32.mrb[0].mxu0
    %3611 = vdwg.mxu0
    %3612 = vrot.lane.b32.xlu0 %v2442, 64
    %v3613 = vpop.permute.xlu0 %3612
    %3614 = vrot.lane.b32.xlu0 %v2444, 64
    %v3615 = vpop.permute.xlu0 %3614
    %v3618 = vsel %vm902, %v3236, 0
    %v3621 = vsel %vm902, %v3237, 0
    %v3624 = vand.u32 %v3615, %v1196
    %3626 = vmatprep.subr.bf16.mxu0 0
    %3627 = vmatpush1.bf16.msra.mxu0 %v3613
    %3628 = vmatprep.subr.bf16.mxu0 0
    %3629 = vmatpush1.bf16.msra.mxu0 %v3624
    %3630 = vmatprep.subr.bf16.mxu0 0
    %3631 = vmatpush1.bf16.msra.mxu0 0
    %3632 = vmatprep.subr.bf16.mxu0 0
    %3633 = vmatpush1.bf16.msra.mxu0 0
    %3634 = vmatprep.subr.bf16.mxu0 0
    %3635 = vmatpush1.bf16.msra.mxu0 0
    %3636 = vmatprep.subr.bf16.mxu0 0
    %3637 = vmatpush1.bf16.msra.mxu0 0
    %3638 = vmatprep.subr.bf16.mxu0 0
    %3639 = vmatpush1.bf16.msra.mxu0 0
    %3640 = vmatprep.subr.bf16.mxu0 0
    %3641 = vmatpush1.bf16.msra.mxu0 0
    %3642 = vmatprep.subr.bf16.mxu0 0
    %3643 = vmatpush1.bf16.msra.mxu0 0
    %3644 = vmatprep.subr.bf16.mxu0 0
    %3645 = vmatpush1.bf16.msra.mxu0 0
    %3646 = vmatprep.subr.bf16.mxu0 0
    %3647 = vmatpush1.bf16.msra.mxu0 0
    %3648 = vmatprep.subr.bf16.mxu0 0
    %3649 = vmatpush1.bf16.msra.mxu0 0
    %3650 = vmatprep.subr.bf16.mxu0 0
    %3651 = vmatpush1.bf16.msra.mxu0 0
    %3652 = vmatprep.subr.bf16.mxu0 0
    %3653 = vmatpush1.bf16.msra.mxu0 0
    %3654 = vmatprep.subr.bf16.mxu0 0
    %3655 = vmatpush1.bf16.msra.mxu0 0
    %3656 = vmatprep.subr.bf16.mxu0 0
    %3657 = vmatpush1.bf16.msra.mxu0 0
    %3658 = vmatprep.mubr.bf16.mxu0 0
    %3659 = vmatmul.mubr.bf16.gmra.mrb[0].mxu0 %v3618
    %v3660 = vpop.f32.mrb[0].mxu0
    %v3661 = vadd.f32 0.0, %v3660
    %v3662 = vpop.f32.mrb[0].mxu0
    %v3663 = vpop.f32.mrb[0].mxu0
    %v3664 = vadd.f32 0.0, %v3663
    %v3665 = vpop.f32.mrb[0].mxu0
    %3666 = vmatprep.mubr.bf16.mxu0 0
    %3667 = vmatmul.mubr.bf16.gmra.mrb[0].mxu0 %v3621
    %v3668 = vpop.f32.mrb[0].mxu0
    %v3669 = vadd.f32 0.0, %v3668
    %v3670 = vpop.f32.mrb[0].mxu0
    %v3671 = vpop.f32.mrb[0].mxu0
    %v3672 = vpop.f32.mrb[0].mxu0
    %3673 = vdwg.mxu0
    %3674 = vrot.lane.b32.xlu0 %v2446, 64
    %v3675 = vpop.permute.xlu0 %3674
    %3676 = vrot.lane.b32.xlu0 %v2448, 64
    %v3677 = vpop.permute.xlu0 %3676
    %v3680 = vsel %vm902, %v3238, 0
    %v3683 = vsel %vm902, %v3239, 0
    %v3686 = vand.u32 %v3677, %v1196
    %3688 = vmatprep.subr.bf16.mxu0 0
    %3689 = vmatpush1.bf16.msra.mxu0 %v3675
    %3690 = vmatprep.subr.bf16.mxu0 0
    %3691 = vmatpush1.bf16.msra.mxu0 %v3686
    %3692 = vmatprep.subr.bf16.mxu0 0
    %3693 = vmatpush1.bf16.msra.mxu0 0
    %3694 = vmatprep.subr.bf16.mxu0 0
    %3695 = vmatpush1.bf16.msra.mxu0 0
    %3696 = vmatprep.subr.bf16.mxu0 0
    %3697 = vmatpush1.bf16.msra.mxu0 0
    %3698 = vmatprep.subr.bf16.mxu0 0
    %3699 = vmatpush1.bf16.msra.mxu0 0
    %3700 = vmatprep.subr.bf16.mxu0 0
    %3701 = vmatpush1.bf16.msra.mxu0 0
    %3702 = vmatprep.subr.bf16.mxu0 0
    %3703 = vmatpush1.bf16.msra.mxu0 0
    %3704 = vmatprep.subr.bf16.mxu0 0
    %3705 = vmatpush1.bf16.msra.mxu0 0
    %3706 = vmatprep.subr.bf16.mxu0 0
    %3707 = vmatpush1.bf16.msra.mxu0 0
    %3708 = vmatprep.subr.bf16.mxu0 0
    %3709 = vmatpush1.bf16.msra.mxu0 0
    %3710 = vmatprep.subr.bf16.mxu0 0
    %3711 = vmatpush1.bf16.msra.mxu0 0
    %3712 = vmatprep.subr.bf16.mxu0 0
    %3713 = vmatpush1.bf16.msra.mxu0 0
    %3714 = vmatprep.subr.bf16.mxu0 0
    %3715 = vmatpush1.bf16.msra.mxu0 0
    %3716 = vmatprep.subr.bf16.mxu0 0
    %3717 = vmatpush1.bf16.msra.mxu0 0
    %3718 = vmatprep.subr.bf16.mxu0 0
    %3719 = vmatpush1.bf16.msra.mxu0 0
    %3720 = vmatprep.mubr.bf16.mxu0 0
    %3721 = vmatmul.mubr.bf16.gmra.mrb[0].mxu0 %v3680
    %v3722 = vpop.f32.mrb[0].mxu0
    %v3723 = vadd.f32 0.0, %v3722
    %v3724 = vpop.f32.mrb[0].mxu0
    %v3725 = vpop.f32.mrb[0].mxu0
    %v3726 = vadd.f32 0.0, %v3725
    %v3727 = vpop.f32.mrb[0].mxu0
    %3728 = vmatprep.mubr.bf16.mxu0 0
    %3729 = vmatmul.mubr.bf16.gmra.mrb[0].mxu0 %v3683
    %v3730 = vpop.f32.mrb[0].mxu0
    %v3731 = vadd.f32 0.0, %v3730
    %v3732 = vpop.f32.mrb[0].mxu0
    %v3733 = vpop.f32.mrb[0].mxu0
    %v3734 = vpop.f32.mrb[0].mxu0
    %3735 = vdwg.mxu0
    %3739 = vrot.lane.b32.xlu0 %v3351, 8
    %v3740 = vpop.permute.xlu0 %3739
    %3741 = vrot.lane.b32.xlu0 %v3354, 8
    %v3742 = vpop.permute.xlu0 %3741
    %3743 = vrot.lane.b32.xlu0 %v3359, 8
    %v3744 = vpop.permute.xlu0 %3743
    %3751 = vrot.lane.b32.xlu0 %v3413, 16
    %v3752 = vpop.permute.xlu0 %3751
    %3753 = vrot.lane.b32.xlu0 %v3416, 16
    %v3754 = vpop.permute.xlu0 %3753
    %3755 = vrot.lane.b32.xlu0 %v3421, 16
    %v3756 = vpop.permute.xlu0 %3755
    %3763 = vrot.lane.b32.xlu0 %v3475, 24
    %v3764 = vpop.permute.xlu0 %3763
    %3765 = vrot.lane.b32.xlu0 %v3478, 24
    %v3766 = vpop.permute.xlu0 %3765
    %3767 = vrot.lane.b32.xlu0 %v3483, 24
    %v3768 = vpop.permute.xlu0 %3767
    %v3772 = vsel %vm394, %v3289, %v3740
    %v3773 = vsel %vm394, %v3292, %v3742
    %v3774 = vsel %vm394, %v3297, %v3744
    %v3775 = vsel %vm1721, %v3772, %v3752
    %v3776 = vsel %vm1721, %v3773, %v3754
    %v3777 = vsel %vm1721, %v3774, %v3756
    %v3778 = vsel %vm1725, %v3775, %v3764
    %v3779 = vsel %vm1725, %v3776, %v3766
    %v3780 = vsel %vm1725, %v3777, %v3768
    %3784 = vrot.lane.b32.xlu0 %v3599, 8
    %v3785 = vpop.permute.xlu0 %3784
    %3786 = vrot.lane.b32.xlu0 %v3602, 8
    %v3787 = vpop.permute.xlu0 %3786
    %3788 = vrot.lane.b32.xlu0 %v3607, 8
    %v3789 = vpop.permute.xlu0 %3788
    %3796 = vrot.lane.b32.xlu0 %v3661, 16
    %v3797 = vpop.permute.xlu0 %3796
    %3798 = vrot.lane.b32.xlu0 %v3664, 16
    %v3799 = vpop.permute.xlu0 %3798
    %3800 = vrot.lane.b32.xlu0 %v3669, 16
    %v3801 = vpop.permute.xlu0 %3800
    %3808 = vrot.lane.b32.xlu0 %v3723, 24
    %v3809 = vpop.permute.xlu0 %3808
    %3810 = vrot.lane.b32.xlu0 %v3726, 24
    %v3811 = vpop.permute.xlu0 %3810
    %3812 = vrot.lane.b32.xlu0 %v3731, 24
    %v3813 = vpop.permute.xlu0 %3812
    %v3817 = vsel %vm394, %v3537, %v3785
    %v3818 = vsel %vm394, %v3540, %v3787
    %v3819 = vsel %vm394, %v3545, %v3789
    %v3820 = vsel %vm1721, %v3817, %v3797
    %v3821 = vsel %vm1721, %v3818, %v3799
    %v3822 = vsel %vm1721, %v3819, %v3801
    %v3823 = vsel %vm1725, %v3820, %v3809
    %v3824 = vsel %vm1725, %v3821, %v3811
    %v3825 = vsel %vm1725, %v3822, %v3813
    %v3829 = vrot.slane %v3823, 7
    %v3830 = vrot.slane %v3824, 7
    %v3831 = vsel %vm28, %v3829, %v3830
    %v3832 = vrot.slane %v3825, 7
    %v3833 = vsel %vm28, %v3830, %v3832
    %v3837 = vsel %vm28, %v3780, %v3829
    %v3838 = vpack.c.bf16 %v3779, %v3778
    %v3839 = vpack.c.bf16 %v3831, %v3837
    %v3840 = vpack.c.bf16 %v3833, %v3833
    %v3841 = vlaneseq
    %v3842 = vshrl.u32 %v3841, 7
    %v3843 = vsub.s32 0, %v3842
    %v3844 = vrot.slane %v2234, %v3843
    %v3849 = vunpack.c.l.b16 %v2207
    %v3850 = vunpack.c.l.b16 %v2208
    %v3851 = vunpack.c.l.b16 %v2209
    %v3852 = vunpack.c.l.b16 %v2210
    %v3853 = vpack.c.b16 %v3850, %v3849
    %v3854 = vpack.c.b16 %v3852, %v3851
    %v3858 = vsel %vm176, %v3838, 0
    %v3861 = vsel %vm176, %v3839, 0
    %v3864 = vsel %vm176, %v3840, 0
    %3866 = vmatprep.subr.bf16.mxu0 0
    %3867 = vmatpush1.bf16.msra.mxu0 %v3853
    %3868 = vmatprep.subr.bf16.mxu0 0
    %3869 = vmatpush1.bf16.msra.mxu0 %v3854
    %3870 = vmatprep.subr.bf16.mxu0 0
    %3871 = vmatpush1.bf16.msra.mxu0 0
    %3872 = vmatprep.subr.bf16.mxu0 0
    %3873 = vmatpush1.bf16.msra.mxu0 0
    %3874 = vmatprep.subr.bf16.mxu0 0
    %3875 = vmatpush1.bf16.msra.mxu0 0
    %3876 = vmatprep.subr.bf16.mxu0 0
    %3877 = vmatpush1.bf16.msra.mxu0 0
    %3878 = vmatprep.subr.bf16.mxu0 0
    %3879 = vmatpush1.bf16.msra.mxu0 0
    %3880 = vmatprep.subr.bf16.mxu0 0
    %3881 = vmatpush1.bf16.msra.mxu0 0
    %3882 = vmatprep.subr.bf16.mxu0 0
    %3883 = vmatpush1.bf16.msra.mxu0 0
    %3884 = vmatprep.subr.bf16.mxu0 0
    %3885 = vmatpush1.bf16.msra.mxu0 0
    %3886 = vmatprep.subr.bf16.mxu0 0
    %3887 = vmatpush1.bf16.msra.mxu0 0
    %3888 = vmatprep.subr.bf16.mxu0 0
    %3889 = vmatpush1.bf16.msra.mxu0 0
    %3890 = vmatprep.subr.bf16.mxu0 0
    %3891 = vmatpush1.bf16.msra.mxu0 0
    %3892 = vmatprep.subr.bf16.mxu0 0
    %3893 = vmatpush1.bf16.msra.mxu0 0
    %3894 = vmatprep.subr.bf16.mxu0 0
    %3895 = vmatpush1.bf16.msra.mxu0 0
    %3896 = vmatprep.subr.bf16.mxu0 0
    %3897 = vmatpush1.bf16.msra.mxu0 0
    %3898 = vmatprep.mubr.bf16.mxu0 0
    %3899 = vmatmul.mubr.bf16.gmra.mrb[0].mxu0 %v3858
    %v3900 = vpop.f32.mrb[0].mxu0
    %v3901 = vadd.f32 %v3844, %v3900
    %v3902 = vpop.f32.mrb[0].mxu0
    %v3903 = vpop.f32.mrb[0].mxu0
    %v3904 = vadd.f32 %v3844, %v3903
    %v3905 = vpop.f32.mrb[0].mxu0
    %3906 = vmatprep.mubr.bf16.mxu0 0
    %3907 = vmatmul.mubr.bf16.gmra.mrb[0].mxu0 %v3861
    %v3908 = vpop.f32.mrb[0].mxu0
    %v3909 = vadd.f32 %v3844, %v3908
    %v3910 = vpop.f32.mrb[0].mxu0
    %v3911 = vpop.f32.mrb[0].mxu0
    %v3912 = vadd.f32 %v3844, %v3911
    %v3913 = vpop.f32.mrb[0].mxu0
    %3914 = vmatprep.mubr.bf16.mxu0 0
    %3915 = vmatmul.mubr.bf16.gmra.mrb[0].mxu0 %v3864
    %v3916 = vpop.f32.mrb[0].mxu0
    %v3917 = vadd.f32 %v3844, %v3916
    %v3918 = vpop.f32.mrb[0].mxu0
    %v3919 = vpop.f32.mrb[0].mxu0
    %v3920 = vpop.f32.mrb[0].mxu0
    %3921 = vdwg.mxu0
    %v3922 = vadd.f32 %v2198, %v3901
    %v3923 = vadd.f32 %v2199, %v3904
    %v3924 = vadd.f32 %v2200, %v3909
    %v3925 = vadd.f32 %v2201, %v3912
    %v3926 = vadd.f32 %v2202, %v3917
    %v3927 = vsel %vm176, %v3922, 0.0
    %3928 = vadd.xlane.f32.xlu0 %v3927
    %v3929 = vpop.xlane.xlu0 %3928
    %v3930 = vsel %vm176, %v3923, 0.0
    %3931 = vadd.xlane.f32.xlu0 %v3930
    %v3932 = vpop.xlane.xlu0 %3931
    %v3933 = vsel %vm176, %v3924, 0.0
    %3934 = vadd.xlane.f32.xlu0 %v3933
    %v3935 = vpop.xlane.xlu0 %3934
    %v3936 = vsel %vm176, %v3925, 0.0
    %3937 = vadd.xlane.f32.xlu0 %v3936
    %v3938 = vpop.xlane.xlu0 %3937
    %v3939 = vsel %vm189, %v3926, 0.0
    %3940 = vadd.xlane.f32.xlu0 %v3939
    %v3941 = vpop.xlane.xlu0 %3940
    %v3942 = vmul.f32 %v3929, %v193
    %v3943 = vmul.f32 %v3932, %v193
    %v3944 = vmul.f32 %v3935, %v193
    %v3945 = vmul.f32 %v3938, %v193
    %v3946 = vmul.f32 %v3941, %v193
    %v3947 = vsub.f32 %v3922, %v3942
    %v3948 = vsub.f32 %v3923, %v3943
    %v3949 = vsub.f32 %v3924, %v3944
    %v3950 = vsub.f32 %v3925, %v3945
    %v3951 = vsub.f32 %v3926, %v3946
    %v3952 = vmul.f32 %v3947, %v3947
    %v3953 = vmul.f32 %v3948, %v3948
    %v3954 = vmul.f32 %v3949, %v3949
    %v3955 = vmul.f32 %v3950, %v3950
    %v3956 = vmul.f32 %v3951, %v3951
    %v3957 = vsel %vm176, %v3952, 0.0
    %3958 = vadd.xlane.f32.xlu0 %v3957
    %v3959 = vpop.xlane.xlu0 %3958
    %v3960 = vsel %vm176, %v3953, 0.0
    %3961 = vadd.xlane.f32.xlu0 %v3960
    %v3962 = vpop.xlane.xlu0 %3961
    %v3963 = vsel %vm176, %v3954, 0.0
    %3964 = vadd.xlane.f32.xlu0 %v3963
    %v3965 = vpop.xlane.xlu0 %3964
    %v3966 = vsel %vm176, %v3955, 0.0
    %3967 = vadd.xlane.f32.xlu0 %v3966
    %v3968 = vpop.xlane.xlu0 %3967
    %v3969 = vsel %vm189, %v3956, 0.0
    %3970 = vadd.xlane.f32.xlu0 %v3969
    %v3971 = vpop.xlane.xlu0 %3970
    %v3972 = vmul.f32 %v3959, %v193
    %v3973 = vmul.f32 %v3962, %v193
    %v3974 = vmul.f32 %v3965, %v193
    %v3975 = vmul.f32 %v3968, %v193
    %v3976 = vmul.f32 %v3971, %v193
    %v3977 = vadd.f32 %v3972, 1e-06
    %v3978 = vadd.f32 %v3973, 1e-06
    %v3979 = vadd.f32 %v3974, 1e-06
    %v3980 = vadd.f32 %v3975, 1e-06
    %v3981 = vadd.f32 %v3976, 1e-06
    %v3982 = vrsqrt.pop %v3977
    %v3983 = vrsqrt.pop %v3978
    %v3984 = vrsqrt.pop %v3979
    %v3985 = vrsqrt.pop %v3980
    %v3986 = vrsqrt.pop %v3981
    %v3987 = vmul.f32 %v3947, %v3982
    %v3988 = vmul.f32 %v3948, %v3983
    %v3989 = vmul.f32 %v3949, %v3984
    %v3990 = vmul.f32 %v3950, %v3985
    %v3991 = vmul.f32 %v3951, %v3986
    %v3992 = vlaneseq
    %v3993 = vshrl.u32 %v3992, 7
    %v3994 = vsub.s32 0, %v3993
    %v3995 = vrot.slane %v2235, %v3994
    %v3996 = vmul.f32 %v3987, %v3995
    %v3997 = vmul.f32 %v3988, %v3995
    %v3998 = vmul.f32 %v3989, %v3995
    %v3999 = vmul.f32 %v3990, %v3995
    %v4000 = vmul.f32 %v3991, %v3995
    %v4001 = vlaneseq
    %v4002 = vshrl.u32 %v4001, 7
    %v4003 = vsub.s32 0, %v4002
    %v4004 = vrot.slane %v2236, %v4003
    %v4005 = vadd.f32 %v3996, %v4004
    %v4006 = vadd.f32 %v3997, %v4004
    %v4007 = vadd.f32 %v3998, %v4004
    %v4008 = vadd.f32 %v3999, %v4004
    %v4009 = vadd.f32 %v4000, %v4004
    %v4010 = vpack.c.bf16 %v4006, %v4005
    %v4011 = vpack.c.bf16 %v4008, %v4007
    %v4012 = vpack.c.bf16 %v4009, %v4009
    %v4013 = vlaneseq
    %v4014 = vshrl.u32 %v4013, 7
    %v4015 = vsub.s32 0, %v4014
    %v4016 = vrot.slane %v2237, %v4015
    %v4021 = vunpack.c.l.b16 %v2211
    %v4022 = vunpack.c.l.b16 %v2212
    %v4023 = vunpack.c.l.b16 %v2213
    %v4024 = vunpack.c.l.b16 %v2214
    %v4025 = vpack.c.b16 %v4022, %v4021
    %v4026 = vpack.c.b16 %v4024, %v4023
    %v4030 = vsel %vm176, %v4010, 0
    %v4033 = vsel %vm176, %v4011, 0
    %v4036 = vsel %vm176, %v4012, 0
    %4038 = vmatprep.subr.bf16.mxu0 0
    %4039 = vmatpush1.bf16.msra.mxu0 %v4025
    %4040 = vmatprep.subr.bf16.mxu0 0
    %4041 = vmatpush1.bf16.msra.mxu0 %v4026
    %4042 = vmatprep.subr.bf16.mxu0 0
    %4043 = vmatpush1.bf16.msra.mxu0 0
    %4044 = vmatprep.subr.bf16.mxu0 0
    %4045 = vmatpush1.bf16.msra.mxu0 0
    %4046 = vmatprep.subr.bf16.mxu0 0
    %4047 = vmatpush1.bf16.msra.mxu0 0
    %4048 = vmatprep.subr.bf16.mxu0 0
    %4049 = vmatpush1.bf16.msra.mxu0 0
    %4050 = vmatprep.subr.bf16.mxu0 0
    %4051 = vmatpush1.bf16.msra.mxu0 0
    %4052 = vmatprep.subr.bf16.mxu0 0
    %4053 = vmatpush1.bf16.msra.mxu0 0
    %4054 = vmatprep.subr.bf16.mxu0 0
    %4055 = vmatpush1.bf16.msra.mxu0 0
    %4056 = vmatprep.subr.bf16.mxu0 0
    %4057 = vmatpush1.bf16.msra.mxu0 0
    %4058 = vmatprep.subr.bf16.mxu0 0
    %4059 = vmatpush1.bf16.msra.mxu0 0
    %4060 = vmatprep.subr.bf16.mxu0 0
    %4061 = vmatpush1.bf16.msra.mxu0 0
    %4062 = vmatprep.subr.bf16.mxu0 0
    %4063 = vmatpush1.bf16.msra.mxu0 0
    %4064 = vmatprep.subr.bf16.mxu0 0
    %4065 = vmatpush1.bf16.msra.mxu0 0
    %4066 = vmatprep.subr.bf16.mxu0 0
    %4067 = vmatpush1.bf16.msra.mxu0 0
    %4068 = vmatprep.subr.bf16.mxu0 0
    %4069 = vmatpush1.bf16.msra.mxu0 0
    %4070 = vmatprep.mubr.bf16.mxu0 0
    %4071 = vmatmul.mubr.bf16.gmra.mrb[0].mxu0 %v4030
    %v4072 = vpop.f32.mrb[0].mxu0
    %v4073 = vadd.f32 %v4016, %v4072
    %v4074 = vpop.f32.mrb[0].mxu0
    %v4075 = vpop.f32.mrb[0].mxu0
    %v4076 = vadd.f32 %v4016, %v4075
    %v4077 = vpop.f32.mrb[0].mxu0
    %4078 = vmatprep.mubr.bf16.mxu0 0
    %4079 = vmatmul.mubr.bf16.gmra.mrb[0].mxu0 %v4033
    %v4080 = vpop.f32.mrb[0].mxu0
    %v4081 = vadd.f32 %v4016, %v4080
    %v4082 = vpop.f32.mrb[0].mxu0
    %v4083 = vpop.f32.mrb[0].mxu0
    %v4084 = vadd.f32 %v4016, %v4083
    %v4085 = vpop.f32.mrb[0].mxu0
    %4086 = vmatprep.mubr.bf16.mxu0 0
    %4087 = vmatmul.mubr.bf16.gmra.mrb[0].mxu0 %v4036
    %v4088 = vpop.f32.mrb[0].mxu0
    %v4089 = vadd.f32 %v4016, %v4088
    %v4090 = vpop.f32.mrb[0].mxu0
    %v4091 = vpop.f32.mrb[0].mxu0
    %v4092 = vpop.f32.mrb[0].mxu0
    %4093 = vdwg.mxu0
    %v4094 = vmul.f32 %v4073, 0.5
    %v4095 = vmul.f32 %v4076, 0.5
    %v4096 = vmul.f32 %v4081, 0.5
    %v4097 = vmul.f32 %v4084, 0.5
    %v4098 = vmul.f32 %v4089, 0.5
    %v4099 = vmul.f32 %v4073, 0.044715
    %v4100 = vmul.f32 %v4076, 0.044715
    %v4101 = vmul.f32 %v4081, 0.044715
    %v4102 = vmul.f32 %v4084, 0.044715
    %v4103 = vmul.f32 %v4089, 0.044715
    %v4104 = vmul.f32 %v4099, %v4073
    %v4105 = vmul.f32 %v4100, %v4076
    %v4106 = vmul.f32 %v4101, %v4081
    %v4107 = vmul.f32 %v4102, %v4084
    %v4108 = vmul.f32 %v4103, %v4089
    %v4109 = vmul.f32 %v4104, %v4073
    %v4110 = vmul.f32 %v4105, %v4076
    %v4111 = vmul.f32 %v4106, %v4081
    %v4112 = vmul.f32 %v4107, %v4084
    %v4113 = vmul.f32 %v4108, %v4089
    %v4114 = vadd.f32 %v4073, %v4109
    %v4115 = vadd.f32 %v4076, %v4110
    %v4116 = vadd.f32 %v4081, %v4111
    %v4117 = vadd.f32 %v4084, %v4112
    %v4118 = vadd.f32 %v4089, %v4113
    %v4119 = vmul.f32 %v4114, 0.7978846
    %v4120 = vmul.f32 %v4115, 0.7978846
    %v4121 = vmul.f32 %v4116, 0.7978846
    %v4122 = vmul.f32 %v4117, 0.7978846
    %v4123 = vmul.f32 %v4118, 0.7978846
    %v4124 = vtanh.pop %v4119
    %v4125 = vtanh.pop %v4120
    %v4126 = vtanh.pop %v4121
    %v4127 = vtanh.pop %v4122
    %v4128 = vtanh.pop %v4123
    %v4129 = vadd.f32 %v4124, 1.0
    %v4130 = vadd.f32 %v4125, 1.0
    %v4131 = vadd.f32 %v4126, 1.0
    %v4132 = vadd.f32 %v4127, 1.0
    %v4133 = vadd.f32 %v4128, 1.0
    %v4134 = vmul.f32 %v4094, %v4129
    %v4135 = vmul.f32 %v4095, %v4130
    %v4136 = vmul.f32 %v4096, %v4131
    %v4137 = vmul.f32 %v4097, %v4132
    %v4138 = vmul.f32 %v4098, %v4133
    %v4139 = vpack.c.bf16 %v4135, %v4134
    %v4140 = vpack.c.bf16 %v4137, %v4136
    %v4141 = vpack.c.bf16 %v4138, %v4138
    %v4142 = vlaneseq
    %v4143 = vshrl.u32 %v4142, 7
    %v4144 = vsub.s32 0, %v4143
    %v4145 = vrot.slane %v2238, %v4144
    %v4162 = vunpack.c.l.b16 %v2215
    %v4163 = vunpack.c.l.b16 %v2216
    %v4164 = vunpack.c.l.b16 %v2217
    %v4165 = vunpack.c.l.b16 %v2218
    %v4166 = vunpack.c.l.b16 %v2219
    %v4167 = vunpack.c.l.b16 %v2220
    %v4168 = vunpack.c.l.b16 %v2221
    %v4169 = vunpack.c.l.b16 %v2222
    %v4170 = vunpack.c.l.b16 %v2223
    %v4171 = vunpack.c.l.b16 %v2224
    %v4172 = vunpack.c.l.b16 %v2225
    %v4173 = vunpack.c.l.b16 %v2226
    %v4174 = vunpack.c.l.b16 %v2227
    %v4175 = vunpack.c.l.b16 %v2228
    %v4176 = vunpack.c.l.b16 %v2229
    %v4177 = vunpack.c.l.b16 %v2230
    %v4178 = vpack.c.b16 %v4163, %v4162
    %v4179 = vpack.c.b16 %v4165, %v4164
    %v4180 = vpack.c.b16 %v4167, %v4166
    %v4181 = vpack.c.b16 %v4169, %v4168
    %v4182 = vpack.c.b16 %v4171, %v4170
    %v4183 = vpack.c.b16 %v4173, %v4172
    %v4184 = vpack.c.b16 %v4175, %v4174
    %v4185 = vpack.c.b16 %v4177, %v4176
    %4194 = vmatprep.subr.bf16.mxu0 0
    %4195 = vmatpush1.bf16.msra.mxu0 %v4178
    %4196 = vmatprep.subr.bf16.mxu0 0
    %4197 = vmatpush1.bf16.msra.mxu0 %v4179
    %4198 = vmatprep.subr.bf16.mxu0 0
    %4199 = vmatpush1.bf16.msra.mxu0 %v4180
    %4200 = vmatprep.subr.bf16.mxu0 0
    %4201 = vmatpush1.bf16.msra.mxu0 %v4181
    %4202 = vmatprep.subr.bf16.mxu0 0
    %4203 = vmatpush1.bf16.msra.mxu0 %v4182
    %4204 = vmatprep.subr.bf16.mxu0 0
    %4205 = vmatpush1.bf16.msra.mxu0 %v4183
    %4206 = vmatprep.subr.bf16.mxu0 0
    %4207 = vmatpush1.bf16.msra.mxu0 %v4184
    %4208 = vmatprep.subr.bf16.mxu0 0
    %4209 = vmatpush1.bf16.msra.mxu0 %v4185
    %4210 = vmatprep.subr.bf16.mxu0 0
    %4211 = vmatpush1.bf16.msra.mxu0 0
    %4212 = vmatprep.subr.bf16.mxu0 0
    %4213 = vmatpush1.bf16.msra.mxu0 0
    %4214 = vmatprep.subr.bf16.mxu0 0
    %4215 = vmatpush1.bf16.msra.mxu0 0
    %4216 = vmatprep.subr.bf16.mxu0 0
    %4217 = vmatpush1.bf16.msra.mxu0 0
    %4218 = vmatprep.subr.bf16.mxu0 0
    %4219 = vmatpush1.bf16.msra.mxu0 0
    %4220 = vmatprep.subr.bf16.mxu0 0
    %4221 = vmatpush1.bf16.msra.mxu0 0
    %4222 = vmatprep.subr.bf16.mxu0 0
    %4223 = vmatpush1.bf16.msra.mxu0 0
    %4224 = vmatprep.subr.bf16.mxu0 0
    %4225 = vmatpush1.bf16.msra.mxu0 0
    %4226 = vmatprep.mubr.bf16.mxu0 0
    %4227 = vmatmul.mubr.bf16.gmra.mrb[0].mxu0 %v4139
    %v4228 = vpop.f32.mrb[0].mxu0
    %v4229 = vadd.f32 %v4145, %v4228
    %v4230 = vpop.f32.mrb[0].mxu0
    %v4231 = vpop.f32.mrb[0].mxu0
    %v4232 = vpop.f32.mrb[0].mxu0
    %4233 = vmatprep.mubr.bf16.mxu0 0
    %4234 = vmatmul.mubr.bf16.gmra.mrb[0].mxu0 %v4140
    %v4235 = vpop.f32.mrb[0].mxu0
    %v4236 = vadd.f32 %v4145, %v4235
    %v4237 = vpop.f32.mrb[0].mxu0
    %v4238 = vpop.f32.mrb[0].mxu0
    %v4239 = vpop.f32.mrb[0].mxu0
    %4240 = vmatprep.mubr.bf16.mxu0 0
    %4241 = vmatmul.mubr.bf16.gmra.mrb[0].mxu0 %v4141
    %v4242 = vpop.f32.mrb[0].mxu0
    %v4243 = vpop.f32.mrb[0].mxu0
    %v4244 = vpop.f32.mrb[0].mxu0
    %v4245 = vpop.f32.mrb[0].mxu0
    %4246 = vdwg.mxu0
    %v4247 = vadd.f32 %v3922, %v4229
    %v4248 = vadd.f32 %v3924, %v4236
    %v4249 = vld [vmem:[%s2 + $0x48] sm:$0x1]
    %v4250 = vld [vmem:[%s2 + $0x49] sm:$0x1]
    %v4251 = vld [vmem:[%s2 + $0x4a] sm:$0x1]
    %v4252 = vld [vmem:[%s2 + $0x18] sm:$0xff]
    %v4253 = vld [vmem:[%s2 + $0x20] sm:$0xff]
    %v4254 = vld [vmem:[%s2 + $0x28] sm:$0xff]
    %v4255 = vld [vmem:[%s2 + $0x30] sm:$0xff]
    %v4256 = vsel %vm28, %v4247, %v4248
    %v4257 = vsel %vm189, %v4256, 0.0
    %4258 = vadd.xlane.f32.xlu0 %v4257
    %v4259 = vpop.xlane.xlu0 %4258
    %v4260 = vmul.f32 %v4259, %v193
    %v4261 = vsub.f32 %v4256, %v4260
    %v4262 = vmul.f32 %v4261, %v4261
    %v4263 = vsel %vm189, %v4262, 0.0
    %4264 = vadd.xlane.f32.xlu0 %v4263
    %v4265 = vpop.xlane.xlu0 %4264
    %v4266 = vmul.f32 %v4265, %v193
    %v4267 = vadd.f32 %v4266, 1e-06
    %v4268 = vrsqrt.pop %v4267
    %v4269 = vmul.f32 %v4261, %v4268
    %v4270 = vlaneseq
    %v4271 = vshrl.u32 %v4270, 7
    %v4272 = vsub.s32 0, %v4271
    %v4273 = vrot.slane %v4249, %v4272
    %v4274 = vmul.f32 %v4269, %v4273
    %v4275 = vlaneseq
    %v4276 = vshrl.u32 %v4275, 7
    %v4277 = vsub.s32 0, %v4276
    %v4278 = vrot.slane %v4250, %v4277
    %v4279 = vadd.f32 %v4274, %v4278
    %v4280 = vlaneseq
    %v4281 = vshrl.u32 %v4280, 7
    %v4282 = vsub.s32 0, %v4281
    %v4283 = vrot.slane %v4251, %v4282
    %v4285 = vsel %vm176, %v4279, 0
    %4287 = vmatprep.subr.mxu0 0.0
    %4288 = vmatpush1.msra.mxu0 %v4252
    %4289 = vmatprep.subr.mxu0 0.0
    %4290 = vmatpush1.msra.mxu0 %v4253
    %4291 = vmatprep.subr.mxu0 0.0
    %4292 = vmatpush1.msra.mxu0 %v4254
    %4293 = vmatprep.subr.mxu0 0.0
    %4294 = vmatpush1.msra.mxu0 %v4255
    %4295 = vmatprep.subr.mxu0 0.0
    %4296 = vmatpush1.msra.mxu0 0.0
    %4297 = vmatprep.subr.mxu0 0.0
    %4298 = vmatpush1.msra.mxu0 0.0
    %4299 = vmatprep.subr.mxu0 0.0
    %4300 = vmatpush1.msra.mxu0 0.0
    %4301 = vmatprep.subr.mxu0 0.0
    %4302 = vmatpush1.msra.mxu0 0.0
    %4303 = vmatprep.subr.mxu0 0.0
    %4304 = vmatpush1.msra.mxu0 0.0
    %4305 = vmatprep.subr.mxu0 0.0
    %4306 = vmatpush1.msra.mxu0 0.0
    %4307 = vmatprep.subr.mxu0 0.0
    %4308 = vmatpush1.msra.mxu0 0.0
    %4309 = vmatprep.subr.mxu0 0.0
    %4310 = vmatpush1.msra.mxu0 0.0
    %4311 = vmatprep.subr.mxu0 0.0
    %4312 = vmatpush1.msra.mxu0 0.0
    %4313 = vmatprep.subr.mxu0 0.0
    %4314 = vmatpush1.msra.mxu0 0.0
    %4315 = vmatprep.subr.mxu0 0.0
    %4316 = vmatpush1.msra.mxu0 0.0
    %4317 = vmatprep.subr.mxu0 0.0
    %4318 = vmatpush1.msra.mxu0 0.0
    %4319 = vmatprep.subr.mxu0 0.0
    %4320 = vmatpush1.msra.mxu0 0.0
    %4321 = vmatprep.subr.mxu0 0.0
    %4322 = vmatpush1.msra.mxu0 0.0
    %4323 = vmatprep.subr.mxu0 0.0
    %4324 = vmatpush1.msra.mxu0 0.0
    %4325 = vmatprep.subr.mxu0 0.0
    %4326 = vmatpush1.msra.mxu0 0.0
    %4327 = vmatprep.subr.mxu0 0.0
    %4328 = vmatpush1.msra.mxu0 0.0
    %4329 = vmatprep.subr.mxu0 0.0
    %4330 = vmatpush1.msra.mxu0 0.0
    %4331 = vmatprep.subr.mxu0 0.0
    %4332 = vmatpush1.msra.mxu0 0.0
    %4333 = vmatprep.subr.mxu0 0.0
    %4334 = vmatpush1.msra.mxu0 0.0
    %4335 = vmatprep.subr.mxu0 0.0
    %4336 = vmatpush1.msra.mxu0 0.0
    %4337 = vmatprep.subr.mxu0 0.0
    %4338 = vmatpush1.msra.mxu0 0.0
    %4339 = vmatprep.subr.mxu0 0.0
    %4340 = vmatpush1.msra.mxu0 0.0
    %4341 = vmatprep.subr.mxu0 0.0
    %4342 = vmatpush1.msra.mxu0 0.0
    %4343 = vmatprep.subr.mxu0 0.0
    %4344 = vmatpush1.msra.mxu0 0.0
    %4345 = vmatprep.subr.mxu0 0.0
    %4346 = vmatpush1.msra.mxu0 0.0
    %4347 = vmatprep.subr.mxu0 0.0
    %4348 = vmatpush1.msra.mxu0 0.0
    %4349 = vmatprep.subr.mxu0 0.0
    %4350 = vmatpush1.msra.mxu0 0.0
    %4351 = vmatprep.mubr.f32.mxu0 0.0
    %4352 = vmatmul.mubr.f32.gmra.mrb[0].mxu0 %v4285
    %v4353 = vpop.f32.mrb[0].mxu0
    %v4354 = vadd.f32 %v4283, %v4353
    %v4355 = vpop.f32.mrb[0].mxu0
    %4356 = vdwg.mxu0
    %v4357 = vmul.f32 %v4354, %v4354
    %vm4358 = vcmask 123904
    %v4359 = vsel %vm4358, %v4357, 0.0
    %4360 = vadd.xlane.f32.xlu0 %v4359
    %v4361 = vpop.xlane.xlu0 %4360
    %v4362 = vrsqrt.pop %v4361
    %v4363 = vmul.f32 %v4361, %v4362
    %vm4364 = vcmp.eq.f32.partialorder %v4361, inf
    %v4365 = vsel %vm4364, %v4361, %v4363
    %vm4366 = vcmp.eq.f32.partialorder %v4361, 0.0
    %v4367 = vand.u32 %v4361, 2147483648
    %v4368 = vsel %vm4366, %v4367, %v4365
    %v4369 = vadd.f32 %v4368, 1e-05
    %v4370 = vrcp.pop %v4369
    %v4371 = vmul.f32 2.0, %v4370
    %v4372 = vmin.f32 %v4371, 1.0
    %v4373 = vmul.f32 %v4354, %v4372
    %v4374 = vmul.f32 %v4373, %v4373
    %v4375 = vsel %vm4358, %v4374, 0.0
    %4376 = vadd.xlane.f32.xlu0 %v4375
    %v4377 = vpop.xlane.xlu0 %4376
    %v4378 = vrsqrt.pop %v4377
    %v4379 = vmul.f32 %v4377, %v4378
    %vm4380 = vcmp.eq.f32.partialorder %v4377, inf
    %v4381 = vsel %vm4380, %v4377, %v4379
    %vm4382 = vcmp.eq.f32.partialorder %v4377, 0.0
    %v4383 = vand.u32 %v4377, 2147483648
    %v4384 = vsel %vm4382, %v4383, %v4381
    %v4385 = vmax.f32 %v4384, 1e-15
    %v4386 = vtanh.pop %v4385
    %v4387 = vmul.f32 %v4386, %v4373
    %v4388 = vrcp.pop %v4385
    %v4389 = vmul.f32 %v4387, %v4388
    %4390 = vst.msk [vmem:[#allocation2] sm:$0x3] %vm4358, %v4389
    // Predicated region
    $region14: #{hyperbolic_vit_forward.1} parent=1 // pred_check
      _
    $region15: #{hyperbolic_vit_forward.1} parent=1 // pred_check_branch
      %4392 = sbr.rel (0) target = $region17
    $region16: #{hyperbolic_vit_forward.1} parent=1 // pred_region
      %s4394 = ssub.s32 32, 32
      %4395 = vsyncadd [#allocation3], %s4394
      %s4397 = sshll.u32 [#allocation2], 4
      %s4398 = int_to_ptr.vmem [resolvable:$true] %s4397
      %4400 = dma.vmem_to_hbm [thread:$0]  %s4398, 32, %s3, [#allocation3]
    $region17: #{hyperbolic_vit_forward.1} parent=1 // pred_fallthru
      _
    // Predicated region
    $region18: #{hyperbolic_vit_forward.1} parent=1 // pred_check
      _
    $region19: #{hyperbolic_vit_forward.1} parent=1 // pred_check_branch
      %4402 = sbr.rel (0) target = $region21
    $region20: #{hyperbolic_vit_forward.1} parent=1 // pred_region
      %4403 = dma.done [#allocation3], 32
    $region21: #{hyperbolic_vit_forward.1} parent=1 // pred_fallthru
      _
    %4404 = vsyncpa [#allocation3], 1

</llo_original>
